<compile_context>
chip_gen: v5e
topology: v5e:2x2
jax: 0.10.0
libtpu: 0.0.40
codegen_flags: <defaults>
</compile_context>

<pallas_src>
import functools

import jax
import jax.numpy as jnp
from jax.experimental import pallas as pl
from jax.experimental.pallas import tpu as pltpu

BN_EPS = 1e-5
H1, H2 = 500, 4000        # logical hidden widths (as in the PyTorch module)
H1P, H2P = 512, 4096      # lane-dense padded hidden widths (multiples of 128)


def _bn_relu(h, gamma, beta):
    # BatchNorm1d training-mode forward: per-feature batch mean, biased variance.
    mean = jnp.mean(h, axis=0, keepdims=True)
    var = jnp.mean((h - mean) ** 2, axis=0, keepdims=True)
    h_hat = (h - mean) * jax.lax.rsqrt(var + BN_EPS)
    return jnp.maximum(h_hat * gamma + beta, 0.0)


def decoder_kernel(
    x_ref, w1_ref, g1_ref, be1_ref,
    w2_ref, g2_ref, be2_ref,
    w3_ref, b3_ref,
    out_ref,
    h1_bf16,                 # VMEM scratch: layer-1 activations, computed once
    *, apply_epilogue,
):
    j = pl.program_id(1)

    @pl.when(j == 0)
    def _():
        # Layer 1 (Linear -> BN -> ReLU).  The Linear bias cancels exactly
        # against the batch-mean subtraction of training-mode BN -> dropped.
        x = x_ref[...].astype(jnp.bfloat16)
        h1 = jnp.dot(x, w1_ref[...], preferred_element_type=jnp.float32)
        h1 = _bn_relu(h1, g1_ref[...], be1_ref[...])
        h1_bf16[...] = h1.astype(jnp.bfloat16)     # cast once, reuse every step
        out_ref[...] = jnp.zeros_like(out_ref)

    # Layer 2 on one lane tile of the padded 4096-wide hidden axis.  BN stats
    # reduce over the batch axis only, so feature tiling is exact.  Weights stay
    # bf16 and feed the MXU directly (f32 accumulation) -- no upcast copies.
    h2 = jnp.dot(h1_bf16[...], w2_ref[...], preferred_element_type=jnp.float32)
    h2 = _bn_relu(h2, g2_ref[...], be2_ref[...])

    # Accumulate this tile's contribution to the logits in the resident output.
    out_ref[...] += jnp.dot(h2.astype(jnp.bfloat16), w3_ref[...],
                            preferred_element_type=jnp.float32)

    if apply_epilogue:
        @pl.when(j == pl.num_programs(1) - 1)
        def _():
            out_ref[...] = jax.nn.sigmoid(out_ref[...] + b3_ref[...])


@functools.partial(jax.jit, static_argnames=("tile_n", "num_parallel"))
def decoder_forward(x, params, *, tile_n=2048, num_parallel=1):
    """num_parallel=1: fully fused (v5e/v6e).  num_parallel=2: keeps a 'parallel'
    grid axis so v7x's two TensorCores each stream half the weights."""
    B, in_f = x.shape
    out_f = params["w3"].shape[1]
    assert H2P % tile_n == 0
    num_tiles = H2P // tile_n
    assert num_tiles % num_parallel == 0
    num_inner = num_tiles // num_parallel
    apply_epilogue = num_parallel == 1

    def tile_idx(pi, j):
        return pi * num_inner + j

    grid_spec = pltpu.PrefetchScalarGridSpec(
        num_scalar_prefetch=0,
        grid=(num_parallel, num_inner),
        in_specs=[
            pl.BlockSpec((B, in_f), lambda pi, j: (0, 0)),                      # x
            pl.BlockSpec((in_f, H1P), lambda pi, j: (0, 0)),                    # w1 (bf16)
            pl.BlockSpec((1, H1P), lambda pi, j: (0, 0)),                       # gamma1
            pl.BlockSpec((1, H1P), lambda pi, j: (0, 0)),                       # beta1
            pl.BlockSpec((H1P, tile_n), lambda pi, j: (0, tile_idx(pi, j))),    # w2 tile (bf16)
            pl.BlockSpec((1, tile_n), lambda pi, j: (0, tile_idx(pi, j))),      # gamma2 tile
            pl.BlockSpec((1, tile_n), lambda pi, j: (0, tile_idx(pi, j))),      # beta2 tile
            pl.BlockSpec((tile_n, out_f), lambda pi, j: (tile_idx(pi, j), 0)),  # w3 tile (bf16)
            pl.BlockSpec((1, out_f), lambda pi, j: (0, 0)),                     # b3
        ],
        out_specs=pl.BlockSpec((None, B, out_f), lambda pi, j: (pi, 0, 0)),
        scratch_shapes=[pltpu.VMEM((B, H1P), jnp.bfloat16)],
    )

    cost = pl.CostEstimate(
        flops=int(2 * B * (in_f * H1P + H1P * H2P + H2P * out_f)),
        transcendentals=int(H1P + H2P + B * out_f),   # rsqrt in BN + sigmoid
        bytes_accessed=int(
            x.size * 4
            + params["w1"].size * 2 + 2 * H1P * 4
            + params["w2"].size * 2 + 2 * H2P * 4
            + params["w3"].size * 2 + out_f * 4
            + num_parallel * B * out_f * 4
        ),
    )

    partials = pl.pallas_call(
        functools.partial(decoder_kernel, apply_epilogue=apply_epilogue),
        out_shape=jax.ShapeDtypeStruct((num_parallel, B, out_f), jnp.float32),
        grid_spec=grid_spec,
        compiler_params=pltpu.CompilerParams(
            dimension_semantics=("parallel", "arbitrary"),
            vmem_limit_bytes=32 << 20,   # v7x-safe (64 MiB physical per TC)
        ),
        cost_estimate=cost,
    )(
        x,
        params["w1"], params["g1"], params["be1"],
        params["w2"], params["g2"], params["be2"],
        params["w3"], params["b3"],
    )

    if apply_epilogue:
        return partials[0]                      # sigmoid already applied in-kernel
    # v7x path: tiny reduce of the per-TensorCore partials + bias + sigmoid.
    logits = jnp.sum(partials, axis=0) + params["b3"]
    return jax.nn.sigmoid(logits)


def init_params(key, in_features, out_features):
    """PyTorch-like init (uniform +-1/sqrt(fan_in) for Linear, ones/zeros for BN).
    Master copies are f32; pad_params produces the kernel-ready bf16 versions."""
    ks = jax.random.split(key, 6)

    def lin(kw, kb, fan_in, fan_out):
        bound = 1.0 / float(fan_in) ** 0.5
        w = jax.random.uniform(kw, (fan_in, fan_out), jnp.float32, -bound, bound)
        b = jax.random.uniform(kb, (1, fan_out), jnp.float32, -bound, bound)
        return w, b

    w1, b1 = lin(ks[0], ks[1], in_features, H1)
    w2, b2 = lin(ks[2], ks[3], H1, H2)
    w3, b3 = lin(ks[4], ks[5], H2, out_features)
    return {
        "w1": w1, "b1": b1,
        "g1": jnp.ones((1, H1), jnp.float32), "be1": jnp.zeros((1, H1), jnp.float32),
        "w2": w2, "b2": b2,
        "g2": jnp.ones((1, H2), jnp.float32), "be2": jnp.zeros((1, H2), jnp.float32),
        "w3": w3, "b3": b3,
    }


def pad_params(p):
    """Kernel-ready params: zero-padded to lane-dense widths, weights in bf16.
    Padded features stay exactly zero through Linear+BN+ReLU, and b1/b2 are
    dropped because they cancel exactly against the BN batch mean."""
    def pad_cols(a, t):
        return jnp.pad(a, ((0, 0), (0, t - a.shape[1])))

    def pad_rows(a, t):
        return jnp.pad(a, ((0, t - a.shape[0]), (0, 0)))

    return {
        "w1": pad_cols(p["w1"], H1P).astype(jnp.bfloat16),
        "g1": pad_cols(p["g1"], H1P),
        "be1": pad_cols(p["be1"], H1P),
        "w2": pad_cols(pad_rows(p["w2"], H1P), H2P).astype(jnp.bfloat16),
        "g2": pad_cols(p["g2"], H2P),
        "be2": pad_cols(p["be2"], H2P),
        "w3": pad_rows(p["w3"], H2P).astype(jnp.bfloat16),
        "b3": p["b3"],
    }


def decoder_ref_matched(x, p):
    """Pure-JAX reference with the SAME numerics the kernel uses (bf16 weights,
    bf16 MXU operands, f32 accumulation, b1/b2 dropped -- exact under BN)."""
    w1 = p["w1"].astype(jnp.bfloat16)
    w2 = p["w2"].astype(jnp.bfloat16)
    w3 = p["w3"].astype(jnp.bfloat16)
    h = jnp.dot(x.astype(jnp.bfloat16), w1, preferred_element_type=jnp.float32)
    h = _bn_relu(h, p["g1"], p["be1"])
    h = jnp.dot(h.astype(jnp.bfloat16), w2, preferred_element_type=jnp.float32)
    h = _bn_relu(h, p["g2"], p["be2"])
    logits = jnp.dot(h.astype(jnp.bfloat16), w3,
                     preferred_element_type=jnp.float32) + p["b3"]
    return jax.nn.sigmoid(logits)


def decoder_ref_f32(x, p):
    """Full-precision reference of the original PyTorch forward (with biases)."""
    h = x @ p["w1"] + p["b1"]
    m, v = jnp.mean(h, 0, keepdims=True), jnp.var(h, 0, keepdims=True)
    h = jnp.maximum((h - m) / jnp.sqrt(v + BN_EPS) * p["g1"] + p["be1"], 0.0)
    h = h @ p["w2"] + p["b2"]
    m, v = jnp.mean(h, 0, keepdims=True), jnp.var(h, 0, keepdims=True)
    h = jnp.maximum((h - m) / jnp.sqrt(v + BN_EPS) * p["g2"] + p["be2"], 0.0)
    return jax.nn.sigmoid(h @ p["w3"] + p["b3"])


if __name__ == "__main__":
    B, in_features, out_features = 8, 32, 64
    key = jax.random.PRNGKey(0)
    kx, kp = jax.random.split(key)
    x = jax.random.normal(kx, (B, in_features), jnp.float32)

    params = init_params(kp, in_features, out_features)
    padded = pad_params(params)

    # Default fully-fused path (v5e/v6e) and the 2-way parallel path (v7x).
    out = jax.block_until_ready(decoder_forward(x, padded))
    out_p2 = jax.block_until_ready(decoder_forward(x, padded, num_parallel=2))

    ref_m = jax.block_until_ready(decoder_ref_matched(x, params))
    ref_f = jax.block_until_ready(decoder_ref_f32(x, params))

    assert out.shape == (B, out_features), out.shape
    err_matched = float(jnp.max(jnp.abs(out - ref_m)))      # same-numerics check
    err_f32 = float(jnp.max(jnp.abs(out - ref_f)))          # vs full-f32 module
    err_par = float(jnp.max(jnp.abs(out - out_p2)))         # fused vs 2-way split
    assert err_matched < 1e-3, err_matched
    assert err_f32 < 3e-2, err_f32
    assert err_par < 1e-4, err_par
    print("KERNEL_OK")
</pallas_src>

<mosaic_0001>
module attributes {stable_mosaic.version = 11 : i64} {
  func.func @decoder_kernel(%arg0: i32, %arg1: i32, %arg2: memref<8x32xf32, #tpu.memory_space<vmem>>, %arg3: memref<32x512xbf16, #tpu.memory_space<vmem>>, %arg4: memref<1x512xf32, #tpu.memory_space<vmem>>, %arg5: memref<1x512xf32, #tpu.memory_space<vmem>>, %arg6: memref<512x2048xbf16, #tpu.memory_space<vmem>>, %arg7: memref<1x2048xf32, #tpu.memory_space<vmem>>, %arg8: memref<1x2048xf32, #tpu.memory_space<vmem>>, %arg9: memref<2048x64xbf16, #tpu.memory_space<vmem>>, %arg10: memref<1x64xf32, #tpu.memory_space<vmem>>, %arg11: memref<1x8x64xf32, #tpu.memory_space<vmem>>, %arg12: memref<8x512xbf16, #tpu.memory_space<vmem>>) attributes {dimension_semantics = [#tpu.dimension_semantics<parallel>, #tpu.dimension_semantics<arbitrary>], iteration_bounds = array<i64: 1, 2>, scalar_prefetch = 0 : i64, scratch_operands = 1 : i64, tpu.core_type = #tpu.core_type<tc>, window_params = [{pipeline_mode = #tpu.pipeline_mode<synchronous>, transform_indices = @transform_0, window_bounds = array<i64: 8, 32>}, {pipeline_mode = #tpu.pipeline_mode<synchronous>, transform_indices = @transform_1, window_bounds = array<i64: 32, 512>}, {pipeline_mode = #tpu.pipeline_mode<synchronous>, transform_indices = @transform_2, window_bounds = array<i64: 1, 512>}, {pipeline_mode = #tpu.pipeline_mode<synchronous>, transform_indices = @transform_3, window_bounds = array<i64: 1, 512>}, {transform_indices = @transform_4, window_bounds = array<i64: 512, 2048>}, {transform_indices = @transform_5, window_bounds = array<i64: 1, 2048>}, {transform_indices = @transform_6, window_bounds = array<i64: 1, 2048>}, {transform_indices = @transform_7, window_bounds = array<i64: 2048, 64>}, {pipeline_mode = #tpu.pipeline_mode<synchronous>, transform_indices = @transform_8, window_bounds = array<i64: 1, 64>}, {transform_indices = @transform_9, window_bounds = array<i64: 1, 8, 64>}]} {
    %c0_i32 = arith.constant 0 : i32
    %0 = arith.cmpi eq, %arg1, %c0_i32 : i32
    %1 = arith.extui %0 : i1 to i32
    %c0_i32_0 = arith.constant 0 : i32
    %2 = arith.cmpi ne, %1, %c0_i32_0 : i32
    scf.if %2 {
      %c0_24 = arith.constant 0 : index
      %c0_25 = arith.constant 0 : index
      %44 = vector.load %arg2[%c0_24, %c0_25] : memref<8x32xf32, #tpu.memory_space<vmem>>, vector<8x32xf32>
      %45 = arith.truncf %44 : vector<8x32xf32> to vector<8x32xbf16>
      %c0_26 = arith.constant 0 : index
      %c0_27 = arith.constant 0 : index
      %46 = vector.load %arg3[%c0_26, %c0_27] : memref<32x512xbf16, #tpu.memory_space<vmem>>, vector<32x512xbf16>
      %cst_28 = arith.constant dense<0.000000e+00> : vector<8x512xf32>
      %47 = tpu.matmul %45, %46, %cst_28 {dimension_numbers = #tpu.dot_dimension_numbers<[1], [0], [0], [1], [0, 0, 1, 1], [], []>} : vector<8x32xbf16>, vector<32x512xbf16>, vector<8x512xf32> -> vector<8x512xf32>
      %c0_29 = arith.constant 0 : index
      %c0_30 = arith.constant 0 : index
      %48 = vector.load %arg4[%c0_29, %c0_30] : memref<1x512xf32, #tpu.memory_space<vmem>>, vector<1x512xf32>
      %c0_31 = arith.constant 0 : index
      %c0_32 = arith.constant 0 : index
      %49 = vector.load %arg5[%c0_31, %c0_32] : memref<1x512xf32, #tpu.memory_space<vmem>>, vector<1x512xf32>
      %cst_33 = arith.constant dense<0.000000e+00> : vector<512xf32>
      %50 = vector.multi_reduction <add>, %47, %cst_33 [0] : vector<8x512xf32> to vector<512xf32>
      %51 = vector.shape_cast %50 : vector<512xf32> to vector<1x512xf32>
      %cst_34 = arith.constant 8.000000e+00 : f32
      %52 = vector.broadcast %cst_34 : f32 to vector<1x512xf32>
      %53 = arith.divf %51, %52 : vector<1x512xf32>
      %54 = vector.broadcast %53 : vector<1x512xf32> to vector<8x512xf32>
      %55 = arith.subf %47, %54 : vector<8x512xf32>
      %56 = arith.mulf %55, %55 : vector<8x512xf32>
      %cst_35 = arith.constant dense<0.000000e+00> : vector<512xf32>
      %57 = vector.multi_reduction <add>, %56, %cst_35 [0] : vector<8x512xf32> to vector<512xf32>
      %58 = vector.shape_cast %57 : vector<512xf32> to vector<1x512xf32>
      %cst_36 = arith.constant 8.000000e+00 : f32
      %59 = vector.broadcast %cst_36 : f32 to vector<1x512xf32>
      %60 = arith.divf %58, %59 : vector<1x512xf32>
      %61 = vector.broadcast %53 : vector<1x512xf32> to vector<8x512xf32>
      %62 = arith.subf %47, %61 : vector<8x512xf32>
      %cst_37 = arith.constant 9.99999974E-6 : f32
      %63 = vector.broadcast %cst_37 : f32 to vector<1x512xf32>
      %64 = arith.addf %60, %63 : vector<1x512xf32>
      %65 = math.rsqrt %64 : vector<1x512xf32>
      %66 = vector.broadcast %65 : vector<1x512xf32> to vector<8x512xf32>
      %67 = arith.mulf %62, %66 : vector<8x512xf32>
      %68 = vector.broadcast %48 : vector<1x512xf32> to vector<8x512xf32>
      %69 = arith.mulf %67, %68 : vector<8x512xf32>
      %70 = vector.broadcast %49 : vector<1x512xf32> to vector<8x512xf32>
      %71 = arith.addf %69, %70 : vector<8x512xf32>
      %cst_38 = arith.constant 0.000000e+00 : f32
      %72 = vector.broadcast %cst_38 : f32 to vector<8x512xf32>
      %73 = arith.maximumf %71, %72 : vector<8x512xf32>
      %74 = arith.truncf %73 : vector<8x512xf32> to vector<8x512xbf16>
      %c0_39 = arith.constant 0 : index
      %c0_40 = arith.constant 0 : index
      %75 = vector.load %arg12[%c0_39, %c0_40] : memref<8x512xbf16, #tpu.memory_space<vmem>>, vector<8x512xbf16>
      tpu.vector_store %arg12[%c0_39, %c0_40], %74 {strides = array<i32>} : memref<8x512xbf16, #tpu.memory_space<vmem>>, vector<8x512xbf16>,
      %cst_41 = arith.constant 0.000000e+00 : f32
      %76 = vector.broadcast %cst_41 : f32 to vector<8x64xf32>
      %c0_42 = arith.constant 0 : index
      %c0_43 = arith.constant 0 : index
      %c0_44 = arith.constant 0 : index
      %77 = vector.load %arg11[%c0_42, %c0_43, %c0_44] : memref<1x8x64xf32, #tpu.memory_space<vmem>>, vector<1x8x64xf32>
      %78 = vector.shape_cast %77 : vector<1x8x64xf32> to vector<8x64xf32>
      %79 = vector.shape_cast %76 : vector<8x64xf32> to vector<1x8x64xf32>
      tpu.vector_store %arg11[%c0_42, %c0_43, %c0_44], %79 {strides = array<i32>} : memref<1x8x64xf32, #tpu.memory_space<vmem>>, vector<1x8x64xf32>,
    } else {
    }
    %c0 = arith.constant 0 : index
    %c0_1 = arith.constant 0 : index
    %3 = vector.load %arg12[%c0, %c0_1] : memref<8x512xbf16, #tpu.memory_space<vmem>>, vector<8x512xbf16>
    %c0_2 = arith.constant 0 : index
    %c0_3 = arith.constant 0 : index
    %4 = vector.load %arg6[%c0_2, %c0_3] : memref<512x2048xbf16, #tpu.memory_space<vmem>>, vector<512x2048xbf16>
    %cst = arith.constant dense<0.000000e+00> : vector<8x2048xf32>
    %5 = tpu.matmul %3, %4, %cst {dimension_numbers = #tpu.dot_dimension_numbers<[1], [0], [0], [1], [0, 0, 1, 1], [], []>} : vector<8x512xbf16>, vector<512x2048xbf16>, vector<8x2048xf32> -> vector<8x2048xf32>
    %c0_4 = arith.constant 0 : index
    %c0_5 = arith.constant 0 : index
    %6 = vector.load %arg7[%c0_4, %c0_5] : memref<1x2048xf32, #tpu.memory_space<vmem>>, vector<1x2048xf32>
    %c0_6 = arith.constant 0 : index
    %c0_7 = arith.constant 0 : index
    %7 = vector.load %arg8[%c0_6, %c0_7] : memref<1x2048xf32, #tpu.memory_space<vmem>>, vector<1x2048xf32>
    %cst_8 = arith.constant dense<0.000000e+00> : vector<2048xf32>
    %8 = vector.multi_reduction <add>, %5, %cst_8 [0] : vector<8x2048xf32> to vector<2048xf32>
    %9 = vector.shape_cast %8 : vector<2048xf32> to vector<1x2048xf32>
    %cst_9 = arith.constant 8.000000e+00 : f32
    %10 = vector.broadcast %cst_9 : f32 to vector<1x2048xf32>
    %11 = arith.divf %9, %10 : vector<1x2048xf32>
    %12 = vector.broadcast %11 : vector<1x2048xf32> to vector<8x2048xf32>
    %13 = arith.subf %5, %12 : vector<8x2048xf32>
    %14 = arith.mulf %13, %13 : vector<8x2048xf32>
    %cst_10 = arith.constant dense<0.000000e+00> : vector<2048xf32>
    %15 = vector.multi_reduction <add>, %14, %cst_10 [0] : vector<8x2048xf32> to vector<2048xf32>
    %16 = vector.shape_cast %15 : vector<2048xf32> to vector<1x2048xf32>
    %cst_11 = arith.constant 8.000000e+00 : f32
    %17 = vector.broadcast %cst_11 : f32 to vector<1x2048xf32>
    %18 = arith.divf %16, %17 : vector<1x2048xf32>
    %19 = vector.broadcast %11 : vector<1x2048xf32> to vector<8x2048xf32>
    %20 = arith.subf %5, %19 : vector<8x2048xf32>
    %cst_12 = arith.constant 9.99999974E-6 : f32
    %21 = vector.broadcast %cst_12 : f32 to vector<1x2048xf32>
    %22 = arith.addf %18, %21 : vector<1x2048xf32>
    %23 = math.rsqrt %22 : vector<1x2048xf32>
    %24 = vector.broadcast %23 : vector<1x2048xf32> to vector<8x2048xf32>
    %25 = arith.mulf %20, %24 : vector<8x2048xf32>
    %26 = vector.broadcast %6 : vector<1x2048xf32> to vector<8x2048xf32>
    %27 = arith.mulf %25, %26 : vector<8x2048xf32>
    %28 = vector.broadcast %7 : vector<1x2048xf32> to vector<8x2048xf32>
    %29 = arith.addf %27, %28 : vector<8x2048xf32>
    %cst_13 = arith.constant 0.000000e+00 : f32
    %30 = vector.broadcast %cst_13 : f32 to vector<8x2048xf32>
    %31 = arith.maximumf %29, %30 : vector<8x2048xf32>
    %c0_14 = arith.constant 0 : index
    %c0_15 = arith.constant 0 : index
    %c0_16 = arith.constant 0 : index
    %32 = vector.load %arg11[%c0_14, %c0_15, %c0_16] : memref<1x8x64xf32, #tpu.memory_space<vmem>>, vector<1x8x64xf32>
    %33 = vector.shape_cast %32 : vector<1x8x64xf32> to vector<8x64xf32>
    %34 = arith.truncf %31 : vector<8x2048xf32> to vector<8x2048xbf16>
    %c0_17 = arith.constant 0 : index
    %c0_18 = arith.constant 0 : index
    %35 = vector.load %arg9[%c0_17, %c0_18] : memref<2048x64xbf16, #tpu.memory_space<vmem>>, vector<2048x64xbf16>
    %cst_19 = arith.constant dense<0.000000e+00> : vector<8x64xf32>
    %36 = tpu.matmul %34, %35, %cst_19 {dimension_numbers = #tpu.dot_dimension_numbers<[1], [0], [0], [1], [0, 0, 1, 1], [], []>} : vector<8x2048xbf16>, vector<2048x64xbf16>, vector<8x64xf32> -> vector<8x64xf32>
    %37 = arith.addf %33, %36 : vector<8x64xf32>
    %c0_20 = arith.constant 0 : index
    %c0_21 = arith.constant 0 : index
    %c0_22 = arith.constant 0 : index
    %38 = vector.load %arg11[%c0_20, %c0_21, %c0_22] : memref<1x8x64xf32, #tpu.memory_space<vmem>>, vector<1x8x64xf32>
    %39 = vector.shape_cast %38 : vector<1x8x64xf32> to vector<8x64xf32>
    %40 = vector.shape_cast %37 : vector<8x64xf32> to vector<1x8x64xf32>
    tpu.vector_store %arg11[%c0_20, %c0_21, %c0_22], %40 {strides = array<i32>} : memref<1x8x64xf32, #tpu.memory_space<vmem>>, vector<1x8x64xf32>,
    %c1_i32 = arith.constant 1 : i32
    %41 = arith.cmpi eq, %arg1, %c1_i32 : i32
    %42 = arith.extui %41 : i1 to i32
    %c0_i32_23 = arith.constant 0 : i32
    %43 = arith.cmpi ne, %42, %c0_i32_23 : i32
    scf.if %43 {
      %c0_24 = arith.constant 0 : index
      %c0_25 = arith.constant 0 : index
      %c0_26 = arith.constant 0 : index
      %44 = vector.load %arg11[%c0_24, %c0_25, %c0_26] : memref<1x8x64xf32, #tpu.memory_space<vmem>>, vector<1x8x64xf32>
      %45 = vector.shape_cast %44 : vector<1x8x64xf32> to vector<8x64xf32>
      %c0_27 = arith.constant 0 : index
      %c0_28 = arith.constant 0 : index
      %46 = vector.load %arg10[%c0_27, %c0_28] : memref<1x64xf32, #tpu.memory_space<vmem>>, vector<1x64xf32>
      %47 = vector.broadcast %46 : vector<1x64xf32> to vector<8x64xf32>
      %48 = arith.addf %45, %47 : vector<8x64xf32>
      %49 = arith.negf %48 : vector<8x64xf32>
      %50 = math.exp %49 : vector<8x64xf32>
      %cst_29 = arith.constant 1.000000e+00 : f32
      %51 = vector.broadcast %cst_29 : f32 to vector<8x64xf32>
      %52 = arith.addf %51, %50 : vector<8x64xf32>
      %53 = arith.divf %51, %52 : vector<8x64xf32>
      %c0_30 = arith.constant 0 : index
      %c0_31 = arith.constant 0 : index
      %c0_32 = arith.constant 0 : index
      %54 = vector.load %arg11[%c0_30, %c0_31, %c0_32] : memref<1x8x64xf32, #tpu.memory_space<vmem>>, vector<1x8x64xf32>
      %55 = vector.shape_cast %54 : vector<1x8x64xf32> to vector<8x64xf32>
      %56 = vector.shape_cast %53 : vector<8x64xf32> to vector<1x8x64xf32>
      tpu.vector_store %arg11[%c0_30, %c0_31, %c0_32], %56 {strides = array<i32>} : memref<1x8x64xf32, #tpu.memory_space<vmem>>, vector<1x8x64xf32>,
    } else {
    }
    return
  }
  func.func @transform_0(%arg0: i32, %arg1: i32) -> (i32, i32) {
    %c0_i32 = arith.constant 0 : i32
    %c0_i32_0 = arith.constant 0 : i32
    %c0_i32_1 = arith.constant 0 : i32
    return %c0_i32, %c0_i32_0 : i32, i32
  }
  func.func @transform_1(%arg0: i32, %arg1: i32) -> (i32, i32) {
    %c0_i32 = arith.constant 0 : i32
    %c0_i32_0 = arith.constant 0 : i32
    %c0_i32_1 = arith.constant 0 : i32
    return %c0_i32, %c0_i32_0 : i32, i32
  }
  func.func @transform_2(%arg0: i32, %arg1: i32) -> (i32, i32) {
    %c0_i32 = arith.constant 0 : i32
    %c0_i32_0 = arith.constant 0 : i32
    %c0_i32_1 = arith.constant 0 : i32
    return %c0_i32, %c0_i32_0 : i32, i32
  }
  func.func @transform_3(%arg0: i32, %arg1: i32) -> (i32, i32) {
    %c0_i32 = arith.constant 0 : i32
    %c0_i32_0 = arith.constant 0 : i32
    %c0_i32_1 = arith.constant 0 : i32
    return %c0_i32, %c0_i32_0 : i32, i32
  }
  func.func @transform_4(%arg0: i32, %arg1: i32) -> (i32, i32) {
    %c2_i32 = arith.constant 2 : i32
    %0 = arith.muli %arg0, %c2_i32 : i32
    %1 = arith.addi %0, %arg1 : i32
    %c0_i32 = arith.constant 0 : i32
    %c0_i32_0 = arith.constant 0 : i32
    return %c0_i32, %1 : i32, i32
  }
  func.func @transform_5(%arg0: i32, %arg1: i32) -> (i32, i32) {
    %c2_i32 = arith.constant 2 : i32
    %0 = arith.muli %arg0, %c2_i32 : i32
    %1 = arith.addi %0, %arg1 : i32
    %c0_i32 = arith.constant 0 : i32
    %c0_i32_0 = arith.constant 0 : i32
    return %c0_i32, %1 : i32, i32
  }
  func.func @transform_6(%arg0: i32, %arg1: i32) -> (i32, i32) {
    %c2_i32 = arith.constant 2 : i32
    %0 = arith.muli %arg0, %c2_i32 : i32
    %1 = arith.addi %0, %arg1 : i32
    %c0_i32 = arith.constant 0 : i32
    %c0_i32_0 = arith.constant 0 : i32
    return %c0_i32, %1 : i32, i32
  }
  func.func @transform_7(%arg0: i32, %arg1: i32) -> (i32, i32) {
    %c2_i32 = arith.constant 2 : i32
    %0 = arith.muli %arg0, %c2_i32 : i32
    %1 = arith.addi %0, %arg1 : i32
    %c0_i32 = arith.constant 0 : i32
    %c0_i32_0 = arith.constant 0 : i32
    return %1, %c0_i32 : i32, i32
  }
  func.func @transform_8(%arg0: i32, %arg1: i32) -> (i32, i32) {
    %c0_i32 = arith.constant 0 : i32
    %c0_i32_0 = arith.constant 0 : i32
    %c0_i32_1 = arith.constant 0 : i32
    return %c0_i32, %c0_i32_0 : i32, i32
  }
  func.func @transform_9(%arg0: i32, %arg1: i32) -> (i32, i32, i32) {
    %c0_i32 = arith.constant 0 : i32
    %c0_i32_0 = arith.constant 0 : i32
    %c0_i32_1 = arith.constant 0 : i32
    return %arg0, %c0_i32, %c0_i32_0 : i32, i32, i32
  }
}

</mosaic_0001>

<llo_original>
// kernel: decoder_forward.1
$region0: #{decoder_forward.1}
  #allocation0 [shape = 'u32[]', space=smem, size = 0x4, offset = 0x4, fixed_abs, tag = 'smem constant byte address 0x4 - core index']
  #allocation1 [shape = 'u32[72,128]{1,0:T(1,128)}', space=vmem, size = 0x9000, scoped, tag = 'internal scratch']
  #allocation2 [shape = 'bf16[8,512]{1,0:T(8,128)(2,1)}', space=vmem, size = 0x2000, scoped, tag = 'scratch operand']
  %s0 = inlined_call_operand.hbm [shape: f32[8,32], index: 0, kind: input, shape index: {}]
  %s1 = inlined_call_operand.hbm [shape: bf16[32,512], index: 1, kind: input, shape index: {}]
  %s2 = inlined_call_operand.hbm [shape: f32[1,512], index: 2, kind: input, shape index: {}]
  %s3 = inlined_call_operand.hbm [shape: f32[1,512], index: 3, kind: input, shape index: {}]
  %s4 = inlined_call_operand.hbm [shape: bf16[512,4096], index: 4, kind: input, shape index: {}]
  %s5 = inlined_call_operand.hbm [shape: f32[1,4096], index: 5, kind: input, shape index: {}]
  %s6 = inlined_call_operand.hbm [shape: f32[1,4096], index: 6, kind: input, shape index: {}]
  %s7 = inlined_call_operand.vmem [shape: bf16[4096,64], index: 7, kind: input, shape index: {}]
  %s8 = inlined_call_operand.hbm [shape: f32[1,64], index: 8, kind: input, shape index: {}]
  %s9 = inlined_call_operand.hbm [shape: f32[1,8,64], index: 9, kind: output, shape index: {}]
  %s10 = sld [smem:[#allocation0]]
  $region109: #{decoder_forward.1} parent=0
    _
  %s12 = ssub.s32 1, %s10
  %s13 = scalar_select 0, %s12, %s10
  $region1: #{decoder_forward.1} parent=0
    #allocation3 [shape = 'u8[4096]{0}', space=vmem, size = 0x1000, scoped, tag = 'input window, operand 0, single buffered']
    #allocation4 [shape = 's32[2]{0}', space=sflag, size = 0x8, scoped, tag = 'scoped memory for decoder_forward.1']
    #allocation5 [shape = 's32[2]{0}', space=sflag, size = 0x8, scoped, tag = 'scoped memory for decoder_forward.1']
    #allocation6 [shape = 'u8[32768]{0}', space=vmem, size = 0x8000, scoped, tag = 'input window, operand 1, single buffered']
    #allocation7 [shape = 's32[1]{0}', space=sflag, size = 0x4, scoped, tag = 'scoped memory for decoder_forward.1']
    #allocation8 [shape = 'u8[2048]{0}', space=vmem, size = 0x800, scoped, tag = 'input window, operand 2, single buffered']
    #allocation9 [shape = 'u8[2048]{0}', space=vmem, size = 0x800, scoped, tag = 'input window, operand 3, single buffered']
    #allocation10 [shape = 's32[1]{0}', space=sflag, size = 0x4, scoped, tag = 'scoped memory for decoder_forward.1']
    #allocation11 [shape = 'u8[4194304]{0}', space=vmem, size = 0x400000, scoped, tag = 'input window, operand 4']
    #allocation12 [shape = 'u8[16384]{0}', space=vmem, size = 0x4000, scoped, tag = 'input window, operand 5']
    #allocation13 [shape = 'u8[16384]{0}', space=vmem, size = 0x4000, scoped, tag = 'input window, operand 6']
    #allocation14 [shape = 'u8[512]{0}', space=vmem, size = 0x400, scoped, tag = 'input window, operand 8, single buffered']
    #allocation15 [shape = 'u8[4096]{0}', space=vmem, size = 0x1000, scoped, tag = 'output window, operand 0, single buffered']
    %14 = vsyncpa [#allocation4], 0
    %15 = vsyncpa [#allocation7], 0
    %16 = vsyncpa [#allocation10], 0
    %17 = vsyncpa [#allocation5], 0
    loop: start=0, step=1, limit=4
    $region2: #{decoder_forward.1} parent=1 // loop_pre_header
      _
    $region3: #{decoder_forward.1} parent=1 // loop_header
      %s19 = sphi 0, %s23
      %p20 = scmp.ge.s32.totalorder %s19, 4
      %s26 = sphi 0, %s38
      %s27 = sphi 0, %s34
      %s28 = sphi 0, %s26
      %s29 = sphi 0, %s27
      %s30 = sphi 0, %s28
      %s31 = sphi 0, %s29
      %s39 = sphi 0, %s39
      %s41 = sphi 0, %s39
      %s42 = sphi 0, %s41
      %s56 = sphi 0, %s42
      %s60 = sphi 0, %s60
      %s62 = sphi 0, %s60
      %s63 = sphi 0, %s62
      %s77 = sphi 0, %s63
      %s81 = sphi 0, %s81
      %s83 = sphi 0, %s81
      %s84 = sphi 0, %s83
      %s98 = sphi 0, %s84
      %s102 = sphi 0, %s102
      %s104 = sphi 0, %s102
      %s105 = sphi 0, %s104
      %s119 = sphi 0, %s105
      %s129 = sphi 0, %s131
      %s132 = sphi 0, %s129
      %s133 = sphi 0, %s132
      %s149 = sphi 0, %s133
      %s159 = sphi 0, %s161
      %s162 = sphi 0, %s159
      %s163 = sphi 0, %s162
      %s179 = sphi 0, %s163
      %s189 = sphi 0, %s191
      %s192 = sphi 0, %s189
      %s193 = sphi 0, %s192
      %s209 = sphi 0, %s193
      %s219 = sphi 0, %s221
      %s222 = sphi 0, %s219
      %s223 = sphi 0, %s222
      %s239 = sphi 0, %s223
      %s243 = sphi 0, %s243
      %s245 = sphi 0, %s243
      %s246 = sphi 0, %s245
      %s260 = sphi 0, %s246
      %s266 = sphi 0, %s268
      %s269 = sphi 0, %s266
      %s270 = sphi 0, %s269
      %s286 = sphi 0, %s270
    $region4: #{decoder_forward.1} parent=1 // loop_header_branch
      %22 = sbr.rel (%p20) target = $region8
    $region5: #{decoder_forward.1} parent=1 // loop_body
      %s24 = ssub.s32 %s19, 1
      %s25 = ssub.s32 %s19, 2
      %s32 = sadd.s32 1, %s27
      %p33 = scmp.ge.s32.totalorder %s32, 2
      %s34 = scalar_select %p33, 0, %s32
      %s35 = sadd.s32 1, %s26
      %s36 = scalar_select %p33, %s35, %s26
      %p37 = scmp.ge.s32.totalorder %s36, 1
      %s38 = scalar_select %p37, 0, %s36
      %s40 = sadd.s32 %s39, 1
      %p43 = scmp.eq.s32.totalorder %s19, 1
      %p44 = scmp.ne.s32.totalorder %s39, %s41
      %p45 = scmp.eq.s32.totalorder %s19, 0
      %p46 = por %p44, %p45
      %p47 = scmp.ne.s32.totalorder %s39, %s41
      %p48 = scmp.eq.s32.totalorder %s24, 1
      %p49 = por %p47, %p48
      %p50 = scmp.ne.s32.totalorder %s41, %s42
      %p51 = scmp.eq.s32.totalorder %s24, 0
      %p52 = por %p50, %p51
      %p53 = scmp.ne.s32.totalorder %s41, %s42
      %p54 = scmp.eq.s32.totalorder %s25, 1
      %p55 = por %p53, %p54
      %p57 = scmp.ne.s32.totalorder %s42, %s56
      %p58 = scmp.eq.s32.totalorder %s25, 0
      %p59 = por %p57, %p58
      %s61 = sadd.s32 %s60, 1
      %p64 = scmp.eq.s32.totalorder %s19, 1
      %p65 = scmp.ne.s32.totalorder %s60, %s62
      %p66 = scmp.eq.s32.totalorder %s19, 0
      %p67 = por %p65, %p66
      %p68 = scmp.ne.s32.totalorder %s60, %s62
      %p69 = scmp.eq.s32.totalorder %s24, 1
      %p70 = por %p68, %p69
      %p71 = scmp.ne.s32.totalorder %s62, %s63
      %p72 = scmp.eq.s32.totalorder %s24, 0
      %p73 = por %p71, %p72
      %p74 = scmp.ne.s32.totalorder %s62, %s63
      %p75 = scmp.eq.s32.totalorder %s25, 1
      %p76 = por %p74, %p75
      %p78 = scmp.ne.s32.totalorder %s63, %s77
      %p79 = scmp.eq.s32.totalorder %s25, 0
      %p80 = por %p78, %p79
      %s82 = sadd.s32 %s81, 1
      %p85 = scmp.eq.s32.totalorder %s19, 1
      %p86 = scmp.ne.s32.totalorder %s81, %s83
      %p87 = scmp.eq.s32.totalorder %s19, 0
      %p88 = por %p86, %p87
      %p89 = scmp.ne.s32.totalorder %s81, %s83
      %p90 = scmp.eq.s32.totalorder %s24, 1
      %p91 = por %p89, %p90
      %p92 = scmp.ne.s32.totalorder %s83, %s84
      %p93 = scmp.eq.s32.totalorder %s24, 0
      %p94 = por %p92, %p93
      %p95 = scmp.ne.s32.totalorder %s83, %s84
      %p96 = scmp.eq.s32.totalorder %s25, 1
      %p97 = por %p95, %p96
      %p99 = scmp.ne.s32.totalorder %s84, %s98
      %p100 = scmp.eq.s32.totalorder %s25, 0
      %p101 = por %p99, %p100
      %s103 = sadd.s32 %s102, 1
      %p106 = scmp.eq.s32.totalorder %s19, 1
      %p107 = scmp.ne.s32.totalorder %s102, %s104
      %p108 = scmp.eq.s32.totalorder %s19, 0
      %p109 = por %p107, %p108
      %p110 = scmp.ne.s32.totalorder %s102, %s104
      %p111 = scmp.eq.s32.totalorder %s24, 1
      %p112 = por %p110, %p111
      %p113 = scmp.ne.s32.totalorder %s104, %s105
      %p114 = scmp.eq.s32.totalorder %s24, 0
      %p115 = por %p113, %p114
      %p116 = scmp.ne.s32.totalorder %s104, %s105
      %p117 = scmp.eq.s32.totalorder %s25, 1
      %p118 = por %p116, %p117
      %p120 = scmp.ne.s32.totalorder %s105, %s119
      %p121 = scmp.eq.s32.totalorder %s25, 0
      %p122 = por %p120, %p121
      %s123 = smul.u32 %s26, 2
      %s124 = sadd.s32 %s123, %s27
      %s125 = smul.u32 %s38, 2
      %s126 = sadd.s32 %s125, %s34
      %s127 = ssub.s32 %s124, %s126
      %p128 = scmp.eq.s32.totalorder %s127, 0
      %s130 = sadd.s32 %s129, 1
      %s131 = scalar_select %p128, %s129, %s130
      %p134 = pneg %p128
      %p135 = scmp.eq.s32.totalorder %s19, 1
      %p136 = por %p134, %p135
      %p137 = scmp.ne.s32.totalorder %s129, %s132
      %p138 = scmp.eq.s32.totalorder %s19, 0
      %p139 = por %p137, %p138
      %p140 = scmp.ne.s32.totalorder %s129, %s132
      %p141 = scmp.eq.s32.totalorder %s24, 1
      %p142 = por %p140, %p141
      %p143 = scmp.ne.s32.totalorder %s132, %s133
      %p144 = scmp.eq.s32.totalorder %s24, 0
      %p145 = por %p143, %p144
      %p146 = scmp.ne.s32.totalorder %s132, %s133
      %p147 = scmp.eq.s32.totalorder %s25, 1
      %p148 = por %p146, %p147
      %p150 = scmp.ne.s32.totalorder %s133, %s149
      %p151 = scmp.eq.s32.totalorder %s25, 0
      %p152 = por %p150, %p151
      %s153 = smul.u32 %s26, 2
      %s154 = sadd.s32 %s153, %s27
      %s155 = smul.u32 %s38, 2
      %s156 = sadd.s32 %s155, %s34
      %s157 = ssub.s32 %s154, %s156
      %p158 = scmp.eq.s32.totalorder %s157, 0
      %s160 = sadd.s32 %s159, 1
      %s161 = scalar_select %p158, %s159, %s160
      %p164 = pneg %p158
      %p165 = scmp.eq.s32.totalorder %s19, 1
      %p166 = por %p164, %p165
      %p167 = scmp.ne.s32.totalorder %s159, %s162
      %p168 = scmp.eq.s32.totalorder %s19, 0
      %p169 = por %p167, %p168
      %p170 = scmp.ne.s32.totalorder %s159, %s162
      %p171 = scmp.eq.s32.totalorder %s24, 1
      %p172 = por %p170, %p171
      %p173 = scmp.ne.s32.totalorder %s162, %s163
      %p174 = scmp.eq.s32.totalorder %s24, 0
      %p175 = por %p173, %p174
      %p176 = scmp.ne.s32.totalorder %s162, %s163
      %p177 = scmp.eq.s32.totalorder %s25, 1
      %p178 = por %p176, %p177
      %p180 = scmp.ne.s32.totalorder %s163, %s179
      %p181 = scmp.eq.s32.totalorder %s25, 0
      %p182 = por %p180, %p181
      %s183 = smul.u32 %s26, 2
      %s184 = sadd.s32 %s183, %s27
      %s185 = smul.u32 %s38, 2
      %s186 = sadd.s32 %s185, %s34
      %s187 = ssub.s32 %s184, %s186
      %p188 = scmp.eq.s32.totalorder %s187, 0
      %s190 = sadd.s32 %s189, 1
      %s191 = scalar_select %p188, %s189, %s190
      %p194 = pneg %p188
      %p195 = scmp.eq.s32.totalorder %s19, 1
      %p196 = por %p194, %p195
      %p197 = scmp.ne.s32.totalorder %s189, %s192
      %p198 = scmp.eq.s32.totalorder %s19, 0
      %p199 = por %p197, %p198
      %p200 = scmp.ne.s32.totalorder %s189, %s192
      %p201 = scmp.eq.s32.totalorder %s24, 1
      %p202 = por %p200, %p201
      %p203 = scmp.ne.s32.totalorder %s192, %s193
      %p204 = scmp.eq.s32.totalorder %s24, 0
      %p205 = por %p203, %p204
      %p206 = scmp.ne.s32.totalorder %s192, %s193
      %p207 = scmp.eq.s32.totalorder %s25, 1
      %p208 = por %p206, %p207
      %p210 = scmp.ne.s32.totalorder %s193, %s209
      %p211 = scmp.eq.s32.totalorder %s25, 0
      %p212 = por %p210, %p211
      %s213 = smul.u32 %s26, 2
      %s214 = sadd.s32 %s213, %s27
      %s215 = smul.u32 %s38, 2
      %s216 = sadd.s32 %s215, %s34
      %s217 = ssub.s32 %s214, %s216
      %p218 = scmp.eq.s32.totalorder %s217, 0
      %s220 = sadd.s32 %s219, 1
      %s221 = scalar_select %p218, %s219, %s220
      %p224 = pneg %p218
      %p225 = scmp.eq.s32.totalorder %s19, 1
      %p226 = por %p224, %p225
      %p227 = scmp.ne.s32.totalorder %s219, %s222
      %p228 = scmp.eq.s32.totalorder %s19, 0
      %p229 = por %p227, %p228
      %p230 = scmp.ne.s32.totalorder %s219, %s222
      %p231 = scmp.eq.s32.totalorder %s24, 1
      %p232 = por %p230, %p231
      %p233 = scmp.ne.s32.totalorder %s222, %s223
      %p234 = scmp.eq.s32.totalorder %s24, 0
      %p235 = por %p233, %p234
      %p236 = scmp.ne.s32.totalorder %s222, %s223
      %p237 = scmp.eq.s32.totalorder %s25, 1
      %p238 = por %p236, %p237
      %p240 = scmp.ne.s32.totalorder %s223, %s239
      %p241 = scmp.eq.s32.totalorder %s25, 0
      %p242 = por %p240, %p241
      %s244 = sadd.s32 %s243, 1
      %p247 = scmp.eq.s32.totalorder %s19, 1
      %p248 = scmp.ne.s32.totalorder %s243, %s245
      %p249 = scmp.eq.s32.totalorder %s19, 0
      %p250 = por %p248, %p249
      %p251 = scmp.ne.s32.totalorder %s243, %s245
      %p252 = scmp.eq.s32.totalorder %s24, 1
      %p253 = por %p251, %p252
      %p254 = scmp.ne.s32.totalorder %s245, %s246
      %p255 = scmp.eq.s32.totalorder %s24, 0
      %p256 = por %p254, %p255
      %p257 = scmp.ne.s32.totalorder %s245, %s246
      %p258 = scmp.eq.s32.totalorder %s25, 1
      %p259 = por %p257, %p258
      %p261 = scmp.ne.s32.totalorder %s246, %s260
      %p262 = scmp.eq.s32.totalorder %s25, 0
      %p263 = por %p261, %p262
      %s264 = ssub.s32 %s26, %s38
      %p265 = scmp.eq.s32.totalorder %s264, 0
      %s267 = sadd.s32 %s266, 1
      %s268 = scalar_select %p265, %s266, %s267
      %p271 = pneg %p265
      %p272 = scmp.eq.s32.totalorder %s19, 1
      %p273 = por %p271, %p272
      %p274 = scmp.ne.s32.totalorder %s266, %s269
      %p275 = scmp.eq.s32.totalorder %s19, 0
      %p276 = por %p274, %p275
      %p277 = scmp.ne.s32.totalorder %s266, %s269
      %p278 = scmp.eq.s32.totalorder %s24, 1
      %p279 = por %p277, %p278
      %p280 = scmp.ne.s32.totalorder %s269, %s270
      %p281 = scmp.eq.s32.totalorder %s24, 0
      %p282 = por %p280, %p281
      %p283 = scmp.ne.s32.totalorder %s269, %s270
      %p284 = scmp.eq.s32.totalorder %s25, 1
      %p285 = por %p283, %p284
      %p287 = scmp.ne.s32.totalorder %s270, %s286
      %p288 = scmp.eq.s32.totalorder %s25, 0
      %p289 = por %p287, %p288
      %p290 = scmp.le.s32.totalorder 1, %s19
      %p291 = scmp.lt.s32.totalorder %s19, 3
      %p292 = pnand %p290, %p291
      %p293 = pneg %p292
      // Predicated region
      $region9: #{decoder_forward.1} parent=5 // pred_check
        _
      $region10: #{decoder_forward.1} parent=5 // pred_check_branch
        %295 = sbr.rel (%p292) target = $region12
      $region11: #{decoder_forward.1} parent=5 // pred_region
        %s296 = ssub.s32 %s19, 1
        // Predicated region
        $region13: #{decoder_forward.1} parent=11 // pred_check
          %p297 = pneg %p52
        $region14: #{decoder_forward.1} parent=11 // pred_check_branch
          %299 = sbr.rel (%p297) target = $region16
        $region15: #{decoder_forward.1} parent=11 // pred_region
          %301 = vsyncadd [#allocation4], 0
          %s303 = sshll.u32 %s0, 4
          %s304 = int_to_ptr.hbm [resolvable:$true] %s303
          %s305 = sshll.u32 [#allocation3], 4
          %s306 = int_to_ptr.vmem [resolvable:$true] %s305
          %308 = dma.hbm_to_vmem [thread:$0]  %s304, 128, %s306, [#allocation4]
        $region16: #{decoder_forward.1} parent=11 // pred_fallthru
          _
        // Predicated region
        $region17: #{decoder_forward.1} parent=11 // pred_check
          %p309 = pneg %p73
        $region18: #{decoder_forward.1} parent=11 // pred_check_branch
          %311 = sbr.rel (%p309) target = $region20
        $region19: #{decoder_forward.1} parent=11 // pred_region
          %313 = vsyncadd [#allocation7], 0
          %s314 = sshll.u32 %s1, 4
          %s315 = int_to_ptr.hbm [resolvable:$true] %s314
          %s316 = sshll.u32 [#allocation6], 4
          %s317 = int_to_ptr.vmem [resolvable:$true] %s316
          %322 = dma.hbm_to_vmem [thread:$0]  %s315, 1024, %s317, [#allocation7], 256, 256, 16
        $region20: #{decoder_forward.1} parent=11 // pred_fallthru
          _
        // Predicated region
        $region21: #{decoder_forward.1} parent=11 // pred_check
          %p323 = pneg %p94
        $region22: #{decoder_forward.1} parent=11 // pred_check_branch
          %325 = sbr.rel (%p323) target = $region24
        $region23: #{decoder_forward.1} parent=11 // pred_region
          %327 = vsyncadd [#allocation7], 0
          %s329 = sshll.u32 %s2, 4
          %s330 = int_to_ptr.hbm [resolvable:$true] %s329
          %s331 = sshll.u32 [#allocation8], 4
          %s332 = int_to_ptr.vmem [resolvable:$true] %s331
          %334 = dma.hbm_to_vmem [thread:$0]  %s330, 64, %s332, [#allocation7]
        $region24: #{decoder_forward.1} parent=11 // pred_fallthru
          _
        // Predicated region
        $region25: #{decoder_forward.1} parent=11 // pred_check
          %p335 = pneg %p115
        $region26: #{decoder_forward.1} parent=11 // pred_check_branch
          %337 = sbr.rel (%p335) target = $region28
        $region27: #{decoder_forward.1} parent=11 // pred_region
          %339 = vsyncadd [#allocation10], 0
          %s341 = sshll.u32 %s3, 4
          %s342 = int_to_ptr.hbm [resolvable:$true] %s341
          %s343 = sshll.u32 [#allocation9], 4
          %s344 = int_to_ptr.vmem [resolvable:$true] %s343
          %346 = dma.hbm_to_vmem [thread:$0]  %s342, 64, %s344, [#allocation10]
        $region28: #{decoder_forward.1} parent=11 // pred_fallthru
          _
        // Predicated region
        $region29: #{decoder_forward.1} parent=11 // pred_check
          %p347 = pneg %p256
        $region30: #{decoder_forward.1} parent=11 // pred_check_branch
          %349 = sbr.rel (%p347) target = $region32
        $region31: #{decoder_forward.1} parent=11 // pred_region
          %351 = vsyncadd [#allocation7], 0
          %s353 = sshll.u32 %s8, 4
          %s354 = int_to_ptr.hbm [resolvable:$true] %s353
          %s355 = sshll.u32 [#allocation14], 4
          %s356 = int_to_ptr.vmem [resolvable:$true] %s355
          %358 = dma.hbm_to_vmem [thread:$0]  %s354, 16, %s356, [#allocation7]
        $region32: #{decoder_forward.1} parent=11 // pred_fallthru
          _
      $region12: #{decoder_forward.1} parent=5 // pred_fallthru
        _
      %p359 = scmp.lt.s32.totalorder %s19, 2
      // Predicated region
      $region33: #{decoder_forward.1} parent=5 // pred_check
        %p360 = pneg %p359
      $region34: #{decoder_forward.1} parent=5 // pred_check_branch
        %362 = sbr.rel (%p360) target = $region36
      $region35: #{decoder_forward.1} parent=5 // pred_region
        // Predicated region
        $region37: #{decoder_forward.1} parent=35 // pred_check
          %p363 = pneg %p139
        $region38: #{decoder_forward.1} parent=35 // pred_check_branch
          %365 = sbr.rel (%p363) target = $region40
        $region39: #{decoder_forward.1} parent=35 // pred_region
          %s366 = sand.u32 %s19, 1
          %s367 = scalar_lea.sflag [#allocation4], %s366
          %s368 = sand.u32 %s129, 1
          %s369 = smul.addr %s368, 4096
          %s370 = scalar_lea.vmem [#allocation11], %s369
          %s371 = smul.u32 %s26, 2
          %s372 = sadd.s32 %s371, %s27
          %s373 = smul.u32 16, %s372
          %375 = vsyncadd %s367, 0
          %s376 = smul.addr %s373, 4
          %s377 = scalar_lea.hbm %s4, %s376
          %s378 = sshll.u32 %s377, 4
          %s379 = int_to_ptr.hbm [resolvable:$true] %s378
          %s380 = sshll.u32 %s370, 4
          %s381 = int_to_ptr.vmem [resolvable:$true] %s380
          %386 = dma.hbm_to_vmem [thread:$0]  %s379, 65536, %s381, %s367, 2048, 1024, 64
        $region40: #{decoder_forward.1} parent=35 // pred_fallthru
          _
        // Predicated region
        $region41: #{decoder_forward.1} parent=35 // pred_check
          %p387 = pneg %p169
        $region42: #{decoder_forward.1} parent=35 // pred_check_branch
          %389 = sbr.rel (%p387) target = $region44
        $region43: #{decoder_forward.1} parent=35 // pred_region
          %s390 = sand.u32 %s19, 1
          %s391 = scalar_lea.sflag [#allocation4], %s390
          %s392 = sand.u32 %s159, 1
          %s393 = smul.addr %s392, 16
          %s394 = scalar_lea.vmem [#allocation12], %s393
          %s395 = smul.u32 %s26, 2
          %s396 = sadd.s32 %s395, %s27
          %s397 = smul.u32 16, %s396
          %399 = vsyncadd %s391, 0
          %s400 = scalar_lea.hbm %s5, %s397
          %s402 = sshll.u32 %s400, 4
          %s403 = int_to_ptr.hbm [resolvable:$true] %s402
          %s404 = sshll.u32 %s394, 4
          %s405 = int_to_ptr.vmem [resolvable:$true] %s404
          %407 = dma.hbm_to_vmem [thread:$0]  %s403, 256, %s405, %s391
        $region44: #{decoder_forward.1} parent=35 // pred_fallthru
          _
        // Predicated region
        $region45: #{decoder_forward.1} parent=35 // pred_check
          %p408 = pneg %p199
        $region46: #{decoder_forward.1} parent=35 // pred_check_branch
          %410 = sbr.rel (%p408) target = $region48
        $region47: #{decoder_forward.1} parent=35 // pred_region
          %s411 = sand.u32 %s19, 1
          %s412 = scalar_lea.sflag [#allocation4], %s411
          %s413 = sand.u32 %s189, 1
          %s414 = smul.addr %s413, 16
          %s415 = scalar_lea.vmem [#allocation13], %s414
          %s416 = smul.u32 %s26, 2
          %s417 = sadd.s32 %s416, %s27
          %s418 = smul.u32 16, %s417
          %420 = vsyncadd %s412, 0
          %s421 = scalar_lea.hbm %s6, %s418
          %s423 = sshll.u32 %s421, 4
          %s424 = int_to_ptr.hbm [resolvable:$true] %s423
          %s425 = sshll.u32 %s415, 4
          %s426 = int_to_ptr.vmem [resolvable:$true] %s425
          %428 = dma.hbm_to_vmem [thread:$0]  %s424, 256, %s426, %s412
        $region48: #{decoder_forward.1} parent=35 // pred_fallthru
          _
        // Predicated region
        $region49: #{decoder_forward.1} parent=35 // pred_check
          %p429 = pneg %p229
        $region50: #{decoder_forward.1} parent=35 // pred_check_branch
          %431 = sbr.rel (%p429) target = $region52
        $region51: #{decoder_forward.1} parent=35 // pred_region
          %s432 = smul.u32 %s26, 2
          %s433 = sadd.s32 %s432, %s27
          %s434 = smul.u32 256, %s433
          %p435 = scmp.lt.s32.totalorder %s434, 511
          %s436 = scalar_select %p435, %s434, 511
          %s437 = smul.addr %s436, 4
          %s438 = scalar_lea.vmem %s7, %s437
          %s439 = smul.u32 %s26, 2
          %s440 = sadd.s32 %s439, %s27
          %s441 = smul.u32 256, %s440
        $region52: #{decoder_forward.1} parent=35 // pred_fallthru
          _
      $region36: #{decoder_forward.1} parent=5 // pred_fallthru
        _
      %p442 = scmp.le.s32.totalorder 1, %s19
      %p443 = scmp.lt.s32.totalorder %s19, 3
      %p444 = pnand %p442, %p443
      %p445 = pneg %p444
      // Predicated region
      $region53: #{decoder_forward.1} parent=5 // pred_check
        _
      $region54: #{decoder_forward.1} parent=5 // pred_check_branch
        %447 = sbr.rel (%p444) target = $region56
      $region55: #{decoder_forward.1} parent=5 // pred_region
        %s448 = ssub.s32 %s19, 1
        // Predicated region
        $region57: #{decoder_forward.1} parent=55 // pred_check
          %p449 = pneg %p52
        $region58: #{decoder_forward.1} parent=55 // pred_check_branch
          %451 = sbr.rel (%p449) target = $region60
        $region59: #{decoder_forward.1} parent=55 // pred_region
          %453 = dma.done [#allocation4], 128
        $region60: #{decoder_forward.1} parent=55 // pred_fallthru
          _
        // Predicated region
        $region61: #{decoder_forward.1} parent=55 // pred_check
          %p454 = pneg %p73
        $region62: #{decoder_forward.1} parent=55 // pred_check_branch
          %456 = sbr.rel (%p454) target = $region64
        $region63: #{decoder_forward.1} parent=55 // pred_region
          %458 = dma.done [#allocation7], 1024
        $region64: #{decoder_forward.1} parent=55 // pred_fallthru
          _
        // Predicated region
        $region65: #{decoder_forward.1} parent=55 // pred_check
          %p459 = pneg %p94
        $region66: #{decoder_forward.1} parent=55 // pred_check_branch
          %461 = sbr.rel (%p459) target = $region68
        $region67: #{decoder_forward.1} parent=55 // pred_region
          %463 = dma.done [#allocation7], 64
        $region68: #{decoder_forward.1} parent=55 // pred_fallthru
          _
        // Predicated region
        $region69: #{decoder_forward.1} parent=55 // pred_check
          %p464 = pneg %p115
        $region70: #{decoder_forward.1} parent=55 // pred_check_branch
          %466 = sbr.rel (%p464) target = $region72
        $region71: #{decoder_forward.1} parent=55 // pred_region
          %468 = dma.done [#allocation10], 64
        $region72: #{decoder_forward.1} parent=55 // pred_fallthru
          _
        %s469 = sand.u32 %s24, 1
        %s470 = scalar_lea.sflag [#allocation4], %s469
        %s471 = sand.u32 %s132, 1
        %s472 = smul.addr %s471, 4096
        %s473 = scalar_lea.vmem [#allocation11], %s472
        // Predicated region
        $region73: #{decoder_forward.1} parent=55 // pred_check
          %p474 = pneg %p145
        $region74: #{decoder_forward.1} parent=55 // pred_check_branch
          %476 = sbr.rel (%p474) target = $region76
        $region75: #{decoder_forward.1} parent=55 // pred_region
          %478 = dma.done %s470, 65536
        $region76: #{decoder_forward.1} parent=55 // pred_fallthru
          _
        %s479 = sand.u32 %s24, 1
        %s480 = scalar_lea.sflag [#allocation4], %s479
        %s481 = sand.u32 %s162, 1
        %s482 = smul.addr %s481, 16
        %s483 = scalar_lea.vmem [#allocation12], %s482
        // Predicated region
        $region77: #{decoder_forward.1} parent=55 // pred_check
          %p484 = pneg %p175
        $region78: #{decoder_forward.1} parent=55 // pred_check_branch
          %486 = sbr.rel (%p484) target = $region80
        $region79: #{decoder_forward.1} parent=55 // pred_region
          %488 = dma.done %s480, 256
        $region80: #{decoder_forward.1} parent=55 // pred_fallthru
          _
        %s489 = sand.u32 %s24, 1
        %s490 = scalar_lea.sflag [#allocation4], %s489
        %s491 = sand.u32 %s192, 1
        %s492 = smul.addr %s491, 16
        %s493 = scalar_lea.vmem [#allocation13], %s492
        // Predicated region
        $region81: #{decoder_forward.1} parent=55 // pred_check
          %p494 = pneg %p205
        $region82: #{decoder_forward.1} parent=55 // pred_check_branch
          %496 = sbr.rel (%p494) target = $region84
        $region83: #{decoder_forward.1} parent=55 // pred_region
          %498 = dma.done %s490, 256
        $region84: #{decoder_forward.1} parent=55 // pred_fallthru
          _
        // Predicated region
        $region85: #{decoder_forward.1} parent=55 // pred_check
          %p499 = pneg %p256
        $region86: #{decoder_forward.1} parent=55 // pred_check_branch
          %501 = sbr.rel (%p499) target = $region88
        $region87: #{decoder_forward.1} parent=55 // pred_region
          %503 = dma.done [#allocation7], 16
        $region88: #{decoder_forward.1} parent=55 // pred_fallthru
          _
        %p504 = pneg %p52
        %p505 = pneg %p49
        %p506 = pneg %p73
        %p507 = pneg %p70
        %p508 = pneg %p94
        %p509 = pneg %p91
        %p510 = pneg %p115
        %p511 = pneg %p112
        %s512 = sand.u32 %s24, 1
        %s513 = scalar_lea.sflag [#allocation4], %s512
        %s514 = sand.u32 %s132, 1
        %s515 = smul.addr %s514, 4096
        %s516 = scalar_lea.vmem [#allocation11], %s515
        %p517 = pneg %p145
        %p518 = pneg %p142
        %s519 = sand.u32 %s24, 1
        %s520 = scalar_lea.sflag [#allocation4], %s519
        %s521 = sand.u32 %s162, 1
        %s522 = smul.addr %s521, 16
        %s523 = scalar_lea.vmem [#allocation12], %s522
        %p524 = pneg %p175
        %p525 = pneg %p172
        %s526 = sand.u32 %s24, 1
        %s527 = scalar_lea.sflag [#allocation4], %s526
        %s528 = sand.u32 %s192, 1
        %s529 = smul.addr %s528, 16
        %s530 = scalar_lea.vmem [#allocation13], %s529
        %p531 = pneg %p205
        %p532 = pneg %p202
        %s533 = smul.u32 %s28, 2
        %s534 = sadd.s32 %s533, %s29
        %s535 = smul.u32 256, %s534
        %p536 = scmp.lt.s32.totalorder %s535, 511
        %s537 = scalar_select %p536, %s535, 511
        %s538 = smul.addr %s537, 4
        %s539 = scalar_lea.vmem %s7, %s538
        %p540 = pneg %p235
        %p541 = pneg %p232
        %p542 = pneg %p256
        %p543 = pneg %p253
        %p544 = pneg %p282
        %p545 = pneg %p279
        %s546 = smul.u32 %s28, 2
        %s547 = sadd.s32 %s546, %s29
        %s548 = smul.u32 16, %s547
        %s549 = smul.u32 %s28, 2
        %s550 = sadd.s32 %s549, %s29
        %s551 = smul.u32 16, %s550
        %s552 = smul.u32 %s28, 2
        %s553 = sadd.s32 %s552, %s29
        %s554 = smul.u32 16, %s553
        %s555 = smul.u32 %s28, 2
        %s556 = sadd.s32 %s555, %s29
        %s557 = smul.u32 256, %s556
        %p558 = scmp.lt.s32.totalorder %s557, 511
        %s559 = scalar_select %p558, %s557, 511
        %s560 = smul.addr %s559, 4
        %s561 = scalar_lea.vmem %s7, %s560
        %s562 = smul.u32 %s28, 2
        %s563 = sadd.s32 %s562, %s29
        %s564 = smul.u32 256, %s563
        %p566 = scmp.eq.s32.totalorder %s29, 0
        // Predicated region
        $region89: #{decoder_forward.1} parent=55 // pred_check
          %p567 = pneg %p566
        $region90: #{decoder_forward.1} parent=55 // pred_check_branch
          %569 = sbr.rel (%p567) target = $region92
        $region91: #{decoder_forward.1} parent=55 // pred_region
          %v570 = vld [vmem:[#allocation3] sm:$0xff]
          %v571 = vpack.c.bf16 %v570, %v570
          %v572 = vld [vmem:[#allocation6] sm:$0xff]
          %v573 = vld [vmem:[#allocation6 + $0x8] sm:$0xff]
          %v574 = vld [vmem:[#allocation6 + $0x10] sm:$0xff]
          %v575 = vld [vmem:[#allocation6 + $0x18] sm:$0xff]
          %v576 = vld [vmem:[#allocation6 + $0x20] sm:$0xff]
          %v577 = vld [vmem:[#allocation6 + $0x28] sm:$0xff]
          %v578 = vld [vmem:[#allocation6 + $0x30] sm:$0xff]
          %v579 = vld [vmem:[#allocation6 + $0x38] sm:$0xff]
          %v588 = vunpack.c.l.b16 %v572
          %v589 = vunpack.c.h.b16 %v572
          %v590 = vunpack.c.l.b16 %v573
          %v591 = vunpack.c.h.b16 %v573
          %v592 = vunpack.c.l.b16 %v574
          %v593 = vunpack.c.h.b16 %v574
          %v594 = vunpack.c.l.b16 %v575
          %v595 = vunpack.c.h.b16 %v575
          %v596 = vunpack.c.l.b16 %v576
          %v597 = vunpack.c.h.b16 %v576
          %v598 = vunpack.c.l.b16 %v577
          %v599 = vunpack.c.h.b16 %v577
          %v600 = vunpack.c.l.b16 %v578
          %v601 = vunpack.c.h.b16 %v578
          %v602 = vunpack.c.l.b16 %v579
          %v603 = vunpack.c.h.b16 %v579
          %v604 = vpack.c.b16 %v592, %v588
          %v605 = vpack.c.b16 %v593, %v589
          %v606 = vpack.c.b16 %v594, %v590
          %v607 = vpack.c.b16 %v595, %v591
          %v608 = vpack.c.b16 %v600, %v596
          %v609 = vpack.c.b16 %v601, %v597
          %v610 = vpack.c.b16 %v602, %v598
          %v611 = vpack.c.b16 %v603, %v599
          %vm620 = vcmask 261120
          %v622 = vsel %vm620, %v571, 0
          %624 = vmatpush.bf16.msra.mxu0 0
          %625 = vmatpush.bf16.msra.mxu0 0
          %626 = vmatpush.bf16.msra.mxu0 0
          %627 = vmatpush.bf16.msra.mxu0 0
          %628 = vmatpush.bf16.msra.mxu0 0
          %629 = vmatpush.bf16.msra.mxu0 0
          %630 = vmatpush.bf16.msra.mxu0 %v608
          %631 = vmatpush.bf16.msra.mxu0 %v604
          %632 = vmatmul.bf16.gmra.mxu0 %v622
          %v633 = vpop.f32.mrf.mxu0
          %v634 = vadd.f32 0.0, %v633
          %v635 = vpop.f32.mrf.mxu0
          %636 = vdwg.mxu0
          %637 = vmatpush.bf16.msra.mxu0 0
          %638 = vmatpush.bf16.msra.mxu0 0
          %639 = vmatpush.bf16.msra.mxu0 0
          %640 = vmatpush.bf16.msra.mxu0 0
          %641 = vmatpush.bf16.msra.mxu0 0
          %642 = vmatpush.bf16.msra.mxu0 0
          %643 = vmatpush.bf16.msra.mxu0 %v609
          %644 = vmatpush.bf16.msra.mxu0 %v605
          %645 = vmatmul.bf16.gmra.mxu0 %v622
          %v646 = vpop.f32.mrf.mxu0
          %v647 = vadd.f32 0.0, %v646
          %v648 = vpop.f32.mrf.mxu0
          %649 = vdwg.mxu0
          %650 = vmatpush.bf16.msra.mxu0 0
          %651 = vmatpush.bf16.msra.mxu0 0
          %652 = vmatpush.bf16.msra.mxu0 0
          %653 = vmatpush.bf16.msra.mxu0 0
          %654 = vmatpush.bf16.msra.mxu0 0
          %655 = vmatpush.bf16.msra.mxu0 0
          %656 = vmatpush.bf16.msra.mxu0 %v610
          %657 = vmatpush.bf16.msra.mxu0 %v606
          %658 = vmatmul.bf16.gmra.mxu0 %v622
          %v659 = vpop.f32.mrf.mxu0
          %v660 = vadd.f32 0.0, %v659
          %v661 = vpop.f32.mrf.mxu0
          %662 = vdwg.mxu0
          %663 = vmatpush.bf16.msra.mxu0 0
          %664 = vmatpush.bf16.msra.mxu0 0
          %665 = vmatpush.bf16.msra.mxu0 0
          %666 = vmatpush.bf16.msra.mxu0 0
          %667 = vmatpush.bf16.msra.mxu0 0
          %668 = vmatpush.bf16.msra.mxu0 0
          %669 = vmatpush.bf16.msra.mxu0 %v611
          %670 = vmatpush.bf16.msra.mxu0 %v607
          %671 = vmatmul.bf16.gmra.mxu0 %v622
          %v672 = vpop.f32.mrf.mxu0
          %v673 = vadd.f32 0.0, %v672
          %v674 = vpop.f32.mrf.mxu0
          %675 = vdwg.mxu0
          %v676 = vld [vmem:[#allocation8] sm:$0xf]
          %v677 = vld [vmem:[#allocation9] sm:$0xf]
          %v678 = vrot.slane %v634, 4
          %v679 = vadd.f32 %v634, %v678
          %v680 = vrot.slane %v679, 2
          %v681 = vadd.f32 %v679, %v680
          %v682 = vrot.slane %v681, 1
          %v683 = vadd.f32 %v681, %v682
          %v684 = vrot.slane %v647, 4
          %v685 = vadd.f32 %v647, %v684
          %v686 = vrot.slane %v685, 2
          %v687 = vadd.f32 %v685, %v686
          %v688 = vrot.slane %v687, 1
          %v689 = vadd.f32 %v687, %v688
          %v690 = vrot.slane %v660, 4
          %v691 = vadd.f32 %v660, %v690
          %v692 = vrot.slane %v691, 2
          %v693 = vadd.f32 %v691, %v692
          %v694 = vrot.slane %v693, 1
          %v695 = vadd.f32 %v693, %v694
          %v696 = vrot.slane %v673, 4
          %v697 = vadd.f32 %v673, %v696
          %v698 = vrot.slane %v697, 2
          %v699 = vadd.f32 %v697, %v698
          %v700 = vrot.slane %v699, 1
          %v701 = vadd.f32 %v699, %v700
          %v702 = vrcp.pop 8.0
          %v703 = vmul.f32 8.0, %v702
          %v704 = vsub.f32 1.0, %v703
          %v705 = vmul.f32 %v702, %v704
          %v706 = vadd.f32 %v702, %v705
          %vm707 = vweird.f32 %v702
          %v708 = vsel %vm707, %v702, %v706
          %v709 = vmul.f32 %v683, %v708
          %v710 = vmul.f32 %v689, %v708
          %v711 = vmul.f32 %v695, %v708
          %v712 = vmul.f32 %v701, %v708
          %v713 = vsub.f32 %v634, %v709
          %v714 = vsub.f32 %v647, %v710
          %v715 = vsub.f32 %v660, %v711
          %v716 = vsub.f32 %v673, %v712
          %v717 = vmul.f32 %v713, %v713
          %v718 = vmul.f32 %v714, %v714
          %v719 = vmul.f32 %v715, %v715
          %v720 = vmul.f32 %v716, %v716
          %v721 = vrot.slane %v717, 4
          %v722 = vadd.f32 %v717, %v721
          %v723 = vrot.slane %v722, 2
          %v724 = vadd.f32 %v722, %v723
          %v725 = vrot.slane %v724, 1
          %v726 = vadd.f32 %v724, %v725
          %v727 = vrot.slane %v718, 4
          %v728 = vadd.f32 %v718, %v727
          %v729 = vrot.slane %v728, 2
          %v730 = vadd.f32 %v728, %v729
          %v731 = vrot.slane %v730, 1
          %v732 = vadd.f32 %v730, %v731
          %v733 = vrot.slane %v719, 4
          %v734 = vadd.f32 %v719, %v733
          %v735 = vrot.slane %v734, 2
          %v736 = vadd.f32 %v734, %v735
          %v737 = vrot.slane %v736, 1
          %v738 = vadd.f32 %v736, %v737
          %v739 = vrot.slane %v720, 4
          %v740 = vadd.f32 %v720, %v739
          %v741 = vrot.slane %v740, 2
          %v742 = vadd.f32 %v740, %v741
          %v743 = vrot.slane %v742, 1
          %v744 = vadd.f32 %v742, %v743
          %v745 = vmul.f32 %v726, %v708
          %v746 = vmul.f32 %v732, %v708
          %v747 = vmul.f32 %v738, %v708
          %v748 = vmul.f32 %v744, %v708
          %v749 = vadd.f32 %v745, 1e-05
          %v750 = vadd.f32 %v746, 1e-05
          %v751 = vadd.f32 %v747, 1e-05
          %v752 = vadd.f32 %v748, 1e-05
          %v753 = vrsqrt.pop %v749
          %v754 = vmul.f32 %v753, %v749
          %v755 = vmul.f32 %v754, %v753
          %v756 = vmul.f32 0.5, %v755
          %v757 = vsub.f32 1.5, %v756
          %v758 = vmul.f32 %v753, %v757
          %vm759 = vweird.f32 %v749
          %vm760 = vweird.f32 %v753
          %vm761 = vmor %vm759, %vm760
          %v762 = vsel %vm761, %v753, %v758
          %v763 = vrsqrt.pop %v750
          %v764 = vmul.f32 %v763, %v750
          %v765 = vmul.f32 %v764, %v763
          %v766 = vmul.f32 0.5, %v765
          %v767 = vsub.f32 1.5, %v766
          %v768 = vmul.f32 %v763, %v767
          %vm769 = vweird.f32 %v750
          %vm770 = vweird.f32 %v763
          %vm771 = vmor %vm769, %vm770
          %v772 = vsel %vm771, %v763, %v768
          %v773 = vrsqrt.pop %v751
          %v774 = vmul.f32 %v773, %v751
          %v775 = vmul.f32 %v774, %v773
          %v776 = vmul.f32 0.5, %v775
          %v777 = vsub.f32 1.5, %v776
          %v778 = vmul.f32 %v773, %v777
          %vm779 = vweird.f32 %v751
          %vm780 = vweird.f32 %v773
          %vm781 = vmor %vm779, %vm780
          %v782 = vsel %vm781, %v773, %v778
          %v783 = vrsqrt.pop %v752
          %v784 = vmul.f32 %v783, %v752
          %v785 = vmul.f32 %v784, %v783
          %v786 = vmul.f32 0.5, %v785
          %v787 = vsub.f32 1.5, %v786
          %v788 = vmul.f32 %v783, %v787
          %vm789 = vweird.f32 %v752
          %vm790 = vweird.f32 %v783
          %vm791 = vmor %vm789, %vm790
          %v792 = vsel %vm791, %v783, %v788
          %v793 = vmul.f32 %v713, %v762
          %v794 = vmul.f32 %v714, %v772
          %v795 = vmul.f32 %v715, %v782
          %v796 = vmul.f32 %v716, %v792
          %v798 = vperm.slane %v676, 0
          %v799 = vperm.slane %v676, 1
          %v800 = vperm.slane %v676, 2
          %v801 = vperm.slane %v676, 3
          %v806 = vmul.f32 %v793, %v798
          %v807 = vmul.f32 %v794, %v799
          %v808 = vmul.f32 %v795, %v800
          %v809 = vmul.f32 %v796, %v801
          %v811 = vperm.slane %v677, 0
          %v812 = vperm.slane %v677, 1
          %v813 = vperm.slane %v677, 2
          %v814 = vperm.slane %v677, 3
          %v819 = vadd.f32 %v806, %v811
          %v820 = vadd.f32 %v807, %v812
          %v821 = vadd.f32 %v808, %v813
          %v822 = vadd.f32 %v809, %v814
          %v823 = vmax.f32 %v819, 0.0
          %v824 = vmax.f32 %v820, 0.0
          %v825 = vmax.f32 %v821, 0.0
          %v826 = vmax.f32 %v822, 0.0
          %v827 = vpack.c.bf16 %v824, %v823
          %v828 = vpack.c.bf16 %v826, %v825
          %829 = vst [vmem:[#allocation2] sm:$0xff] %v827
          %830 = vst [vmem:[#allocation2 + $0x8] sm:$0xff] %v828
          %vm831 = vcmask 523264
          %832 = vst.msk [vmem:[#allocation15] sm:$0xff] %vm831, 0.0
        $region92: #{decoder_forward.1} parent=55 // pred_fallthru
          _
        %v833 = vld [vmem:[#allocation2] sm:$0xff]
        %v834 = vld [vmem:[#allocation2 + $0x8] sm:$0xff]
        %v835 = vld [vmem:[%s473] sm:$0xff]
        %v836 = vld [vmem:[%s473 + $0x8] sm:$0xff]
        %v837 = vld [vmem:[%s473 + $0x10] sm:$0xff]
        %v838 = vld [vmem:[%s473 + $0x18] sm:$0xff]
        %v839 = vld [vmem:[%s473 + $0x20] sm:$0xff]
        %v840 = vld [vmem:[%s473 + $0x28] sm:$0xff]
        %v841 = vld [vmem:[%s473 + $0x30] sm:$0xff]
        %v842 = vld [vmem:[%s473 + $0x38] sm:$0xff]
        %v843 = vld [vmem:[%s473 + $0x40] sm:$0xff]
        %v844 = vld [vmem:[%s473 + $0x48] sm:$0xff]
        %v845 = vld [vmem:[%s473 + $0x50] sm:$0xff]
        %v846 = vld [vmem:[%s473 + $0x58] sm:$0xff]
        %v847 = vld [vmem:[%s473 + $0x60] sm:$0xff]
        %v848 = vld [vmem:[%s473 + $0x68] sm:$0xff]
        %v849 = vld [vmem:[%s473 + $0x70] sm:$0xff]
        %v850 = vld [vmem:[%s473 + $0x78] sm:$0xff]
        %v851 = vld [vmem:[%s473 + $0x80] sm:$0xff]
        %v852 = vld [vmem:[%s473 + $0x88] sm:$0xff]
        %v853 = vld [vmem:[%s473 + $0x90] sm:$0xff]
        %v854 = vld [vmem:[%s473 + $0x98] sm:$0xff]
        %v855 = vld [vmem:[%s473 + $0xa0] sm:$0xff]
        %v856 = vld [vmem:[%s473 + $0xa8] sm:$0xff]
        %v857 = vld [vmem:[%s473 + $0xb0] sm:$0xff]
        %v858 = vld [vmem:[%s473 + $0xb8] sm:$0xff]
        %v859 = vld [vmem:[%s473 + $0xc0] sm:$0xff]
        %v860 = vld [vmem:[%s473 + $0xc8] sm:$0xff]
        %v861 = vld [vmem:[%s473 + $0xd0] sm:$0xff]
        %v862 = vld [vmem:[%s473 + $0xd8] sm:$0xff]
        %v863 = vld [vmem:[%s473 + $0xe0] sm:$0xff]
        %v864 = vld [vmem:[%s473 + $0xe8] sm:$0xff]
        %v865 = vld [vmem:[%s473 + $0xf0] sm:$0xff]
        %v866 = vld [vmem:[%s473 + $0xf8] sm:$0xff]
        %v867 = vld [vmem:[%s473 + $0x100] sm:$0xff]
        %v868 = vld [vmem:[%s473 + $0x108] sm:$0xff]
        %v869 = vld [vmem:[%s473 + $0x110] sm:$0xff]
        %v870 = vld [vmem:[%s473 + $0x118] sm:$0xff]
        %v871 = vld [vmem:[%s473 + $0x120] sm:$0xff]
        %v872 = vld [vmem:[%s473 + $0x128] sm:$0xff]
        %v873 = vld [vmem:[%s473 + $0x130] sm:$0xff]
        %v874 = vld [vmem:[%s473 + $0x138] sm:$0xff]
        %v875 = vld [vmem:[%s473 + $0x140] sm:$0xff]
        %v876 = vld [vmem:[%s473 + $0x148] sm:$0xff]
        %v877 = vld [vmem:[%s473 + $0x150] sm:$0xff]
        %v878 = vld [vmem:[%s473 + $0x158] sm:$0xff]
        %v879 = vld [vmem:[%s473 + $0x160] sm:$0xff]
        %v880 = vld [vmem:[%s473 + $0x168] sm:$0xff]
        %v881 = vld [vmem:[%s473 + $0x170] sm:$0xff]
        %v882 = vld [vmem:[%s473 + $0x178] sm:$0xff]
        %v883 = vld [vmem:[%s473 + $0x180] sm:$0xff]
        %v884 = vld [vmem:[%s473 + $0x188] sm:$0xff]
        %v885 = vld [vmem:[%s473 + $0x190] sm:$0xff]
        %v886 = vld [vmem:[%s473 + $0x198] sm:$0xff]
        %v887 = vld [vmem:[%s473 + $0x1a0] sm:$0xff]
        %v888 = vld [vmem:[%s473 + $0x1a8] sm:$0xff]
        %v889 = vld [vmem:[%s473 + $0x1b0] sm:$0xff]
        %v890 = vld [vmem:[%s473 + $0x1b8] sm:$0xff]
        %v891 = vld [vmem:[%s473 + $0x1c0] sm:$0xff]
        %v892 = vld [vmem:[%s473 + $0x1c8] sm:$0xff]
        %v893 = vld [vmem:[%s473 + $0x1d0] sm:$0xff]
        %v894 = vld [vmem:[%s473 + $0x1d8] sm:$0xff]
        %v895 = vld [vmem:[%s473 + $0x1e0] sm:$0xff]
        %v896 = vld [vmem:[%s473 + $0x1e8] sm:$0xff]
        %v897 = vld [vmem:[%s473 + $0x1f0] sm:$0xff]
        %v898 = vld [vmem:[%s473 + $0x1f8] sm:$0xff]
        %v899 = vld [vmem:[%s473 + $0x200] sm:$0xff]
        %v900 = vld [vmem:[%s473 + $0x208] sm:$0xff]
        %v901 = vld [vmem:[%s473 + $0x210] sm:$0xff]
        %v902 = vld [vmem:[%s473 + $0x218] sm:$0xff]
        %v903 = vld [vmem:[%s473 + $0x220] sm:$0xff]
        %v904 = vld [vmem:[%s473 + $0x228] sm:$0xff]
        %v905 = vld [vmem:[%s473 + $0x230] sm:$0xff]
        %v906 = vld [vmem:[%s473 + $0x238] sm:$0xff]
        %v907 = vld [vmem:[%s473 + $0x240] sm:$0xff]
        %v908 = vld [vmem:[%s473 + $0x248] sm:$0xff]
        %v909 = vld [vmem:[%s473 + $0x250] sm:$0xff]
        %v910 = vld [vmem:[%s473 + $0x258] sm:$0xff]
        %v911 = vld [vmem:[%s473 + $0x260] sm:$0xff]
        %v912 = vld [vmem:[%s473 + $0x268] sm:$0xff]
        %v913 = vld [vmem:[%s473 + $0x270] sm:$0xff]
        %v914 = vld [vmem:[%s473 + $0x278] sm:$0xff]
        %v915 = vld [vmem:[%s473 + $0x280] sm:$0xff]
        %v916 = vld [vmem:[%s473 + $0x288] sm:$0xff]
        %v917 = vld [vmem:[%s473 + $0x290] sm:$0xff]
        %v918 = vld [vmem:[%s473 + $0x298] sm:$0xff]
        %v919 = vld [vmem:[%s473 + $0x2a0] sm:$0xff]
        %v920 = vld [vmem:[%s473 + $0x2a8] sm:$0xff]
        %v921 = vld [vmem:[%s473 + $0x2b0] sm:$0xff]
        %v922 = vld [vmem:[%s473 + $0x2b8] sm:$0xff]
        %v923 = vld [vmem:[%s473 + $0x2c0] sm:$0xff]
        %v924 = vld [vmem:[%s473 + $0x2c8] sm:$0xff]
        %v925 = vld [vmem:[%s473 + $0x2d0] sm:$0xff]
        %v926 = vld [vmem:[%s473 + $0x2d8] sm:$0xff]
        %v927 = vld [vmem:[%s473 + $0x2e0] sm:$0xff]
        %v928 = vld [vmem:[%s473 + $0x2e8] sm:$0xff]
        %v929 = vld [vmem:[%s473 + $0x2f0] sm:$0xff]
        %v930 = vld [vmem:[%s473 + $0x2f8] sm:$0xff]
        %v931 = vld [vmem:[%s473 + $0x300] sm:$0xff]
        %v932 = vld [vmem:[%s473 + $0x308] sm:$0xff]
        %v933 = vld [vmem:[%s473 + $0x310] sm:$0xff]
        %v934 = vld [vmem:[%s473 + $0x318] sm:$0xff]
        %v935 = vld [vmem:[%s473 + $0x320] sm:$0xff]
        %v936 = vld [vmem:[%s473 + $0x328] sm:$0xff]
        %v937 = vld [vmem:[%s473 + $0x330] sm:$0xff]
        %v938 = vld [vmem:[%s473 + $0x338] sm:$0xff]
        %v939 = vld [vmem:[%s473 + $0x340] sm:$0xff]
        %v940 = vld [vmem:[%s473 + $0x348] sm:$0xff]
        %v941 = vld [vmem:[%s473 + $0x350] sm:$0xff]
        %v942 = vld [vmem:[%s473 + $0x358] sm:$0xff]
        %v943 = vld [vmem:[%s473 + $0x360] sm:$0xff]
        %v944 = vld [vmem:[%s473 + $0x368] sm:$0xff]
        %v945 = vld [vmem:[%s473 + $0x370] sm:$0xff]
        %v946 = vld [vmem:[%s473 + $0x378] sm:$0xff]
        %v947 = vld [vmem:[%s473 + $0x380] sm:$0xff]
        %v948 = vld [vmem:[%s473 + $0x388] sm:$0xff]
        %v949 = vld [vmem:[%s473 + $0x390] sm:$0xff]
        %v950 = vld [vmem:[%s473 + $0x398] sm:$0xff]
        %v951 = vld [vmem:[%s473 + $0x3a0] sm:$0xff]
        %v952 = vld [vmem:[%s473 + $0x3a8] sm:$0xff]
        %v953 = vld [vmem:[%s473 + $0x3b0] sm:$0xff]
        %v954 = vld [vmem:[%s473 + $0x3b8] sm:$0xff]
        %v955 = vld [vmem:[%s473 + $0x3c0] sm:$0xff]
        %v956 = vld [vmem:[%s473 + $0x3c8] sm:$0xff]
        %v957 = vld [vmem:[%s473 + $0x3d0] sm:$0xff]
        %v958 = vld [vmem:[%s473 + $0x3d8] sm:$0xff]
        %v959 = vld [vmem:[%s473 + $0x3e0] sm:$0xff]
        %v960 = vld [vmem:[%s473 + $0x3e8] sm:$0xff]
        %v961 = vld [vmem:[%s473 + $0x3f0] sm:$0xff]
        %v962 = vld [vmem:[%s473 + $0x3f8] sm:$0xff]
        %v963 = vld [vmem:[%s473 + $0x400] sm:$0xff]
        %v964 = vld [vmem:[%s473 + $0x408] sm:$0xff]
        %v965 = vld [vmem:[%s473 + $0x410] sm:$0xff]
        %v966 = vld [vmem:[%s473 + $0x418] sm:$0xff]
        %v967 = vld [vmem:[%s473 + $0x420] sm:$0xff]
        %v968 = vld [vmem:[%s473 + $0x428] sm:$0xff]
        %v969 = vld [vmem:[%s473 + $0x430] sm:$0xff]
        %v970 = vld [vmem:[%s473 + $0x438] sm:$0xff]
        %v971 = vld [vmem:[%s473 + $0x440] sm:$0xff]
        %v972 = vld [vmem:[%s473 + $0x448] sm:$0xff]
        %v973 = vld [vmem:[%s473 + $0x450] sm:$0xff]
        %v974 = vld [vmem:[%s473 + $0x458] sm:$0xff]
        %v975 = vld [vmem:[%s473 + $0x460] sm:$0xff]
        %v976 = vld [vmem:[%s473 + $0x468] sm:$0xff]
        %v977 = vld [vmem:[%s473 + $0x470] sm:$0xff]
        %v978 = vld [vmem:[%s473 + $0x478] sm:$0xff]
        %v979 = vld [vmem:[%s473 + $0x480] sm:$0xff]
        %v980 = vld [vmem:[%s473 + $0x488] sm:$0xff]
        %v981 = vld [vmem:[%s473 + $0x490] sm:$0xff]
        %v982 = vld [vmem:[%s473 + $0x498] sm:$0xff]
        %v983 = vld [vmem:[%s473 + $0x4a0] sm:$0xff]
        %v984 = vld [vmem:[%s473 + $0x4a8] sm:$0xff]
        %v985 = vld [vmem:[%s473 + $0x4b0] sm:$0xff]
        %v986 = vld [vmem:[%s473 + $0x4b8] sm:$0xff]
        %v987 = vld [vmem:[%s473 + $0x4c0] sm:$0xff]
        %v988 = vld [vmem:[%s473 + $0x4c8] sm:$0xff]
        %v989 = vld [vmem:[%s473 + $0x4d0] sm:$0xff]
        %v990 = vld [vmem:[%s473 + $0x4d8] sm:$0xff]
        %v991 = vld [vmem:[%s473 + $0x4e0] sm:$0xff]
        %v992 = vld [vmem:[%s473 + $0x4e8] sm:$0xff]
        %v993 = vld [vmem:[%s473 + $0x4f0] sm:$0xff]
        %v994 = vld [vmem:[%s473 + $0x4f8] sm:$0xff]
        %v995 = vld [vmem:[%s473 + $0x500] sm:$0xff]
        %v996 = vld [vmem:[%s473 + $0x508] sm:$0xff]
        %v997 = vld [vmem:[%s473 + $0x510] sm:$0xff]
        %v998 = vld [vmem:[%s473 + $0x518] sm:$0xff]
        %v999 = vld [vmem:[%s473 + $0x520] sm:$0xff]
        %v1000 = vld [vmem:[%s473 + $0x528] sm:$0xff]
        %v1001 = vld [vmem:[%s473 + $0x530] sm:$0xff]
        %v1002 = vld [vmem:[%s473 + $0x538] sm:$0xff]
        %v1003 = vld [vmem:[%s473 + $0x540] sm:$0xff]
        %v1004 = vld [vmem:[%s473 + $0x548] sm:$0xff]
        %v1005 = vld [vmem:[%s473 + $0x550] sm:$0xff]
        %v1006 = vld [vmem:[%s473 + $0x558] sm:$0xff]
        %v1007 = vld [vmem:[%s473 + $0x560] sm:$0xff]
        %v1008 = vld [vmem:[%s473 + $0x568] sm:$0xff]
        %v1009 = vld [vmem:[%s473 + $0x570] sm:$0xff]
        %v1010 = vld [vmem:[%s473 + $0x578] sm:$0xff]
        %v1011 = vld [vmem:[%s473 + $0x580] sm:$0xff]
        %v1012 = vld [vmem:[%s473 + $0x588] sm:$0xff]
        %v1013 = vld [vmem:[%s473 + $0x590] sm:$0xff]
        %v1014 = vld [vmem:[%s473 + $0x598] sm:$0xff]
        %v1015 = vld [vmem:[%s473 + $0x5a0] sm:$0xff]
        %v1016 = vld [vmem:[%s473 + $0x5a8] sm:$0xff]
        %v1017 = vld [vmem:[%s473 + $0x5b0] sm:$0xff]
        %v1018 = vld [vmem:[%s473 + $0x5b8] sm:$0xff]
        %v1019 = vld [vmem:[%s473 + $0x5c0] sm:$0xff]
        %v1020 = vld [vmem:[%s473 + $0x5c8] sm:$0xff]
        %v1021 = vld [vmem:[%s473 + $0x5d0] sm:$0xff]
        %v1022 = vld [vmem:[%s473 + $0x5d8] sm:$0xff]
        %v1023 = vld [vmem:[%s473 + $0x5e0] sm:$0xff]
        %v1024 = vld [vmem:[%s473 + $0x5e8] sm:$0xff]
        %v1025 = vld [vmem:[%s473 + $0x5f0] sm:$0xff]
        %v1026 = vld [vmem:[%s473 + $0x5f8] sm:$0xff]
        %v1027 = vld [vmem:[%s473 + $0x600] sm:$0xff]
        %v1028 = vld [vmem:[%s473 + $0x608] sm:$0xff]
        %v1029 = vld [vmem:[%s473 + $0x610] sm:$0xff]
        %v1030 = vld [vmem:[%s473 + $0x618] sm:$0xff]
        %v1031 = vld [vmem:[%s473 + $0x620] sm:$0xff]
        %v1032 = vld [vmem:[%s473 + $0x628] sm:$0xff]
        %v1033 = vld [vmem:[%s473 + $0x630] sm:$0xff]
        %v1034 = vld [vmem:[%s473 + $0x638] sm:$0xff]
        %v1035 = vld [vmem:[%s473 + $0x640] sm:$0xff]
        %v1036 = vld [vmem:[%s473 + $0x648] sm:$0xff]
        %v1037 = vld [vmem:[%s473 + $0x650] sm:$0xff]
        %v1038 = vld [vmem:[%s473 + $0x658] sm:$0xff]
        %v1039 = vld [vmem:[%s473 + $0x660] sm:$0xff]
        %v1040 = vld [vmem:[%s473 + $0x668] sm:$0xff]
        %v1041 = vld [vmem:[%s473 + $0x670] sm:$0xff]
        %v1042 = vld [vmem:[%s473 + $0x678] sm:$0xff]
        %v1043 = vld [vmem:[%s473 + $0x680] sm:$0xff]
        %v1044 = vld [vmem:[%s473 + $0x688] sm:$0xff]
        %v1045 = vld [vmem:[%s473 + $0x690] sm:$0xff]
        %v1046 = vld [vmem:[%s473 + $0x698] sm:$0xff]
        %v1047 = vld [vmem:[%s473 + $0x6a0] sm:$0xff]
        %v1048 = vld [vmem:[%s473 + $0x6a8] sm:$0xff]
        %v1049 = vld [vmem:[%s473 + $0x6b0] sm:$0xff]
        %v1050 = vld [vmem:[%s473 + $0x6b8] sm:$0xff]
        %v1051 = vld [vmem:[%s473 + $0x6c0] sm:$0xff]
        %v1052 = vld [vmem:[%s473 + $0x6c8] sm:$0xff]
        %v1053 = vld [vmem:[%s473 + $0x6d0] sm:$0xff]
        %v1054 = vld [vmem:[%s473 + $0x6d8] sm:$0xff]
        %v1055 = vld [vmem:[%s473 + $0x6e0] sm:$0xff]
        %v1056 = vld [vmem:[%s473 + $0x6e8] sm:$0xff]
        %v1057 = vld [vmem:[%s473 + $0x6f0] sm:$0xff]
        %v1058 = vld [vmem:[%s473 + $0x6f8] sm:$0xff]
        %v1059 = vld [vmem:[%s473 + $0x700] sm:$0xff]
        %v1060 = vld [vmem:[%s473 + $0x708] sm:$0xff]
        %v1061 = vld [vmem:[%s473 + $0x710] sm:$0xff]
        %v1062 = vld [vmem:[%s473 + $0x718] sm:$0xff]
        %v1063 = vld [vmem:[%s473 + $0x720] sm:$0xff]
        %v1064 = vld [vmem:[%s473 + $0x728] sm:$0xff]
        %v1065 = vld [vmem:[%s473 + $0x730] sm:$0xff]
        %v1066 = vld [vmem:[%s473 + $0x738] sm:$0xff]
        %v1067 = vld [vmem:[%s473 + $0x740] sm:$0xff]
        %v1068 = vld [vmem:[%s473 + $0x748] sm:$0xff]
        %v1069 = vld [vmem:[%s473 + $0x750] sm:$0xff]
        %v1070 = vld [vmem:[%s473 + $0x758] sm:$0xff]
        %v1071 = vld [vmem:[%s473 + $0x760] sm:$0xff]
        %v1072 = vld [vmem:[%s473 + $0x768] sm:$0xff]
        %v1073 = vld [vmem:[%s473 + $0x770] sm:$0xff]
        %v1074 = vld [vmem:[%s473 + $0x778] sm:$0xff]
        %v1075 = vld [vmem:[%s473 + $0x780] sm:$0xff]
        %v1076 = vld [vmem:[%s473 + $0x788] sm:$0xff]
        %v1077 = vld [vmem:[%s473 + $0x790] sm:$0xff]
        %v1078 = vld [vmem:[%s473 + $0x798] sm:$0xff]
        %v1079 = vld [vmem:[%s473 + $0x7a0] sm:$0xff]
        %v1080 = vld [vmem:[%s473 + $0x7a8] sm:$0xff]
        %v1081 = vld [vmem:[%s473 + $0x7b0] sm:$0xff]
        %v1082 = vld [vmem:[%s473 + $0x7b8] sm:$0xff]
        %v1083 = vld [vmem:[%s473 + $0x7c0] sm:$0xff]
        %v1084 = vld [vmem:[%s473 + $0x7c8] sm:$0xff]
        %v1085 = vld [vmem:[%s473 + $0x7d0] sm:$0xff]
        %v1086 = vld [vmem:[%s473 + $0x7d8] sm:$0xff]
        %v1087 = vld [vmem:[%s473 + $0x7e0] sm:$0xff]
        %v1088 = vld [vmem:[%s473 + $0x7e8] sm:$0xff]
        %v1089 = vld [vmem:[%s473 + $0x7f0] sm:$0xff]
        %v1090 = vld [vmem:[%s473 + $0x7f8] sm:$0xff]
        %v1091 = vld [vmem:[%s473 + $0x800] sm:$0xff]
        %v1092 = vld [vmem:[%s473 + $0x808] sm:$0xff]
        %v1093 = vld [vmem:[%s473 + $0x810] sm:$0xff]
        %v1094 = vld [vmem:[%s473 + $0x818] sm:$0xff]
        %v1095 = vld [vmem:[%s473 + $0x820] sm:$0xff]
        %v1096 = vld [vmem:[%s473 + $0x828] sm:$0xff]
        %v1097 = vld [vmem:[%s473 + $0x830] sm:$0xff]
        %v1098 = vld [vmem:[%s473 + $0x838] sm:$0xff]
        %v1099 = vld [vmem:[%s473 + $0x840] sm:$0xff]
        %v1100 = vld [vmem:[%s473 + $0x848] sm:$0xff]
        %v1101 = vld [vmem:[%s473 + $0x850] sm:$0xff]
        %v1102 = vld [vmem:[%s473 + $0x858] sm:$0xff]
        %v1103 = vld [vmem:[%s473 + $0x860] sm:$0xff]
        %v1104 = vld [vmem:[%s473 + $0x868] sm:$0xff]
        %v1105 = vld [vmem:[%s473 + $0x870] sm:$0xff]
        %v1106 = vld [vmem:[%s473 + $0x878] sm:$0xff]
        %v1107 = vld [vmem:[%s473 + $0x880] sm:$0xff]
        %v1108 = vld [vmem:[%s473 + $0x888] sm:$0xff]
        %v1109 = vld [vmem:[%s473 + $0x890] sm:$0xff]
        %v1110 = vld [vmem:[%s473 + $0x898] sm:$0xff]
        %v1111 = vld [vmem:[%s473 + $0x8a0] sm:$0xff]
        %v1112 = vld [vmem:[%s473 + $0x8a8] sm:$0xff]
        %v1113 = vld [vmem:[%s473 + $0x8b0] sm:$0xff]
        %v1114 = vld [vmem:[%s473 + $0x8b8] sm:$0xff]
        %v1115 = vld [vmem:[%s473 + $0x8c0] sm:$0xff]
        %v1116 = vld [vmem:[%s473 + $0x8c8] sm:$0xff]
        %v1117 = vld [vmem:[%s473 + $0x8d0] sm:$0xff]
        %v1118 = vld [vmem:[%s473 + $0x8d8] sm:$0xff]
        %v1119 = vld [vmem:[%s473 + $0x8e0] sm:$0xff]
        %v1120 = vld [vmem:[%s473 + $0x8e8] sm:$0xff]
        %v1121 = vld [vmem:[%s473 + $0x8f0] sm:$0xff]
        %v1122 = vld [vmem:[%s473 + $0x8f8] sm:$0xff]
        %v1123 = vld [vmem:[%s473 + $0x900] sm:$0xff]
        %v1124 = vld [vmem:[%s473 + $0x908] sm:$0xff]
        %v1125 = vld [vmem:[%s473 + $0x910] sm:$0xff]
        %v1126 = vld [vmem:[%s473 + $0x918] sm:$0xff]
        %v1127 = vld [vmem:[%s473 + $0x920] sm:$0xff]
        %v1128 = vld [vmem:[%s473 + $0x928] sm:$0xff]
        %v1129 = vld [vmem:[%s473 + $0x930] sm:$0xff]
        %v1130 = vld [vmem:[%s473 + $0x938] sm:$0xff]
        %v1131 = vld [vmem:[%s473 + $0x940] sm:$0xff]
        %v1132 = vld [vmem:[%s473 + $0x948] sm:$0xff]
        %v1133 = vld [vmem:[%s473 + $0x950] sm:$0xff]
        %v1134 = vld [vmem:[%s473 + $0x958] sm:$0xff]
        %v1135 = vld [vmem:[%s473 + $0x960] sm:$0xff]
        %v1136 = vld [vmem:[%s473 + $0x968] sm:$0xff]
        %v1137 = vld [vmem:[%s473 + $0x970] sm:$0xff]
        %v1138 = vld [vmem:[%s473 + $0x978] sm:$0xff]
        %v1139 = vld [vmem:[%s473 + $0x980] sm:$0xff]
        %v1140 = vld [vmem:[%s473 + $0x988] sm:$0xff]
        %v1141 = vld [vmem:[%s473 + $0x990] sm:$0xff]
        %v1142 = vld [vmem:[%s473 + $0x998] sm:$0xff]
        %v1143 = vld [vmem:[%s473 + $0x9a0] sm:$0xff]
        %v1144 = vld [vmem:[%s473 + $0x9a8] sm:$0xff]
        %v1145 = vld [vmem:[%s473 + $0x9b0] sm:$0xff]
        %v1146 = vld [vmem:[%s473 + $0x9b8] sm:$0xff]
        %v1147 = vld [vmem:[%s473 + $0x9c0] sm:$0xff]
        %v1148 = vld [vmem:[%s473 + $0x9c8] sm:$0xff]
        %v1149 = vld [vmem:[%s473 + $0x9d0] sm:$0xff]
        %v1150 = vld [vmem:[%s473 + $0x9d8] sm:$0xff]
        %v1151 = vld [vmem:[%s473 + $0x9e0] sm:$0xff]
        %v1152 = vld [vmem:[%s473 + $0x9e8] sm:$0xff]
        %v1153 = vld [vmem:[%s473 + $0x9f0] sm:$0xff]
        %v1154 = vld [vmem:[%s473 + $0x9f8] sm:$0xff]
        %v1155 = vld [vmem:[%s473 + $0xa00] sm:$0xff]
        %v1156 = vld [vmem:[%s473 + $0xa08] sm:$0xff]
        %v1157 = vld [vmem:[%s473 + $0xa10] sm:$0xff]
        %v1158 = vld [vmem:[%s473 + $0xa18] sm:$0xff]
        %v1159 = vld [vmem:[%s473 + $0xa20] sm:$0xff]
        %v1160 = vld [vmem:[%s473 + $0xa28] sm:$0xff]
        %v1161 = vld [vmem:[%s473 + $0xa30] sm:$0xff]
        %v1162 = vld [vmem:[%s473 + $0xa38] sm:$0xff]
        %v1163 = vld [vmem:[%s473 + $0xa40] sm:$0xff]
        %v1164 = vld [vmem:[%s473 + $0xa48] sm:$0xff]
        %v1165 = vld [vmem:[%s473 + $0xa50] sm:$0xff]
        %v1166 = vld [vmem:[%s473 + $0xa58] sm:$0xff]
        %v1167 = vld [vmem:[%s473 + $0xa60] sm:$0xff]
        %v1168 = vld [vmem:[%s473 + $0xa68] sm:$0xff]
        %v1169 = vld [vmem:[%s473 + $0xa70] sm:$0xff]
        %v1170 = vld [vmem:[%s473 + $0xa78] sm:$0xff]
        %v1171 = vld [vmem:[%s473 + $0xa80] sm:$0xff]
        %v1172 = vld [vmem:[%s473 + $0xa88] sm:$0xff]
        %v1173 = vld [vmem:[%s473 + $0xa90] sm:$0xff]
        %v1174 = vld [vmem:[%s473 + $0xa98] sm:$0xff]
        %v1175 = vld [vmem:[%s473 + $0xaa0] sm:$0xff]
        %v1176 = vld [vmem:[%s473 + $0xaa8] sm:$0xff]
        %v1177 = vld [vmem:[%s473 + $0xab0] sm:$0xff]
        %v1178 = vld [vmem:[%s473 + $0xab8] sm:$0xff]
        %v1179 = vld [vmem:[%s473 + $0xac0] sm:$0xff]
        %v1180 = vld [vmem:[%s473 + $0xac8] sm:$0xff]
        %v1181 = vld [vmem:[%s473 + $0xad0] sm:$0xff]
        %v1182 = vld [vmem:[%s473 + $0xad8] sm:$0xff]
        %v1183 = vld [vmem:[%s473 + $0xae0] sm:$0xff]
        %v1184 = vld [vmem:[%s473 + $0xae8] sm:$0xff]
        %v1185 = vld [vmem:[%s473 + $0xaf0] sm:$0xff]
        %v1186 = vld [vmem:[%s473 + $0xaf8] sm:$0xff]
        %v1187 = vld [vmem:[%s473 + $0xb00] sm:$0xff]
        %v1188 = vld [vmem:[%s473 + $0xb08] sm:$0xff]
        %v1189 = vld [vmem:[%s473 + $0xb10] sm:$0xff]
        %v1190 = vld [vmem:[%s473 + $0xb18] sm:$0xff]
        %v1191 = vld [vmem:[%s473 + $0xb20] sm:$0xff]
        %v1192 = vld [vmem:[%s473 + $0xb28] sm:$0xff]
        %v1193 = vld [vmem:[%s473 + $0xb30] sm:$0xff]
        %v1194 = vld [vmem:[%s473 + $0xb38] sm:$0xff]
        %v1195 = vld [vmem:[%s473 + $0xb40] sm:$0xff]
        %v1196 = vld [vmem:[%s473 + $0xb48] sm:$0xff]
        %v1197 = vld [vmem:[%s473 + $0xb50] sm:$0xff]
        %v1198 = vld [vmem:[%s473 + $0xb58] sm:$0xff]
        %v1199 = vld [vmem:[%s473 + $0xb60] sm:$0xff]
        %v1200 = vld [vmem:[%s473 + $0xb68] sm:$0xff]
        %v1201 = vld [vmem:[%s473 + $0xb70] sm:$0xff]
        %v1202 = vld [vmem:[%s473 + $0xb78] sm:$0xff]
        %v1203 = vld [vmem:[%s473 + $0xb80] sm:$0xff]
        %v1204 = vld [vmem:[%s473 + $0xb88] sm:$0xff]
        %v1205 = vld [vmem:[%s473 + $0xb90] sm:$0xff]
        %v1206 = vld [vmem:[%s473 + $0xb98] sm:$0xff]
        %v1207 = vld [vmem:[%s473 + $0xba0] sm:$0xff]
        %v1208 = vld [vmem:[%s473 + $0xba8] sm:$0xff]
        %v1209 = vld [vmem:[%s473 + $0xbb0] sm:$0xff]
        %v1210 = vld [vmem:[%s473 + $0xbb8] sm:$0xff]
        %v1211 = vld [vmem:[%s473 + $0xbc0] sm:$0xff]
        %v1212 = vld [vmem:[%s473 + $0xbc8] sm:$0xff]
        %v1213 = vld [vmem:[%s473 + $0xbd0] sm:$0xff]
        %v1214 = vld [vmem:[%s473 + $0xbd8] sm:$0xff]
        %v1215 = vld [vmem:[%s473 + $0xbe0] sm:$0xff]
        %v1216 = vld [vmem:[%s473 + $0xbe8] sm:$0xff]
        %v1217 = vld [vmem:[%s473 + $0xbf0] sm:$0xff]
        %v1218 = vld [vmem:[%s473 + $0xbf8] sm:$0xff]
        %v1219 = vld [vmem:[%s473 + $0xc00] sm:$0xff]
        %v1220 = vld [vmem:[%s473 + $0xc08] sm:$0xff]
        %v1221 = vld [vmem:[%s473 + $0xc10] sm:$0xff]
        %v1222 = vld [vmem:[%s473 + $0xc18] sm:$0xff]
        %v1223 = vld [vmem:[%s473 + $0xc20] sm:$0xff]
        %v1224 = vld [vmem:[%s473 + $0xc28] sm:$0xff]
        %v1225 = vld [vmem:[%s473 + $0xc30] sm:$0xff]
        %v1226 = vld [vmem:[%s473 + $0xc38] sm:$0xff]
        %v1227 = vld [vmem:[%s473 + $0xc40] sm:$0xff]
        %v1228 = vld [vmem:[%s473 + $0xc48] sm:$0xff]
        %v1229 = vld [vmem:[%s473 + $0xc50] sm:$0xff]
        %v1230 = vld [vmem:[%s473 + $0xc58] sm:$0xff]
        %v1231 = vld [vmem:[%s473 + $0xc60] sm:$0xff]
        %v1232 = vld [vmem:[%s473 + $0xc68] sm:$0xff]
        %v1233 = vld [vmem:[%s473 + $0xc70] sm:$0xff]
        %v1234 = vld [vmem:[%s473 + $0xc78] sm:$0xff]
        %v1235 = vld [vmem:[%s473 + $0xc80] sm:$0xff]
        %v1236 = vld [vmem:[%s473 + $0xc88] sm:$0xff]
        %v1237 = vld [vmem:[%s473 + $0xc90] sm:$0xff]
        %v1238 = vld [vmem:[%s473 + $0xc98] sm:$0xff]
        %v1239 = vld [vmem:[%s473 + $0xca0] sm:$0xff]
        %v1240 = vld [vmem:[%s473 + $0xca8] sm:$0xff]
        %v1241 = vld [vmem:[%s473 + $0xcb0] sm:$0xff]
        %v1242 = vld [vmem:[%s473 + $0xcb8] sm:$0xff]
        %v1243 = vld [vmem:[%s473 + $0xcc0] sm:$0xff]
        %v1244 = vld [vmem:[%s473 + $0xcc8] sm:$0xff]
        %v1245 = vld [vmem:[%s473 + $0xcd0] sm:$0xff]
        %v1246 = vld [vmem:[%s473 + $0xcd8] sm:$0xff]
        %v1247 = vld [vmem:[%s473 + $0xce0] sm:$0xff]
        %v1248 = vld [vmem:[%s473 + $0xce8] sm:$0xff]
        %v1249 = vld [vmem:[%s473 + $0xcf0] sm:$0xff]
        %v1250 = vld [vmem:[%s473 + $0xcf8] sm:$0xff]
        %v1251 = vld [vmem:[%s473 + $0xd00] sm:$0xff]
        %v1252 = vld [vmem:[%s473 + $0xd08] sm:$0xff]
        %v1253 = vld [vmem:[%s473 + $0xd10] sm:$0xff]
        %v1254 = vld [vmem:[%s473 + $0xd18] sm:$0xff]
        %v1255 = vld [vmem:[%s473 + $0xd20] sm:$0xff]
        %v1256 = vld [vmem:[%s473 + $0xd28] sm:$0xff]
        %v1257 = vld [vmem:[%s473 + $0xd30] sm:$0xff]
        %v1258 = vld [vmem:[%s473 + $0xd38] sm:$0xff]
        %v1259 = vld [vmem:[%s473 + $0xd40] sm:$0xff]
        %v1260 = vld [vmem:[%s473 + $0xd48] sm:$0xff]
        %v1261 = vld [vmem:[%s473 + $0xd50] sm:$0xff]
        %v1262 = vld [vmem:[%s473 + $0xd58] sm:$0xff]
        %v1263 = vld [vmem:[%s473 + $0xd60] sm:$0xff]
        %v1264 = vld [vmem:[%s473 + $0xd68] sm:$0xff]
        %v1265 = vld [vmem:[%s473 + $0xd70] sm:$0xff]
        %v1266 = vld [vmem:[%s473 + $0xd78] sm:$0xff]
        %v1267 = vld [vmem:[%s473 + $0xd80] sm:$0xff]
        %v1268 = vld [vmem:[%s473 + $0xd88] sm:$0xff]
        %v1269 = vld [vmem:[%s473 + $0xd90] sm:$0xff]
        %v1270 = vld [vmem:[%s473 + $0xd98] sm:$0xff]
        %v1271 = vld [vmem:[%s473 + $0xda0] sm:$0xff]
        %v1272 = vld [vmem:[%s473 + $0xda8] sm:$0xff]
        %v1273 = vld [vmem:[%s473 + $0xdb0] sm:$0xff]
        %v1274 = vld [vmem:[%s473 + $0xdb8] sm:$0xff]
        %v1275 = vld [vmem:[%s473 + $0xdc0] sm:$0xff]
        %v1276 = vld [vmem:[%s473 + $0xdc8] sm:$0xff]
        %v1277 = vld [vmem:[%s473 + $0xdd0] sm:$0xff]
        %v1278 = vld [vmem:[%s473 + $0xdd8] sm:$0xff]
        %v1279 = vld [vmem:[%s473 + $0xde0] sm:$0xff]
        %v1280 = vld [vmem:[%s473 + $0xde8] sm:$0xff]
        %v1281 = vld [vmem:[%s473 + $0xdf0] sm:$0xff]
        %v1282 = vld [vmem:[%s473 + $0xdf8] sm:$0xff]
        %v1283 = vld [vmem:[%s473 + $0xe00] sm:$0xff]
        %v1284 = vld [vmem:[%s473 + $0xe08] sm:$0xff]
        %v1285 = vld [vmem:[%s473 + $0xe10] sm:$0xff]
        %v1286 = vld [vmem:[%s473 + $0xe18] sm:$0xff]
        %v1287 = vld [vmem:[%s473 + $0xe20] sm:$0xff]
        %v1288 = vld [vmem:[%s473 + $0xe28] sm:$0xff]
        %v1289 = vld [vmem:[%s473 + $0xe30] sm:$0xff]
        %v1290 = vld [vmem:[%s473 + $0xe38] sm:$0xff]
        %v1291 = vld [vmem:[%s473 + $0xe40] sm:$0xff]
        %v1292 = vld [vmem:[%s473 + $0xe48] sm:$0xff]
        %v1293 = vld [vmem:[%s473 + $0xe50] sm:$0xff]
        %v1294 = vld [vmem:[%s473 + $0xe58] sm:$0xff]
        %v1295 = vld [vmem:[%s473 + $0xe60] sm:$0xff]
        %v1296 = vld [vmem:[%s473 + $0xe68] sm:$0xff]
        %v1297 = vld [vmem:[%s473 + $0xe70] sm:$0xff]
        %v1298 = vld [vmem:[%s473 + $0xe78] sm:$0xff]
        %v1299 = vld [vmem:[%s473 + $0xe80] sm:$0xff]
        %v1300 = vld [vmem:[%s473 + $0xe88] sm:$0xff]
        %v1301 = vld [vmem:[%s473 + $0xe90] sm:$0xff]
        %v1302 = vld [vmem:[%s473 + $0xe98] sm:$0xff]
        %v1303 = vld [vmem:[%s473 + $0xea0] sm:$0xff]
        %v1304 = vld [vmem:[%s473 + $0xea8] sm:$0xff]
        %v1305 = vld [vmem:[%s473 + $0xeb0] sm:$0xff]
        %v1306 = vld [vmem:[%s473 + $0xeb8] sm:$0xff]
        %v1307 = vld [vmem:[%s473 + $0xec0] sm:$0xff]
        %v1308 = vld [vmem:[%s473 + $0xec8] sm:$0xff]
        %v1309 = vld [vmem:[%s473 + $0xed0] sm:$0xff]
        %v1310 = vld [vmem:[%s473 + $0xed8] sm:$0xff]
        %v1311 = vld [vmem:[%s473 + $0xee0] sm:$0xff]
        %v1312 = vld [vmem:[%s473 + $0xee8] sm:$0xff]
        %v1313 = vld [vmem:[%s473 + $0xef0] sm:$0xff]
        %v1314 = vld [vmem:[%s473 + $0xef8] sm:$0xff]
        %v1315 = vld [vmem:[%s473 + $0xf00] sm:$0xff]
        %v1316 = vld [vmem:[%s473 + $0xf08] sm:$0xff]
        %v1317 = vld [vmem:[%s473 + $0xf10] sm:$0xff]
        %v1318 = vld [vmem:[%s473 + $0xf18] sm:$0xff]
        %v1319 = vld [vmem:[%s473 + $0xf20] sm:$0xff]
        %v1320 = vld [vmem:[%s473 + $0xf28] sm:$0xff]
        %v1321 = vld [vmem:[%s473 + $0xf30] sm:$0xff]
        %v1322 = vld [vmem:[%s473 + $0xf38] sm:$0xff]
        %v1323 = vld [vmem:[%s473 + $0xf40] sm:$0xff]
        %v1324 = vld [vmem:[%s473 + $0xf48] sm:$0xff]
        %v1325 = vld [vmem:[%s473 + $0xf50] sm:$0xff]
        %v1326 = vld [vmem:[%s473 + $0xf58] sm:$0xff]
        %v1327 = vld [vmem:[%s473 + $0xf60] sm:$0xff]
        %v1328 = vld [vmem:[%s473 + $0xf68] sm:$0xff]
        %v1329 = vld [vmem:[%s473 + $0xf70] sm:$0xff]
        %v1330 = vld [vmem:[%s473 + $0xf78] sm:$0xff]
        %v1331 = vld [vmem:[%s473 + $0xf80] sm:$0xff]
        %v1332 = vld [vmem:[%s473 + $0xf88] sm:$0xff]
        %v1333 = vld [vmem:[%s473 + $0xf90] sm:$0xff]
        %v1334 = vld [vmem:[%s473 + $0xf98] sm:$0xff]
        %v1335 = vld [vmem:[%s473 + $0xfa0] sm:$0xff]
        %v1336 = vld [vmem:[%s473 + $0xfa8] sm:$0xff]
        %v1337 = vld [vmem:[%s473 + $0xfb0] sm:$0xff]
        %v1338 = vld [vmem:[%s473 + $0xfb8] sm:$0xff]
        %v1339 = vld [vmem:[%s473 + $0xfc0] sm:$0xff]
        %v1340 = vld [vmem:[%s473 + $0xfc8] sm:$0xff]
        %v1341 = vld [vmem:[%s473 + $0xfd0] sm:$0xff]
        %v1342 = vld [vmem:[%s473 + $0xfd8] sm:$0xff]
        %v1343 = vld [vmem:[%s473 + $0xfe0] sm:$0xff]
        %v1344 = vld [vmem:[%s473 + $0xfe8] sm:$0xff]
        %v1345 = vld [vmem:[%s473 + $0xff0] sm:$0xff]
        %v1346 = vld [vmem:[%s473 + $0xff8] sm:$0xff]
        %v1349 = vunpack.c.l.b16 %v833
        %v1350 = vunpack.c.h.b16 %v833
        %v1351 = vunpack.c.l.b16 %v834
        %v1352 = vunpack.c.h.b16 %v834
        %v1353 = vpack.c.b16 %v1349, %v1349
        %v1354 = vpack.c.b16 %v1350, %v1350
        %v1355 = vpack.c.b16 %v1351, %v1351
        %v1356 = vpack.c.b16 %v1352, %v1352
        %v1873 = vunpack.c.l.b16 %v835
        %v1874 = vunpack.c.h.b16 %v835
        %v1875 = vunpack.c.l.b16 %v836
        %v1876 = vunpack.c.h.b16 %v836
        %v1877 = vunpack.c.l.b16 %v837
        %v1878 = vunpack.c.h.b16 %v837
        %v1879 = vunpack.c.l.b16 %v838
        %v1880 = vunpack.c.h.b16 %v838
        %v1881 = vunpack.c.l.b16 %v839
        %v1882 = vunpack.c.h.b16 %v839
        %v1883 = vunpack.c.l.b16 %v840
        %v1884 = vunpack.c.h.b16 %v840
        %v1885 = vunpack.c.l.b16 %v841
        %v1886 = vunpack.c.h.b16 %v841
        %v1887 = vunpack.c.l.b16 %v842
        %v1888 = vunpack.c.h.b16 %v842
        %v1889 = vunpack.c.l.b16 %v843
        %v1890 = vunpack.c.h.b16 %v843
        %v1891 = vunpack.c.l.b16 %v844
        %v1892 = vunpack.c.h.b16 %v844
        %v1893 = vunpack.c.l.b16 %v845
        %v1894 = vunpack.c.h.b16 %v845
        %v1895 = vunpack.c.l.b16 %v846
        %v1896 = vunpack.c.h.b16 %v846
        %v1897 = vunpack.c.l.b16 %v847
        %v1898 = vunpack.c.h.b16 %v847
        %v1899 = vunpack.c.l.b16 %v848
        %v1900 = vunpack.c.h.b16 %v848
        %v1901 = vunpack.c.l.b16 %v849
        %v1902 = vunpack.c.h.b16 %v849
        %v1903 = vunpack.c.l.b16 %v850
        %v1904 = vunpack.c.h.b16 %v850
        %v1905 = vunpack.c.l.b16 %v851
        %v1906 = vunpack.c.h.b16 %v851
        %v1907 = vunpack.c.l.b16 %v852
        %v1908 = vunpack.c.h.b16 %v852
        %v1909 = vunpack.c.l.b16 %v853
        %v1910 = vunpack.c.h.b16 %v853
        %v1911 = vunpack.c.l.b16 %v854
        %v1912 = vunpack.c.h.b16 %v854
        %v1913 = vunpack.c.l.b16 %v855
        %v1914 = vunpack.c.h.b16 %v855
        %v1915 = vunpack.c.l.b16 %v856
        %v1916 = vunpack.c.h.b16 %v856
        %v1917 = vunpack.c.l.b16 %v857
        %v1918 = vunpack.c.h.b16 %v857
        %v1919 = vunpack.c.l.b16 %v858
        %v1920 = vunpack.c.h.b16 %v858
        %v1921 = vunpack.c.l.b16 %v859
        %v1922 = vunpack.c.h.b16 %v859
        %v1923 = vunpack.c.l.b16 %v860
        %v1924 = vunpack.c.h.b16 %v860
        %v1925 = vunpack.c.l.b16 %v861
        %v1926 = vunpack.c.h.b16 %v861
        %v1927 = vunpack.c.l.b16 %v862
        %v1928 = vunpack.c.h.b16 %v862
        %v1929 = vunpack.c.l.b16 %v863
        %v1930 = vunpack.c.h.b16 %v863
        %v1931 = vunpack.c.l.b16 %v864
        %v1932 = vunpack.c.h.b16 %v864
        %v1933 = vunpack.c.l.b16 %v865
        %v1934 = vunpack.c.h.b16 %v865
        %v1935 = vunpack.c.l.b16 %v866
        %v1936 = vunpack.c.h.b16 %v866
        %v1937 = vunpack.c.l.b16 %v867
        %v1938 = vunpack.c.h.b16 %v867
        %v1939 = vunpack.c.l.b16 %v868
        %v1940 = vunpack.c.h.b16 %v868
        %v1941 = vunpack.c.l.b16 %v869
        %v1942 = vunpack.c.h.b16 %v869
        %v1943 = vunpack.c.l.b16 %v870
        %v1944 = vunpack.c.h.b16 %v870
        %v1945 = vunpack.c.l.b16 %v871
        %v1946 = vunpack.c.h.b16 %v871
        %v1947 = vunpack.c.l.b16 %v872
        %v1948 = vunpack.c.h.b16 %v872
        %v1949 = vunpack.c.l.b16 %v873
        %v1950 = vunpack.c.h.b16 %v873
        %v1951 = vunpack.c.l.b16 %v874
        %v1952 = vunpack.c.h.b16 %v874
        %v1953 = vunpack.c.l.b16 %v875
        %v1954 = vunpack.c.h.b16 %v875
        %v1955 = vunpack.c.l.b16 %v876
        %v1956 = vunpack.c.h.b16 %v876
        %v1957 = vunpack.c.l.b16 %v877
        %v1958 = vunpack.c.h.b16 %v877
        %v1959 = vunpack.c.l.b16 %v878
        %v1960 = vunpack.c.h.b16 %v878
        %v1961 = vunpack.c.l.b16 %v879
        %v1962 = vunpack.c.h.b16 %v879
        %v1963 = vunpack.c.l.b16 %v880
        %v1964 = vunpack.c.h.b16 %v880
        %v1965 = vunpack.c.l.b16 %v881
        %v1966 = vunpack.c.h.b16 %v881
        %v1967 = vunpack.c.l.b16 %v882
        %v1968 = vunpack.c.h.b16 %v882
        %v1969 = vunpack.c.l.b16 %v883
        %v1970 = vunpack.c.h.b16 %v883
        %v1971 = vunpack.c.l.b16 %v884
        %v1972 = vunpack.c.h.b16 %v884
        %v1973 = vunpack.c.l.b16 %v885
        %v1974 = vunpack.c.h.b16 %v885
        %v1975 = vunpack.c.l.b16 %v886
        %v1976 = vunpack.c.h.b16 %v886
        %v1977 = vunpack.c.l.b16 %v887
        %v1978 = vunpack.c.h.b16 %v887
        %v1979 = vunpack.c.l.b16 %v888
        %v1980 = vunpack.c.h.b16 %v888
        %v1981 = vunpack.c.l.b16 %v889
        %v1982 = vunpack.c.h.b16 %v889
        %v1983 = vunpack.c.l.b16 %v890
        %v1984 = vunpack.c.h.b16 %v890
        %v1985 = vunpack.c.l.b16 %v891
        %v1986 = vunpack.c.h.b16 %v891
        %v1987 = vunpack.c.l.b16 %v892
        %v1988 = vunpack.c.h.b16 %v892
        %v1989 = vunpack.c.l.b16 %v893
        %v1990 = vunpack.c.h.b16 %v893
        %v1991 = vunpack.c.l.b16 %v894
        %v1992 = vunpack.c.h.b16 %v894
        %v1993 = vunpack.c.l.b16 %v895
        %v1994 = vunpack.c.h.b16 %v895
        %v1995 = vunpack.c.l.b16 %v896
        %v1996 = vunpack.c.h.b16 %v896
        %v1997 = vunpack.c.l.b16 %v897
        %v1998 = vunpack.c.h.b16 %v897
        %v1999 = vunpack.c.l.b16 %v898
        %v2000 = vunpack.c.h.b16 %v898
        %v2001 = vunpack.c.l.b16 %v899
        %v2002 = vunpack.c.h.b16 %v899
        %v2003 = vunpack.c.l.b16 %v900
        %v2004 = vunpack.c.h.b16 %v900
        %v2005 = vunpack.c.l.b16 %v901
        %v2006 = vunpack.c.h.b16 %v901
        %v2007 = vunpack.c.l.b16 %v902
        %v2008 = vunpack.c.h.b16 %v902
        %v2009 = vunpack.c.l.b16 %v903
        %v2010 = vunpack.c.h.b16 %v903
        %v2011 = vunpack.c.l.b16 %v904
        %v2012 = vunpack.c.h.b16 %v904
        %v2013 = vunpack.c.l.b16 %v905
        %v2014 = vunpack.c.h.b16 %v905
        %v2015 = vunpack.c.l.b16 %v906
        %v2016 = vunpack.c.h.b16 %v906
        %v2017 = vunpack.c.l.b16 %v907
        %v2018 = vunpack.c.h.b16 %v907
        %v2019 = vunpack.c.l.b16 %v908
        %v2020 = vunpack.c.h.b16 %v908
        %v2021 = vunpack.c.l.b16 %v909
        %v2022 = vunpack.c.h.b16 %v909
        %v2023 = vunpack.c.l.b16 %v910
        %v2024 = vunpack.c.h.b16 %v910
        %v2025 = vunpack.c.l.b16 %v911
        %v2026 = vunpack.c.h.b16 %v911
        %v2027 = vunpack.c.l.b16 %v912
        %v2028 = vunpack.c.h.b16 %v912
        %v2029 = vunpack.c.l.b16 %v913
        %v2030 = vunpack.c.h.b16 %v913
        %v2031 = vunpack.c.l.b16 %v914
        %v2032 = vunpack.c.h.b16 %v914
        %v2033 = vunpack.c.l.b16 %v915
        %v2034 = vunpack.c.h.b16 %v915
        %v2035 = vunpack.c.l.b16 %v916
        %v2036 = vunpack.c.h.b16 %v916
        %v2037 = vunpack.c.l.b16 %v917
        %v2038 = vunpack.c.h.b16 %v917
        %v2039 = vunpack.c.l.b16 %v918
        %v2040 = vunpack.c.h.b16 %v918
        %v2041 = vunpack.c.l.b16 %v919
        %v2042 = vunpack.c.h.b16 %v919
        %v2043 = vunpack.c.l.b16 %v920
        %v2044 = vunpack.c.h.b16 %v920
        %v2045 = vunpack.c.l.b16 %v921
        %v2046 = vunpack.c.h.b16 %v921
        %v2047 = vunpack.c.l.b16 %v922
        %v2048 = vunpack.c.h.b16 %v922
        %v2049 = vunpack.c.l.b16 %v923
        %v2050 = vunpack.c.h.b16 %v923
        %v2051 = vunpack.c.l.b16 %v924
        %v2052 = vunpack.c.h.b16 %v924
        %v2053 = vunpack.c.l.b16 %v925
        %v2054 = vunpack.c.h.b16 %v925
        %v2055 = vunpack.c.l.b16 %v926
        %v2056 = vunpack.c.h.b16 %v926
        %v2057 = vunpack.c.l.b16 %v927
        %v2058 = vunpack.c.h.b16 %v927
        %v2059 = vunpack.c.l.b16 %v928
        %v2060 = vunpack.c.h.b16 %v928
        %v2061 = vunpack.c.l.b16 %v929
        %v2062 = vunpack.c.h.b16 %v929
        %v2063 = vunpack.c.l.b16 %v930
        %v2064 = vunpack.c.h.b16 %v930
        %v2065 = vunpack.c.l.b16 %v931
        %v2066 = vunpack.c.h.b16 %v931
        %v2067 = vunpack.c.l.b16 %v932
        %v2068 = vunpack.c.h.b16 %v932
        %v2069 = vunpack.c.l.b16 %v933
        %v2070 = vunpack.c.h.b16 %v933
        %v2071 = vunpack.c.l.b16 %v934
        %v2072 = vunpack.c.h.b16 %v934
        %v2073 = vunpack.c.l.b16 %v935
        %v2074 = vunpack.c.h.b16 %v935
        %v2075 = vunpack.c.l.b16 %v936
        %v2076 = vunpack.c.h.b16 %v936
        %v2077 = vunpack.c.l.b16 %v937
        %v2078 = vunpack.c.h.b16 %v937
        %v2079 = vunpack.c.l.b16 %v938
        %v2080 = vunpack.c.h.b16 %v938
        %v2081 = vunpack.c.l.b16 %v939
        %v2082 = vunpack.c.h.b16 %v939
        %v2083 = vunpack.c.l.b16 %v940
        %v2084 = vunpack.c.h.b16 %v940
        %v2085 = vunpack.c.l.b16 %v941
        %v2086 = vunpack.c.h.b16 %v941
        %v2087 = vunpack.c.l.b16 %v942
        %v2088 = vunpack.c.h.b16 %v942
        %v2089 = vunpack.c.l.b16 %v943
        %v2090 = vunpack.c.h.b16 %v943
        %v2091 = vunpack.c.l.b16 %v944
        %v2092 = vunpack.c.h.b16 %v944
        %v2093 = vunpack.c.l.b16 %v945
        %v2094 = vunpack.c.h.b16 %v945
        %v2095 = vunpack.c.l.b16 %v946
        %v2096 = vunpack.c.h.b16 %v946
        %v2097 = vunpack.c.l.b16 %v947
        %v2098 = vunpack.c.h.b16 %v947
        %v2099 = vunpack.c.l.b16 %v948
        %v2100 = vunpack.c.h.b16 %v948
        %v2101 = vunpack.c.l.b16 %v949
        %v2102 = vunpack.c.h.b16 %v949
        %v2103 = vunpack.c.l.b16 %v950
        %v2104 = vunpack.c.h.b16 %v950
        %v2105 = vunpack.c.l.b16 %v951
        %v2106 = vunpack.c.h.b16 %v951
        %v2107 = vunpack.c.l.b16 %v952
        %v2108 = vunpack.c.h.b16 %v952
        %v2109 = vunpack.c.l.b16 %v953
        %v2110 = vunpack.c.h.b16 %v953
        %v2111 = vunpack.c.l.b16 %v954
        %v2112 = vunpack.c.h.b16 %v954
        %v2113 = vunpack.c.l.b16 %v955
        %v2114 = vunpack.c.h.b16 %v955
        %v2115 = vunpack.c.l.b16 %v956
        %v2116 = vunpack.c.h.b16 %v956
        %v2117 = vunpack.c.l.b16 %v957
        %v2118 = vunpack.c.h.b16 %v957
        %v2119 = vunpack.c.l.b16 %v958
        %v2120 = vunpack.c.h.b16 %v958
        %v2121 = vunpack.c.l.b16 %v959
        %v2122 = vunpack.c.h.b16 %v959
        %v2123 = vunpack.c.l.b16 %v960
        %v2124 = vunpack.c.h.b16 %v960
        %v2125 = vunpack.c.l.b16 %v961
        %v2126 = vunpack.c.h.b16 %v961
        %v2127 = vunpack.c.l.b16 %v962
        %v2128 = vunpack.c.h.b16 %v962
        %v2129 = vunpack.c.l.b16 %v963
        %v2130 = vunpack.c.h.b16 %v963
        %v2131 = vunpack.c.l.b16 %v964
        %v2132 = vunpack.c.h.b16 %v964
        %v2133 = vunpack.c.l.b16 %v965
        %v2134 = vunpack.c.h.b16 %v965
        %v2135 = vunpack.c.l.b16 %v966
        %v2136 = vunpack.c.h.b16 %v966
        %v2137 = vunpack.c.l.b16 %v967
        %v2138 = vunpack.c.h.b16 %v967
        %v2139 = vunpack.c.l.b16 %v968
        %v2140 = vunpack.c.h.b16 %v968
        %v2141 = vunpack.c.l.b16 %v969
        %v2142 = vunpack.c.h.b16 %v969
        %v2143 = vunpack.c.l.b16 %v970
        %v2144 = vunpack.c.h.b16 %v970
        %v2145 = vunpack.c.l.b16 %v971
        %v2146 = vunpack.c.h.b16 %v971
        %v2147 = vunpack.c.l.b16 %v972
        %v2148 = vunpack.c.h.b16 %v972
        %v2149 = vunpack.c.l.b16 %v973
        %v2150 = vunpack.c.h.b16 %v973
        %v2151 = vunpack.c.l.b16 %v974
        %v2152 = vunpack.c.h.b16 %v974
        %v2153 = vunpack.c.l.b16 %v975
        %v2154 = vunpack.c.h.b16 %v975
        %v2155 = vunpack.c.l.b16 %v976
        %v2156 = vunpack.c.h.b16 %v976
        %v2157 = vunpack.c.l.b16 %v977
        %v2158 = vunpack.c.h.b16 %v977
        %v2159 = vunpack.c.l.b16 %v978
        %v2160 = vunpack.c.h.b16 %v978
        %v2161 = vunpack.c.l.b16 %v979
        %v2162 = vunpack.c.h.b16 %v979
        %v2163 = vunpack.c.l.b16 %v980
        %v2164 = vunpack.c.h.b16 %v980
        %v2165 = vunpack.c.l.b16 %v981
        %v2166 = vunpack.c.h.b16 %v981
        %v2167 = vunpack.c.l.b16 %v982
        %v2168 = vunpack.c.h.b16 %v982
        %v2169 = vunpack.c.l.b16 %v983
        %v2170 = vunpack.c.h.b16 %v983
        %v2171 = vunpack.c.l.b16 %v984
        %v2172 = vunpack.c.h.b16 %v984
        %v2173 = vunpack.c.l.b16 %v985
        %v2174 = vunpack.c.h.b16 %v985
        %v2175 = vunpack.c.l.b16 %v986
        %v2176 = vunpack.c.h.b16 %v986
        %v2177 = vunpack.c.l.b16 %v987
        %v2178 = vunpack.c.h.b16 %v987
        %v2179 = vunpack.c.l.b16 %v988
        %v2180 = vunpack.c.h.b16 %v988
        %v2181 = vunpack.c.l.b16 %v989
        %v2182 = vunpack.c.h.b16 %v989
        %v2183 = vunpack.c.l.b16 %v990
        %v2184 = vunpack.c.h.b16 %v990
        %v2185 = vunpack.c.l.b16 %v991
        %v2186 = vunpack.c.h.b16 %v991
        %v2187 = vunpack.c.l.b16 %v992
        %v2188 = vunpack.c.h.b16 %v992
        %v2189 = vunpack.c.l.b16 %v993
        %v2190 = vunpack.c.h.b16 %v993
        %v2191 = vunpack.c.l.b16 %v994
        %v2192 = vunpack.c.h.b16 %v994
        %v2193 = vunpack.c.l.b16 %v995
        %v2194 = vunpack.c.h.b16 %v995
        %v2195 = vunpack.c.l.b16 %v996
        %v2196 = vunpack.c.h.b16 %v996
        %v2197 = vunpack.c.l.b16 %v997
        %v2198 = vunpack.c.h.b16 %v997
        %v2199 = vunpack.c.l.b16 %v998
        %v2200 = vunpack.c.h.b16 %v998
        %v2201 = vunpack.c.l.b16 %v999
        %v2202 = vunpack.c.h.b16 %v999
        %v2203 = vunpack.c.l.b16 %v1000
        %v2204 = vunpack.c.h.b16 %v1000
        %v2205 = vunpack.c.l.b16 %v1001
        %v2206 = vunpack.c.h.b16 %v1001
        %v2207 = vunpack.c.l.b16 %v1002
        %v2208 = vunpack.c.h.b16 %v1002
        %v2209 = vunpack.c.l.b16 %v1003
        %v2210 = vunpack.c.h.b16 %v1003
        %v2211 = vunpack.c.l.b16 %v1004
        %v2212 = vunpack.c.h.b16 %v1004
        %v2213 = vunpack.c.l.b16 %v1005
        %v2214 = vunpack.c.h.b16 %v1005
        %v2215 = vunpack.c.l.b16 %v1006
        %v2216 = vunpack.c.h.b16 %v1006
        %v2217 = vunpack.c.l.b16 %v1007
        %v2218 = vunpack.c.h.b16 %v1007
        %v2219 = vunpack.c.l.b16 %v1008
        %v2220 = vunpack.c.h.b16 %v1008
        %v2221 = vunpack.c.l.b16 %v1009
        %v2222 = vunpack.c.h.b16 %v1009
        %v2223 = vunpack.c.l.b16 %v1010
        %v2224 = vunpack.c.h.b16 %v1010
        %v2225 = vunpack.c.l.b16 %v1011
        %v2226 = vunpack.c.h.b16 %v1011
        %v2227 = vunpack.c.l.b16 %v1012
        %v2228 = vunpack.c.h.b16 %v1012
        %v2229 = vunpack.c.l.b16 %v1013
        %v2230 = vunpack.c.h.b16 %v1013
        %v2231 = vunpack.c.l.b16 %v1014
        %v2232 = vunpack.c.h.b16 %v1014
        %v2233 = vunpack.c.l.b16 %v1015
        %v2234 = vunpack.c.h.b16 %v1015
        %v2235 = vunpack.c.l.b16 %v1016
        %v2236 = vunpack.c.h.b16 %v1016
        %v2237 = vunpack.c.l.b16 %v1017
        %v2238 = vunpack.c.h.b16 %v1017
        %v2239 = vunpack.c.l.b16 %v1018
        %v2240 = vunpack.c.h.b16 %v1018
        %v2241 = vunpack.c.l.b16 %v1019
        %v2242 = vunpack.c.h.b16 %v1019
        %v2243 = vunpack.c.l.b16 %v1020
        %v2244 = vunpack.c.h.b16 %v1020
        %v2245 = vunpack.c.l.b16 %v1021
        %v2246 = vunpack.c.h.b16 %v1021
        %v2247 = vunpack.c.l.b16 %v1022
        %v2248 = vunpack.c.h.b16 %v1022
        %v2249 = vunpack.c.l.b16 %v1023
        %v2250 = vunpack.c.h.b16 %v1023
        %v2251 = vunpack.c.l.b16 %v1024
        %v2252 = vunpack.c.h.b16 %v1024
        %v2253 = vunpack.c.l.b16 %v1025
        %v2254 = vunpack.c.h.b16 %v1025
        %v2255 = vunpack.c.l.b16 %v1026
        %v2256 = vunpack.c.h.b16 %v1026
        %v2257 = vunpack.c.l.b16 %v1027
        %v2258 = vunpack.c.h.b16 %v1027
        %v2259 = vunpack.c.l.b16 %v1028
        %v2260 = vunpack.c.h.b16 %v1028
        %v2261 = vunpack.c.l.b16 %v1029
        %v2262 = vunpack.c.h.b16 %v1029
        %v2263 = vunpack.c.l.b16 %v1030
        %v2264 = vunpack.c.h.b16 %v1030
        %v2265 = vunpack.c.l.b16 %v1031
        %v2266 = vunpack.c.h.b16 %v1031
        %v2267 = vunpack.c.l.b16 %v1032
        %v2268 = vunpack.c.h.b16 %v1032
        %v2269 = vunpack.c.l.b16 %v1033
        %v2270 = vunpack.c.h.b16 %v1033
        %v2271 = vunpack.c.l.b16 %v1034
        %v2272 = vunpack.c.h.b16 %v1034
        %v2273 = vunpack.c.l.b16 %v1035
        %v2274 = vunpack.c.h.b16 %v1035
        %v2275 = vunpack.c.l.b16 %v1036
        %v2276 = vunpack.c.h.b16 %v1036
        %v2277 = vunpack.c.l.b16 %v1037
        %v2278 = vunpack.c.h.b16 %v1037
        %v2279 = vunpack.c.l.b16 %v1038
        %v2280 = vunpack.c.h.b16 %v1038
        %v2281 = vunpack.c.l.b16 %v1039
        %v2282 = vunpack.c.h.b16 %v1039
        %v2283 = vunpack.c.l.b16 %v1040
        %v2284 = vunpack.c.h.b16 %v1040
        %v2285 = vunpack.c.l.b16 %v1041
        %v2286 = vunpack.c.h.b16 %v1041
        %v2287 = vunpack.c.l.b16 %v1042
        %v2288 = vunpack.c.h.b16 %v1042
        %v2289 = vunpack.c.l.b16 %v1043
        %v2290 = vunpack.c.h.b16 %v1043
        %v2291 = vunpack.c.l.b16 %v1044
        %v2292 = vunpack.c.h.b16 %v1044
        %v2293 = vunpack.c.l.b16 %v1045
        %v2294 = vunpack.c.h.b16 %v1045
        %v2295 = vunpack.c.l.b16 %v1046
        %v2296 = vunpack.c.h.b16 %v1046
        %v2297 = vunpack.c.l.b16 %v1047
        %v2298 = vunpack.c.h.b16 %v1047
        %v2299 = vunpack.c.l.b16 %v1048
        %v2300 = vunpack.c.h.b16 %v1048
        %v2301 = vunpack.c.l.b16 %v1049
        %v2302 = vunpack.c.h.b16 %v1049
        %v2303 = vunpack.c.l.b16 %v1050
        %v2304 = vunpack.c.h.b16 %v1050
        %v2305 = vunpack.c.l.b16 %v1051
        %v2306 = vunpack.c.h.b16 %v1051
        %v2307 = vunpack.c.l.b16 %v1052
        %v2308 = vunpack.c.h.b16 %v1052
        %v2309 = vunpack.c.l.b16 %v1053
        %v2310 = vunpack.c.h.b16 %v1053
        %v2311 = vunpack.c.l.b16 %v1054
        %v2312 = vunpack.c.h.b16 %v1054
        %v2313 = vunpack.c.l.b16 %v1055
        %v2314 = vunpack.c.h.b16 %v1055
        %v2315 = vunpack.c.l.b16 %v1056
        %v2316 = vunpack.c.h.b16 %v1056
        %v2317 = vunpack.c.l.b16 %v1057
        %v2318 = vunpack.c.h.b16 %v1057
        %v2319 = vunpack.c.l.b16 %v1058
        %v2320 = vunpack.c.h.b16 %v1058
        %v2321 = vunpack.c.l.b16 %v1059
        %v2322 = vunpack.c.h.b16 %v1059
        %v2323 = vunpack.c.l.b16 %v1060
        %v2324 = vunpack.c.h.b16 %v1060
        %v2325 = vunpack.c.l.b16 %v1061
        %v2326 = vunpack.c.h.b16 %v1061
        %v2327 = vunpack.c.l.b16 %v1062
        %v2328 = vunpack.c.h.b16 %v1062
        %v2329 = vunpack.c.l.b16 %v1063
        %v2330 = vunpack.c.h.b16 %v1063
        %v2331 = vunpack.c.l.b16 %v1064
        %v2332 = vunpack.c.h.b16 %v1064
        %v2333 = vunpack.c.l.b16 %v1065
        %v2334 = vunpack.c.h.b16 %v1065
        %v2335 = vunpack.c.l.b16 %v1066
        %v2336 = vunpack.c.h.b16 %v1066
        %v2337 = vunpack.c.l.b16 %v1067
        %v2338 = vunpack.c.h.b16 %v1067
        %v2339 = vunpack.c.l.b16 %v1068
        %v2340 = vunpack.c.h.b16 %v1068
        %v2341 = vunpack.c.l.b16 %v1069
        %v2342 = vunpack.c.h.b16 %v1069
        %v2343 = vunpack.c.l.b16 %v1070
        %v2344 = vunpack.c.h.b16 %v1070
        %v2345 = vunpack.c.l.b16 %v1071
        %v2346 = vunpack.c.h.b16 %v1071
        %v2347 = vunpack.c.l.b16 %v1072
        %v2348 = vunpack.c.h.b16 %v1072
        %v2349 = vunpack.c.l.b16 %v1073
        %v2350 = vunpack.c.h.b16 %v1073
        %v2351 = vunpack.c.l.b16 %v1074
        %v2352 = vunpack.c.h.b16 %v1074
        %v2353 = vunpack.c.l.b16 %v1075
        %v2354 = vunpack.c.h.b16 %v1075
        %v2355 = vunpack.c.l.b16 %v1076
        %v2356 = vunpack.c.h.b16 %v1076
        %v2357 = vunpack.c.l.b16 %v1077
        %v2358 = vunpack.c.h.b16 %v1077
        %v2359 = vunpack.c.l.b16 %v1078
        %v2360 = vunpack.c.h.b16 %v1078
        %v2361 = vunpack.c.l.b16 %v1079
        %v2362 = vunpack.c.h.b16 %v1079
        %v2363 = vunpack.c.l.b16 %v1080
        %v2364 = vunpack.c.h.b16 %v1080
        %v2365 = vunpack.c.l.b16 %v1081
        %v2366 = vunpack.c.h.b16 %v1081
        %v2367 = vunpack.c.l.b16 %v1082
        %v2368 = vunpack.c.h.b16 %v1082
        %v2369 = vunpack.c.l.b16 %v1083
        %v2370 = vunpack.c.h.b16 %v1083
        %v2371 = vunpack.c.l.b16 %v1084
        %v2372 = vunpack.c.h.b16 %v1084
        %v2373 = vunpack.c.l.b16 %v1085
        %v2374 = vunpack.c.h.b16 %v1085
        %v2375 = vunpack.c.l.b16 %v1086
        %v2376 = vunpack.c.h.b16 %v1086
        %v2377 = vunpack.c.l.b16 %v1087
        %v2378 = vunpack.c.h.b16 %v1087
        %v2379 = vunpack.c.l.b16 %v1088
        %v2380 = vunpack.c.h.b16 %v1088
        %v2381 = vunpack.c.l.b16 %v1089
        %v2382 = vunpack.c.h.b16 %v1089
        %v2383 = vunpack.c.l.b16 %v1090
        %v2384 = vunpack.c.h.b16 %v1090
        %v2385 = vunpack.c.l.b16 %v1091
        %v2386 = vunpack.c.h.b16 %v1091
        %v2387 = vunpack.c.l.b16 %v1092
        %v2388 = vunpack.c.h.b16 %v1092
        %v2389 = vunpack.c.l.b16 %v1093
        %v2390 = vunpack.c.h.b16 %v1093
        %v2391 = vunpack.c.l.b16 %v1094
        %v2392 = vunpack.c.h.b16 %v1094
        %v2393 = vunpack.c.l.b16 %v1095
        %v2394 = vunpack.c.h.b16 %v1095
        %v2395 = vunpack.c.l.b16 %v1096
        %v2396 = vunpack.c.h.b16 %v1096
        %v2397 = vunpack.c.l.b16 %v1097
        %v2398 = vunpack.c.h.b16 %v1097
        %v2399 = vunpack.c.l.b16 %v1098
        %v2400 = vunpack.c.h.b16 %v1098
        %v2401 = vunpack.c.l.b16 %v1099
        %v2402 = vunpack.c.h.b16 %v1099
        %v2403 = vunpack.c.l.b16 %v1100
        %v2404 = vunpack.c.h.b16 %v1100
        %v2405 = vunpack.c.l.b16 %v1101
        %v2406 = vunpack.c.h.b16 %v1101
        %v2407 = vunpack.c.l.b16 %v1102
        %v2408 = vunpack.c.h.b16 %v1102
        %v2409 = vunpack.c.l.b16 %v1103
        %v2410 = vunpack.c.h.b16 %v1103
        %v2411 = vunpack.c.l.b16 %v1104
        %v2412 = vunpack.c.h.b16 %v1104
        %v2413 = vunpack.c.l.b16 %v1105
        %v2414 = vunpack.c.h.b16 %v1105
        %v2415 = vunpack.c.l.b16 %v1106
        %v2416 = vunpack.c.h.b16 %v1106
        %v2417 = vunpack.c.l.b16 %v1107
        %v2418 = vunpack.c.h.b16 %v1107
        %v2419 = vunpack.c.l.b16 %v1108
        %v2420 = vunpack.c.h.b16 %v1108
        %v2421 = vunpack.c.l.b16 %v1109
        %v2422 = vunpack.c.h.b16 %v1109
        %v2423 = vunpack.c.l.b16 %v1110
        %v2424 = vunpack.c.h.b16 %v1110
        %v2425 = vunpack.c.l.b16 %v1111
        %v2426 = vunpack.c.h.b16 %v1111
        %v2427 = vunpack.c.l.b16 %v1112
        %v2428 = vunpack.c.h.b16 %v1112
        %v2429 = vunpack.c.l.b16 %v1113
        %v2430 = vunpack.c.h.b16 %v1113
        %v2431 = vunpack.c.l.b16 %v1114
        %v2432 = vunpack.c.h.b16 %v1114
        %v2433 = vunpack.c.l.b16 %v1115
        %v2434 = vunpack.c.h.b16 %v1115
        %v2435 = vunpack.c.l.b16 %v1116
        %v2436 = vunpack.c.h.b16 %v1116
        %v2437 = vunpack.c.l.b16 %v1117
        %v2438 = vunpack.c.h.b16 %v1117
        %v2439 = vunpack.c.l.b16 %v1118
        %v2440 = vunpack.c.h.b16 %v1118
        %v2441 = vunpack.c.l.b16 %v1119
        %v2442 = vunpack.c.h.b16 %v1119
        %v2443 = vunpack.c.l.b16 %v1120
        %v2444 = vunpack.c.h.b16 %v1120
        %v2445 = vunpack.c.l.b16 %v1121
        %v2446 = vunpack.c.h.b16 %v1121
        %v2447 = vunpack.c.l.b16 %v1122
        %v2448 = vunpack.c.h.b16 %v1122
        %v2449 = vunpack.c.l.b16 %v1123
        %v2450 = vunpack.c.h.b16 %v1123
        %v2451 = vunpack.c.l.b16 %v1124
        %v2452 = vunpack.c.h.b16 %v1124
        %v2453 = vunpack.c.l.b16 %v1125
        %v2454 = vunpack.c.h.b16 %v1125
        %v2455 = vunpack.c.l.b16 %v1126
        %v2456 = vunpack.c.h.b16 %v1126
        %v2457 = vunpack.c.l.b16 %v1127
        %v2458 = vunpack.c.h.b16 %v1127
        %v2459 = vunpack.c.l.b16 %v1128
        %v2460 = vunpack.c.h.b16 %v1128
        %v2461 = vunpack.c.l.b16 %v1129
        %v2462 = vunpack.c.h.b16 %v1129
        %v2463 = vunpack.c.l.b16 %v1130
        %v2464 = vunpack.c.h.b16 %v1130
        %v2465 = vunpack.c.l.b16 %v1131
        %v2466 = vunpack.c.h.b16 %v1131
        %v2467 = vunpack.c.l.b16 %v1132
        %v2468 = vunpack.c.h.b16 %v1132
        %v2469 = vunpack.c.l.b16 %v1133
        %v2470 = vunpack.c.h.b16 %v1133
        %v2471 = vunpack.c.l.b16 %v1134
        %v2472 = vunpack.c.h.b16 %v1134
        %v2473 = vunpack.c.l.b16 %v1135
        %v2474 = vunpack.c.h.b16 %v1135
        %v2475 = vunpack.c.l.b16 %v1136
        %v2476 = vunpack.c.h.b16 %v1136
        %v2477 = vunpack.c.l.b16 %v1137
        %v2478 = vunpack.c.h.b16 %v1137
        %v2479 = vunpack.c.l.b16 %v1138
        %v2480 = vunpack.c.h.b16 %v1138
        %v2481 = vunpack.c.l.b16 %v1139
        %v2482 = vunpack.c.h.b16 %v1139
        %v2483 = vunpack.c.l.b16 %v1140
        %v2484 = vunpack.c.h.b16 %v1140
        %v2485 = vunpack.c.l.b16 %v1141
        %v2486 = vunpack.c.h.b16 %v1141
        %v2487 = vunpack.c.l.b16 %v1142
        %v2488 = vunpack.c.h.b16 %v1142
        %v2489 = vunpack.c.l.b16 %v1143
        %v2490 = vunpack.c.h.b16 %v1143
        %v2491 = vunpack.c.l.b16 %v1144
        %v2492 = vunpack.c.h.b16 %v1144
        %v2493 = vunpack.c.l.b16 %v1145
        %v2494 = vunpack.c.h.b16 %v1145
        %v2495 = vunpack.c.l.b16 %v1146
        %v2496 = vunpack.c.h.b16 %v1146
        %v2497 = vunpack.c.l.b16 %v1147
        %v2498 = vunpack.c.h.b16 %v1147
        %v2499 = vunpack.c.l.b16 %v1148
        %v2500 = vunpack.c.h.b16 %v1148
        %v2501 = vunpack.c.l.b16 %v1149
        %v2502 = vunpack.c.h.b16 %v1149
        %v2503 = vunpack.c.l.b16 %v1150
        %v2504 = vunpack.c.h.b16 %v1150
        %v2505 = vunpack.c.l.b16 %v1151
        %v2506 = vunpack.c.h.b16 %v1151
        %v2507 = vunpack.c.l.b16 %v1152
        %v2508 = vunpack.c.h.b16 %v1152
        %v2509 = vunpack.c.l.b16 %v1153
        %v2510 = vunpack.c.h.b16 %v1153
        %v2511 = vunpack.c.l.b16 %v1154
        %v2512 = vunpack.c.h.b16 %v1154
        %v2513 = vunpack.c.l.b16 %v1155
        %v2514 = vunpack.c.h.b16 %v1155
        %v2515 = vunpack.c.l.b16 %v1156
        %v2516 = vunpack.c.h.b16 %v1156
        %v2517 = vunpack.c.l.b16 %v1157
        %v2518 = vunpack.c.h.b16 %v1157
        %v2519 = vunpack.c.l.b16 %v1158
        %v2520 = vunpack.c.h.b16 %v1158
        %v2521 = vunpack.c.l.b16 %v1159
        %v2522 = vunpack.c.h.b16 %v1159
        %v2523 = vunpack.c.l.b16 %v1160
        %v2524 = vunpack.c.h.b16 %v1160
        %v2525 = vunpack.c.l.b16 %v1161
        %v2526 = vunpack.c.h.b16 %v1161
        %v2527 = vunpack.c.l.b16 %v1162
        %v2528 = vunpack.c.h.b16 %v1162
        %v2529 = vunpack.c.l.b16 %v1163
        %v2530 = vunpack.c.h.b16 %v1163
        %v2531 = vunpack.c.l.b16 %v1164
        %v2532 = vunpack.c.h.b16 %v1164
        %v2533 = vunpack.c.l.b16 %v1165
        %v2534 = vunpack.c.h.b16 %v1165
        %v2535 = vunpack.c.l.b16 %v1166
        %v2536 = vunpack.c.h.b16 %v1166
        %v2537 = vunpack.c.l.b16 %v1167
        %v2538 = vunpack.c.h.b16 %v1167
        %v2539 = vunpack.c.l.b16 %v1168
        %v2540 = vunpack.c.h.b16 %v1168
        %v2541 = vunpack.c.l.b16 %v1169
        %v2542 = vunpack.c.h.b16 %v1169
        %v2543 = vunpack.c.l.b16 %v1170
        %v2544 = vunpack.c.h.b16 %v1170
        %v2545 = vunpack.c.l.b16 %v1171
        %v2546 = vunpack.c.h.b16 %v1171
        %v2547 = vunpack.c.l.b16 %v1172
        %v2548 = vunpack.c.h.b16 %v1172
        %v2549 = vunpack.c.l.b16 %v1173
        %v2550 = vunpack.c.h.b16 %v1173
        %v2551 = vunpack.c.l.b16 %v1174
        %v2552 = vunpack.c.h.b16 %v1174
        %v2553 = vunpack.c.l.b16 %v1175
        %v2554 = vunpack.c.h.b16 %v1175
        %v2555 = vunpack.c.l.b16 %v1176
        %v2556 = vunpack.c.h.b16 %v1176
        %v2557 = vunpack.c.l.b16 %v1177
        %v2558 = vunpack.c.h.b16 %v1177
        %v2559 = vunpack.c.l.b16 %v1178
        %v2560 = vunpack.c.h.b16 %v1178
        %v2561 = vunpack.c.l.b16 %v1179
        %v2562 = vunpack.c.h.b16 %v1179
        %v2563 = vunpack.c.l.b16 %v1180
        %v2564 = vunpack.c.h.b16 %v1180
        %v2565 = vunpack.c.l.b16 %v1181
        %v2566 = vunpack.c.h.b16 %v1181
        %v2567 = vunpack.c.l.b16 %v1182
        %v2568 = vunpack.c.h.b16 %v1182
        %v2569 = vunpack.c.l.b16 %v1183
        %v2570 = vunpack.c.h.b16 %v1183
        %v2571 = vunpack.c.l.b16 %v1184
        %v2572 = vunpack.c.h.b16 %v1184
        %v2573 = vunpack.c.l.b16 %v1185
        %v2574 = vunpack.c.h.b16 %v1185
        %v2575 = vunpack.c.l.b16 %v1186
        %v2576 = vunpack.c.h.b16 %v1186
        %v2577 = vunpack.c.l.b16 %v1187
        %v2578 = vunpack.c.h.b16 %v1187
        %v2579 = vunpack.c.l.b16 %v1188
        %v2580 = vunpack.c.h.b16 %v1188
        %v2581 = vunpack.c.l.b16 %v1189
        %v2582 = vunpack.c.h.b16 %v1189
        %v2583 = vunpack.c.l.b16 %v1190
        %v2584 = vunpack.c.h.b16 %v1190
        %v2585 = vunpack.c.l.b16 %v1191
        %v2586 = vunpack.c.h.b16 %v1191
        %v2587 = vunpack.c.l.b16 %v1192
        %v2588 = vunpack.c.h.b16 %v1192
        %v2589 = vunpack.c.l.b16 %v1193
        %v2590 = vunpack.c.h.b16 %v1193
        %v2591 = vunpack.c.l.b16 %v1194
        %v2592 = vunpack.c.h.b16 %v1194
        %v2593 = vunpack.c.l.b16 %v1195
        %v2594 = vunpack.c.h.b16 %v1195
        %v2595 = vunpack.c.l.b16 %v1196
        %v2596 = vunpack.c.h.b16 %v1196
        %v2597 = vunpack.c.l.b16 %v1197
        %v2598 = vunpack.c.h.b16 %v1197
        %v2599 = vunpack.c.l.b16 %v1198
        %v2600 = vunpack.c.h.b16 %v1198
        %v2601 = vunpack.c.l.b16 %v1199
        %v2602 = vunpack.c.h.b16 %v1199
        %v2603 = vunpack.c.l.b16 %v1200
        %v2604 = vunpack.c.h.b16 %v1200
        %v2605 = vunpack.c.l.b16 %v1201
        %v2606 = vunpack.c.h.b16 %v1201
        %v2607 = vunpack.c.l.b16 %v1202
        %v2608 = vunpack.c.h.b16 %v1202
        %v2609 = vunpack.c.l.b16 %v1203
        %v2610 = vunpack.c.h.b16 %v1203
        %v2611 = vunpack.c.l.b16 %v1204
        %v2612 = vunpack.c.h.b16 %v1204
        %v2613 = vunpack.c.l.b16 %v1205
        %v2614 = vunpack.c.h.b16 %v1205
        %v2615 = vunpack.c.l.b16 %v1206
        %v2616 = vunpack.c.h.b16 %v1206
        %v2617 = vunpack.c.l.b16 %v1207
        %v2618 = vunpack.c.h.b16 %v1207
        %v2619 = vunpack.c.l.b16 %v1208
        %v2620 = vunpack.c.h.b16 %v1208
        %v2621 = vunpack.c.l.b16 %v1209
        %v2622 = vunpack.c.h.b16 %v1209
        %v2623 = vunpack.c.l.b16 %v1210
        %v2624 = vunpack.c.h.b16 %v1210
        %v2625 = vunpack.c.l.b16 %v1211
        %v2626 = vunpack.c.h.b16 %v1211
        %v2627 = vunpack.c.l.b16 %v1212
        %v2628 = vunpack.c.h.b16 %v1212
        %v2629 = vunpack.c.l.b16 %v1213
        %v2630 = vunpack.c.h.b16 %v1213
        %v2631 = vunpack.c.l.b16 %v1214
        %v2632 = vunpack.c.h.b16 %v1214
        %v2633 = vunpack.c.l.b16 %v1215
        %v2634 = vunpack.c.h.b16 %v1215
        %v2635 = vunpack.c.l.b16 %v1216
        %v2636 = vunpack.c.h.b16 %v1216
        %v2637 = vunpack.c.l.b16 %v1217
        %v2638 = vunpack.c.h.b16 %v1217
        %v2639 = vunpack.c.l.b16 %v1218
        %v2640 = vunpack.c.h.b16 %v1218
        %v2641 = vunpack.c.l.b16 %v1219
        %v2642 = vunpack.c.h.b16 %v1219
        %v2643 = vunpack.c.l.b16 %v1220
        %v2644 = vunpack.c.h.b16 %v1220
        %v2645 = vunpack.c.l.b16 %v1221
        %v2646 = vunpack.c.h.b16 %v1221
        %v2647 = vunpack.c.l.b16 %v1222
        %v2648 = vunpack.c.h.b16 %v1222
        %v2649 = vunpack.c.l.b16 %v1223
        %v2650 = vunpack.c.h.b16 %v1223
        %v2651 = vunpack.c.l.b16 %v1224
        %v2652 = vunpack.c.h.b16 %v1224
        %v2653 = vunpack.c.l.b16 %v1225
        %v2654 = vunpack.c.h.b16 %v1225
        %v2655 = vunpack.c.l.b16 %v1226
        %v2656 = vunpack.c.h.b16 %v1226
        %v2657 = vunpack.c.l.b16 %v1227
        %v2658 = vunpack.c.h.b16 %v1227
        %v2659 = vunpack.c.l.b16 %v1228
        %v2660 = vunpack.c.h.b16 %v1228
        %v2661 = vunpack.c.l.b16 %v1229
        %v2662 = vunpack.c.h.b16 %v1229
        %v2663 = vunpack.c.l.b16 %v1230
        %v2664 = vunpack.c.h.b16 %v1230
        %v2665 = vunpack.c.l.b16 %v1231
        %v2666 = vunpack.c.h.b16 %v1231
        %v2667 = vunpack.c.l.b16 %v1232
        %v2668 = vunpack.c.h.b16 %v1232
        %v2669 = vunpack.c.l.b16 %v1233
        %v2670 = vunpack.c.h.b16 %v1233
        %v2671 = vunpack.c.l.b16 %v1234
        %v2672 = vunpack.c.h.b16 %v1234
        %v2673 = vunpack.c.l.b16 %v1235
        %v2674 = vunpack.c.h.b16 %v1235
        %v2675 = vunpack.c.l.b16 %v1236
        %v2676 = vunpack.c.h.b16 %v1236
        %v2677 = vunpack.c.l.b16 %v1237
        %v2678 = vunpack.c.h.b16 %v1237
        %v2679 = vunpack.c.l.b16 %v1238
        %v2680 = vunpack.c.h.b16 %v1238
        %v2681 = vunpack.c.l.b16 %v1239
        %v2682 = vunpack.c.h.b16 %v1239
        %v2683 = vunpack.c.l.b16 %v1240
        %v2684 = vunpack.c.h.b16 %v1240
        %v2685 = vunpack.c.l.b16 %v1241
        %v2686 = vunpack.c.h.b16 %v1241
        %v2687 = vunpack.c.l.b16 %v1242
        %v2688 = vunpack.c.h.b16 %v1242
        %v2689 = vunpack.c.l.b16 %v1243
        %v2690 = vunpack.c.h.b16 %v1243
        %v2691 = vunpack.c.l.b16 %v1244
        %v2692 = vunpack.c.h.b16 %v1244
        %v2693 = vunpack.c.l.b16 %v1245
        %v2694 = vunpack.c.h.b16 %v1245
        %v2695 = vunpack.c.l.b16 %v1246
        %v2696 = vunpack.c.h.b16 %v1246
        %v2697 = vunpack.c.l.b16 %v1247
        %v2698 = vunpack.c.h.b16 %v1247
        %v2699 = vunpack.c.l.b16 %v1248
        %v2700 = vunpack.c.h.b16 %v1248
        %v2701 = vunpack.c.l.b16 %v1249
        %v2702 = vunpack.c.h.b16 %v1249
        %v2703 = vunpack.c.l.b16 %v1250
        %v2704 = vunpack.c.h.b16 %v1250
        %v2705 = vunpack.c.l.b16 %v1251
        %v2706 = vunpack.c.h.b16 %v1251
        %v2707 = vunpack.c.l.b16 %v1252
        %v2708 = vunpack.c.h.b16 %v1252
        %v2709 = vunpack.c.l.b16 %v1253
        %v2710 = vunpack.c.h.b16 %v1253
        %v2711 = vunpack.c.l.b16 %v1254
        %v2712 = vunpack.c.h.b16 %v1254
        %v2713 = vunpack.c.l.b16 %v1255
        %v2714 = vunpack.c.h.b16 %v1255
        %v2715 = vunpack.c.l.b16 %v1256
        %v2716 = vunpack.c.h.b16 %v1256
        %v2717 = vunpack.c.l.b16 %v1257
        %v2718 = vunpack.c.h.b16 %v1257
        %v2719 = vunpack.c.l.b16 %v1258
        %v2720 = vunpack.c.h.b16 %v1258
        %v2721 = vunpack.c.l.b16 %v1259
        %v2722 = vunpack.c.h.b16 %v1259
        %v2723 = vunpack.c.l.b16 %v1260
        %v2724 = vunpack.c.h.b16 %v1260
        %v2725 = vunpack.c.l.b16 %v1261
        %v2726 = vunpack.c.h.b16 %v1261
        %v2727 = vunpack.c.l.b16 %v1262
        %v2728 = vunpack.c.h.b16 %v1262
        %v2729 = vunpack.c.l.b16 %v1263
        %v2730 = vunpack.c.h.b16 %v1263
        %v2731 = vunpack.c.l.b16 %v1264
        %v2732 = vunpack.c.h.b16 %v1264
        %v2733 = vunpack.c.l.b16 %v1265
        %v2734 = vunpack.c.h.b16 %v1265
        %v2735 = vunpack.c.l.b16 %v1266
        %v2736 = vunpack.c.h.b16 %v1266
        %v2737 = vunpack.c.l.b16 %v1267
        %v2738 = vunpack.c.h.b16 %v1267
        %v2739 = vunpack.c.l.b16 %v1268
        %v2740 = vunpack.c.h.b16 %v1268
        %v2741 = vunpack.c.l.b16 %v1269
        %v2742 = vunpack.c.h.b16 %v1269
        %v2743 = vunpack.c.l.b16 %v1270
        %v2744 = vunpack.c.h.b16 %v1270
        %v2745 = vunpack.c.l.b16 %v1271
        %v2746 = vunpack.c.h.b16 %v1271
        %v2747 = vunpack.c.l.b16 %v1272
        %v2748 = vunpack.c.h.b16 %v1272
        %v2749 = vunpack.c.l.b16 %v1273
        %v2750 = vunpack.c.h.b16 %v1273
        %v2751 = vunpack.c.l.b16 %v1274
        %v2752 = vunpack.c.h.b16 %v1274
        %v2753 = vunpack.c.l.b16 %v1275
        %v2754 = vunpack.c.h.b16 %v1275
        %v2755 = vunpack.c.l.b16 %v1276
        %v2756 = vunpack.c.h.b16 %v1276
        %v2757 = vunpack.c.l.b16 %v1277
        %v2758 = vunpack.c.h.b16 %v1277
        %v2759 = vunpack.c.l.b16 %v1278
        %v2760 = vunpack.c.h.b16 %v1278
        %v2761 = vunpack.c.l.b16 %v1279
        %v2762 = vunpack.c.h.b16 %v1279
        %v2763 = vunpack.c.l.b16 %v1280
        %v2764 = vunpack.c.h.b16 %v1280
        %v2765 = vunpack.c.l.b16 %v1281
        %v2766 = vunpack.c.h.b16 %v1281
        %v2767 = vunpack.c.l.b16 %v1282
        %v2768 = vunpack.c.h.b16 %v1282
        %v2769 = vunpack.c.l.b16 %v1283
        %v2770 = vunpack.c.h.b16 %v1283
        %v2771 = vunpack.c.l.b16 %v1284
        %v2772 = vunpack.c.h.b16 %v1284
        %v2773 = vunpack.c.l.b16 %v1285
        %v2774 = vunpack.c.h.b16 %v1285
        %v2775 = vunpack.c.l.b16 %v1286
        %v2776 = vunpack.c.h.b16 %v1286
        %v2777 = vunpack.c.l.b16 %v1287
        %v2778 = vunpack.c.h.b16 %v1287
        %v2779 = vunpack.c.l.b16 %v1288
        %v2780 = vunpack.c.h.b16 %v1288
        %v2781 = vunpack.c.l.b16 %v1289
        %v2782 = vunpack.c.h.b16 %v1289
        %v2783 = vunpack.c.l.b16 %v1290
        %v2784 = vunpack.c.h.b16 %v1290
        %v2785 = vunpack.c.l.b16 %v1291
        %v2786 = vunpack.c.h.b16 %v1291
        %v2787 = vunpack.c.l.b16 %v1292
        %v2788 = vunpack.c.h.b16 %v1292
        %v2789 = vunpack.c.l.b16 %v1293
        %v2790 = vunpack.c.h.b16 %v1293
        %v2791 = vunpack.c.l.b16 %v1294
        %v2792 = vunpack.c.h.b16 %v1294
        %v2793 = vunpack.c.l.b16 %v1295
        %v2794 = vunpack.c.h.b16 %v1295
        %v2795 = vunpack.c.l.b16 %v1296
        %v2796 = vunpack.c.h.b16 %v1296
        %v2797 = vunpack.c.l.b16 %v1297
        %v2798 = vunpack.c.h.b16 %v1297
        %v2799 = vunpack.c.l.b16 %v1298
        %v2800 = vunpack.c.h.b16 %v1298
        %v2801 = vunpack.c.l.b16 %v1299
        %v2802 = vunpack.c.h.b16 %v1299
        %v2803 = vunpack.c.l.b16 %v1300
        %v2804 = vunpack.c.h.b16 %v1300
        %v2805 = vunpack.c.l.b16 %v1301
        %v2806 = vunpack.c.h.b16 %v1301
        %v2807 = vunpack.c.l.b16 %v1302
        %v2808 = vunpack.c.h.b16 %v1302
        %v2809 = vunpack.c.l.b16 %v1303
        %v2810 = vunpack.c.h.b16 %v1303
        %v2811 = vunpack.c.l.b16 %v1304
        %v2812 = vunpack.c.h.b16 %v1304
        %v2813 = vunpack.c.l.b16 %v1305
        %v2814 = vunpack.c.h.b16 %v1305
        %v2815 = vunpack.c.l.b16 %v1306
        %v2816 = vunpack.c.h.b16 %v1306
        %v2817 = vunpack.c.l.b16 %v1307
        %v2818 = vunpack.c.h.b16 %v1307
        %v2819 = vunpack.c.l.b16 %v1308
        %v2820 = vunpack.c.h.b16 %v1308
        %v2821 = vunpack.c.l.b16 %v1309
        %v2822 = vunpack.c.h.b16 %v1309
        %v2823 = vunpack.c.l.b16 %v1310
        %v2824 = vunpack.c.h.b16 %v1310
        %v2825 = vunpack.c.l.b16 %v1311
        %v2826 = vunpack.c.h.b16 %v1311
        %v2827 = vunpack.c.l.b16 %v1312
        %v2828 = vunpack.c.h.b16 %v1312
        %v2829 = vunpack.c.l.b16 %v1313
        %v2830 = vunpack.c.h.b16 %v1313
        %v2831 = vunpack.c.l.b16 %v1314
        %v2832 = vunpack.c.h.b16 %v1314
        %v2833 = vunpack.c.l.b16 %v1315
        %v2834 = vunpack.c.h.b16 %v1315
        %v2835 = vunpack.c.l.b16 %v1316
        %v2836 = vunpack.c.h.b16 %v1316
        %v2837 = vunpack.c.l.b16 %v1317
        %v2838 = vunpack.c.h.b16 %v1317
        %v2839 = vunpack.c.l.b16 %v1318
        %v2840 = vunpack.c.h.b16 %v1318
        %v2841 = vunpack.c.l.b16 %v1319
        %v2842 = vunpack.c.h.b16 %v1319
        %v2843 = vunpack.c.l.b16 %v1320
        %v2844 = vunpack.c.h.b16 %v1320
        %v2845 = vunpack.c.l.b16 %v1321
        %v2846 = vunpack.c.h.b16 %v1321
        %v2847 = vunpack.c.l.b16 %v1322
        %v2848 = vunpack.c.h.b16 %v1322
        %v2849 = vunpack.c.l.b16 %v1323
        %v2850 = vunpack.c.h.b16 %v1323
        %v2851 = vunpack.c.l.b16 %v1324
        %v2852 = vunpack.c.h.b16 %v1324
        %v2853 = vunpack.c.l.b16 %v1325
        %v2854 = vunpack.c.h.b16 %v1325
        %v2855 = vunpack.c.l.b16 %v1326
        %v2856 = vunpack.c.h.b16 %v1326
        %v2857 = vunpack.c.l.b16 %v1327
        %v2858 = vunpack.c.h.b16 %v1327
        %v2859 = vunpack.c.l.b16 %v1328
        %v2860 = vunpack.c.h.b16 %v1328
        %v2861 = vunpack.c.l.b16 %v1329
        %v2862 = vunpack.c.h.b16 %v1329
        %v2863 = vunpack.c.l.b16 %v1330
        %v2864 = vunpack.c.h.b16 %v1330
        %v2865 = vunpack.c.l.b16 %v1331
        %v2866 = vunpack.c.h.b16 %v1331
        %v2867 = vunpack.c.l.b16 %v1332
        %v2868 = vunpack.c.h.b16 %v1332
        %v2869 = vunpack.c.l.b16 %v1333
        %v2870 = vunpack.c.h.b16 %v1333
        %v2871 = vunpack.c.l.b16 %v1334
        %v2872 = vunpack.c.h.b16 %v1334
        %v2873 = vunpack.c.l.b16 %v1335
        %v2874 = vunpack.c.h.b16 %v1335
        %v2875 = vunpack.c.l.b16 %v1336
        %v2876 = vunpack.c.h.b16 %v1336
        %v2877 = vunpack.c.l.b16 %v1337
        %v2878 = vunpack.c.h.b16 %v1337
        %v2879 = vunpack.c.l.b16 %v1338
        %v2880 = vunpack.c.h.b16 %v1338
        %v2881 = vunpack.c.l.b16 %v1339
        %v2882 = vunpack.c.h.b16 %v1339
        %v2883 = vunpack.c.l.b16 %v1340
        %v2884 = vunpack.c.h.b16 %v1340
        %v2885 = vunpack.c.l.b16 %v1341
        %v2886 = vunpack.c.h.b16 %v1341
        %v2887 = vunpack.c.l.b16 %v1342
        %v2888 = vunpack.c.h.b16 %v1342
        %v2889 = vunpack.c.l.b16 %v1343
        %v2890 = vunpack.c.h.b16 %v1343
        %v2891 = vunpack.c.l.b16 %v1344
        %v2892 = vunpack.c.h.b16 %v1344
        %v2893 = vunpack.c.l.b16 %v1345
        %v2894 = vunpack.c.h.b16 %v1345
        %v2895 = vunpack.c.l.b16 %v1346
        %v2896 = vunpack.c.h.b16 %v1346
        %v2897 = vpack.c.b16 %v1889, %v1873
        %v2898 = vpack.c.b16 %v1890, %v1874
        %v2899 = vpack.c.b16 %v1891, %v1875
        %v2900 = vpack.c.b16 %v1892, %v1876
        %v2901 = vpack.c.b16 %v1893, %v1877
        %v2902 = vpack.c.b16 %v1894, %v1878
        %v2903 = vpack.c.b16 %v1895, %v1879
        %v2904 = vpack.c.b16 %v1896, %v1880
        %v2905 = vpack.c.b16 %v1897, %v1881
        %v2906 = vpack.c.b16 %v1898, %v1882
        %v2907 = vpack.c.b16 %v1899, %v1883
        %v2908 = vpack.c.b16 %v1900, %v1884
        %v2909 = vpack.c.b16 %v1901, %v1885
        %v2910 = vpack.c.b16 %v1902, %v1886
        %v2911 = vpack.c.b16 %v1903, %v1887
        %v2912 = vpack.c.b16 %v1904, %v1888
        %v2913 = vpack.c.b16 %v1921, %v1905
        %v2914 = vpack.c.b16 %v1922, %v1906
        %v2915 = vpack.c.b16 %v1923, %v1907
        %v2916 = vpack.c.b16 %v1924, %v1908
        %v2917 = vpack.c.b16 %v1925, %v1909
        %v2918 = vpack.c.b16 %v1926, %v1910
        %v2919 = vpack.c.b16 %v1927, %v1911
        %v2920 = vpack.c.b16 %v1928, %v1912
        %v2921 = vpack.c.b16 %v1929, %v1913
        %v2922 = vpack.c.b16 %v1930, %v1914
        %v2923 = vpack.c.b16 %v1931, %v1915
        %v2924 = vpack.c.b16 %v1932, %v1916
        %v2925 = vpack.c.b16 %v1933, %v1917
        %v2926 = vpack.c.b16 %v1934, %v1918
        %v2927 = vpack.c.b16 %v1935, %v1919
        %v2928 = vpack.c.b16 %v1936, %v1920
        %v2929 = vpack.c.b16 %v1953, %v1937
        %v2930 = vpack.c.b16 %v1954, %v1938
        %v2931 = vpack.c.b16 %v1955, %v1939
        %v2932 = vpack.c.b16 %v1956, %v1940
        %v2933 = vpack.c.b16 %v1957, %v1941
        %v2934 = vpack.c.b16 %v1958, %v1942
        %v2935 = vpack.c.b16 %v1959, %v1943
        %v2936 = vpack.c.b16 %v1960, %v1944
        %v2937 = vpack.c.b16 %v1961, %v1945
        %v2938 = vpack.c.b16 %v1962, %v1946
        %v2939 = vpack.c.b16 %v1963, %v1947
        %v2940 = vpack.c.b16 %v1964, %v1948
        %v2941 = vpack.c.b16 %v1965, %v1949
        %v2942 = vpack.c.b16 %v1966, %v1950
        %v2943 = vpack.c.b16 %v1967, %v1951
        %v2944 = vpack.c.b16 %v1968, %v1952
        %v2945 = vpack.c.b16 %v1985, %v1969
        %v2946 = vpack.c.b16 %v1986, %v1970
        %v2947 = vpack.c.b16 %v1987, %v1971
        %v2948 = vpack.c.b16 %v1988, %v1972
        %v2949 = vpack.c.b16 %v1989, %v1973
        %v2950 = vpack.c.b16 %v1990, %v1974
        %v2951 = vpack.c.b16 %v1991, %v1975
        %v2952 = vpack.c.b16 %v1992, %v1976
        %v2953 = vpack.c.b16 %v1993, %v1977
        %v2954 = vpack.c.b16 %v1994, %v1978
        %v2955 = vpack.c.b16 %v1995, %v1979
        %v2956 = vpack.c.b16 %v1996, %v1980
        %v2957 = vpack.c.b16 %v1997, %v1981
        %v2958 = vpack.c.b16 %v1998, %v1982
        %v2959 = vpack.c.b16 %v1999, %v1983
        %v2960 = vpack.c.b16 %v2000, %v1984
        %v2961 = vpack.c.b16 %v2017, %v2001
        %v2962 = vpack.c.b16 %v2018, %v2002
        %v2963 = vpack.c.b16 %v2019, %v2003
        %v2964 = vpack.c.b16 %v2020, %v2004
        %v2965 = vpack.c.b16 %v2021, %v2005
        %v2966 = vpack.c.b16 %v2022, %v2006
        %v2967 = vpack.c.b16 %v2023, %v2007
        %v2968 = vpack.c.b16 %v2024, %v2008
        %v2969 = vpack.c.b16 %v2025, %v2009
        %v2970 = vpack.c.b16 %v2026, %v2010
        %v2971 = vpack.c.b16 %v2027, %v2011
        %v2972 = vpack.c.b16 %v2028, %v2012
        %v2973 = vpack.c.b16 %v2029, %v2013
        %v2974 = vpack.c.b16 %v2030, %v2014
        %v2975 = vpack.c.b16 %v2031, %v2015
        %v2976 = vpack.c.b16 %v2032, %v2016
        %v2977 = vpack.c.b16 %v2049, %v2033
        %v2978 = vpack.c.b16 %v2050, %v2034
        %v2979 = vpack.c.b16 %v2051, %v2035
        %v2980 = vpack.c.b16 %v2052, %v2036
        %v2981 = vpack.c.b16 %v2053, %v2037
        %v2982 = vpack.c.b16 %v2054, %v2038
        %v2983 = vpack.c.b16 %v2055, %v2039
        %v2984 = vpack.c.b16 %v2056, %v2040
        %v2985 = vpack.c.b16 %v2057, %v2041
        %v2986 = vpack.c.b16 %v2058, %v2042
        %v2987 = vpack.c.b16 %v2059, %v2043
        %v2988 = vpack.c.b16 %v2060, %v2044
        %v2989 = vpack.c.b16 %v2061, %v2045
        %v2990 = vpack.c.b16 %v2062, %v2046
        %v2991 = vpack.c.b16 %v2063, %v2047
        %v2992 = vpack.c.b16 %v2064, %v2048
        %v2993 = vpack.c.b16 %v2081, %v2065
        %v2994 = vpack.c.b16 %v2082, %v2066
        %v2995 = vpack.c.b16 %v2083, %v2067
        %v2996 = vpack.c.b16 %v2084, %v2068
        %v2997 = vpack.c.b16 %v2085, %v2069
        %v2998 = vpack.c.b16 %v2086, %v2070
        %v2999 = vpack.c.b16 %v2087, %v2071
        %v3000 = vpack.c.b16 %v2088, %v2072
        %v3001 = vpack.c.b16 %v2089, %v2073
        %v3002 = vpack.c.b16 %v2090, %v2074
        %v3003 = vpack.c.b16 %v2091, %v2075
        %v3004 = vpack.c.b16 %v2092, %v2076
        %v3005 = vpack.c.b16 %v2093, %v2077
        %v3006 = vpack.c.b16 %v2094, %v2078
        %v3007 = vpack.c.b16 %v2095, %v2079
        %v3008 = vpack.c.b16 %v2096, %v2080
        %v3009 = vpack.c.b16 %v2113, %v2097
        %v3010 = vpack.c.b16 %v2114, %v2098
        %v3011 = vpack.c.b16 %v2115, %v2099
        %v3012 = vpack.c.b16 %v2116, %v2100
        %v3013 = vpack.c.b16 %v2117, %v2101
        %v3014 = vpack.c.b16 %v2118, %v2102
        %v3015 = vpack.c.b16 %v2119, %v2103
        %v3016 = vpack.c.b16 %v2120, %v2104
        %v3017 = vpack.c.b16 %v2121, %v2105
        %v3018 = vpack.c.b16 %v2122, %v2106
        %v3019 = vpack.c.b16 %v2123, %v2107
        %v3020 = vpack.c.b16 %v2124, %v2108
        %v3021 = vpack.c.b16 %v2125, %v2109
        %v3022 = vpack.c.b16 %v2126, %v2110
        %v3023 = vpack.c.b16 %v2127, %v2111
        %v3024 = vpack.c.b16 %v2128, %v2112
        %v3025 = vpack.c.b16 %v2145, %v2129
        %v3026 = vpack.c.b16 %v2146, %v2130
        %v3027 = vpack.c.b16 %v2147, %v2131
        %v3028 = vpack.c.b16 %v2148, %v2132
        %v3029 = vpack.c.b16 %v2149, %v2133
        %v3030 = vpack.c.b16 %v2150, %v2134
        %v3031 = vpack.c.b16 %v2151, %v2135
        %v3032 = vpack.c.b16 %v2152, %v2136
        %v3033 = vpack.c.b16 %v2153, %v2137
        %v3034 = vpack.c.b16 %v2154, %v2138
        %v3035 = vpack.c.b16 %v2155, %v2139
        %v3036 = vpack.c.b16 %v2156, %v2140
        %v3037 = vpack.c.b16 %v2157, %v2141
        %v3038 = vpack.c.b16 %v2158, %v2142
        %v3039 = vpack.c.b16 %v2159, %v2143
        %v3040 = vpack.c.b16 %v2160, %v2144
        %v3041 = vpack.c.b16 %v2177, %v2161
        %v3042 = vpack.c.b16 %v2178, %v2162
        %v3043 = vpack.c.b16 %v2179, %v2163
        %v3044 = vpack.c.b16 %v2180, %v2164
        %v3045 = vpack.c.b16 %v2181, %v2165
        %v3046 = vpack.c.b16 %v2182, %v2166
        %v3047 = vpack.c.b16 %v2183, %v2167
        %v3048 = vpack.c.b16 %v2184, %v2168
        %v3049 = vpack.c.b16 %v2185, %v2169
        %v3050 = vpack.c.b16 %v2186, %v2170
        %v3051 = vpack.c.b16 %v2187, %v2171
        %v3052 = vpack.c.b16 %v2188, %v2172
        %v3053 = vpack.c.b16 %v2189, %v2173
        %v3054 = vpack.c.b16 %v2190, %v2174
        %v3055 = vpack.c.b16 %v2191, %v2175
        %v3056 = vpack.c.b16 %v2192, %v2176
        %v3057 = vpack.c.b16 %v2209, %v2193
        %v3058 = vpack.c.b16 %v2210, %v2194
        %v3059 = vpack.c.b16 %v2211, %v2195
        %v3060 = vpack.c.b16 %v2212, %v2196
        %v3061 = vpack.c.b16 %v2213, %v2197
        %v3062 = vpack.c.b16 %v2214, %v2198
        %v3063 = vpack.c.b16 %v2215, %v2199
        %v3064 = vpack.c.b16 %v2216, %v2200
        %v3065 = vpack.c.b16 %v2217, %v2201
        %v3066 = vpack.c.b16 %v2218, %v2202
        %v3067 = vpack.c.b16 %v2219, %v2203
        %v3068 = vpack.c.b16 %v2220, %v2204
        %v3069 = vpack.c.b16 %v2221, %v2205
        %v3070 = vpack.c.b16 %v2222, %v2206
        %v3071 = vpack.c.b16 %v2223, %v2207
        %v3072 = vpack.c.b16 %v2224, %v2208
        %v3073 = vpack.c.b16 %v2241, %v2225
        %v3074 = vpack.c.b16 %v2242, %v2226
        %v3075 = vpack.c.b16 %v2243, %v2227
        %v3076 = vpack.c.b16 %v2244, %v2228
        %v3077 = vpack.c.b16 %v2245, %v2229
        %v3078 = vpack.c.b16 %v2246, %v2230
        %v3079 = vpack.c.b16 %v2247, %v2231
        %v3080 = vpack.c.b16 %v2248, %v2232
        %v3081 = vpack.c.b16 %v2249, %v2233
        %v3082 = vpack.c.b16 %v2250, %v2234
        %v3083 = vpack.c.b16 %v2251, %v2235
        %v3084 = vpack.c.b16 %v2252, %v2236
        %v3085 = vpack.c.b16 %v2253, %v2237
        %v3086 = vpack.c.b16 %v2254, %v2238
        %v3087 = vpack.c.b16 %v2255, %v2239
        %v3088 = vpack.c.b16 %v2256, %v2240
        %v3089 = vpack.c.b16 %v2273, %v2257
        %v3090 = vpack.c.b16 %v2274, %v2258
        %v3091 = vpack.c.b16 %v2275, %v2259
        %v3092 = vpack.c.b16 %v2276, %v2260
        %v3093 = vpack.c.b16 %v2277, %v2261
        %v3094 = vpack.c.b16 %v2278, %v2262
        %v3095 = vpack.c.b16 %v2279, %v2263
        %v3096 = vpack.c.b16 %v2280, %v2264
        %v3097 = vpack.c.b16 %v2281, %v2265
        %v3098 = vpack.c.b16 %v2282, %v2266
        %v3099 = vpack.c.b16 %v2283, %v2267
        %v3100 = vpack.c.b16 %v2284, %v2268
        %v3101 = vpack.c.b16 %v2285, %v2269
        %v3102 = vpack.c.b16 %v2286, %v2270
        %v3103 = vpack.c.b16 %v2287, %v2271
        %v3104 = vpack.c.b16 %v2288, %v2272
        %v3105 = vpack.c.b16 %v2305, %v2289
        %v3106 = vpack.c.b16 %v2306, %v2290
        %v3107 = vpack.c.b16 %v2307, %v2291
        %v3108 = vpack.c.b16 %v2308, %v2292
        %v3109 = vpack.c.b16 %v2309, %v2293
        %v3110 = vpack.c.b16 %v2310, %v2294
        %v3111 = vpack.c.b16 %v2311, %v2295
        %v3112 = vpack.c.b16 %v2312, %v2296
        %v3113 = vpack.c.b16 %v2313, %v2297
        %v3114 = vpack.c.b16 %v2314, %v2298
        %v3115 = vpack.c.b16 %v2315, %v2299
        %v3116 = vpack.c.b16 %v2316, %v2300
        %v3117 = vpack.c.b16 %v2317, %v2301
        %v3118 = vpack.c.b16 %v2318, %v2302
        %v3119 = vpack.c.b16 %v2319, %v2303
        %v3120 = vpack.c.b16 %v2320, %v2304
        %v3121 = vpack.c.b16 %v2337, %v2321
        %v3122 = vpack.c.b16 %v2338, %v2322
        %v3123 = vpack.c.b16 %v2339, %v2323
        %v3124 = vpack.c.b16 %v2340, %v2324
        %v3125 = vpack.c.b16 %v2341, %v2325
        %v3126 = vpack.c.b16 %v2342, %v2326
        %v3127 = vpack.c.b16 %v2343, %v2327
        %v3128 = vpack.c.b16 %v2344, %v2328
        %v3129 = vpack.c.b16 %v2345, %v2329
        %v3130 = vpack.c.b16 %v2346, %v2330
        %v3131 = vpack.c.b16 %v2347, %v2331
        %v3132 = vpack.c.b16 %v2348, %v2332
        %v3133 = vpack.c.b16 %v2349, %v2333
        %v3134 = vpack.c.b16 %v2350, %v2334
        %v3135 = vpack.c.b16 %v2351, %v2335
        %v3136 = vpack.c.b16 %v2352, %v2336
        %v3137 = vpack.c.b16 %v2369, %v2353
        %v3138 = vpack.c.b16 %v2370, %v2354
        %v3139 = vpack.c.b16 %v2371, %v2355
        %v3140 = vpack.c.b16 %v2372, %v2356
        %v3141 = vpack.c.b16 %v2373, %v2357
        %v3142 = vpack.c.b16 %v2374, %v2358
        %v3143 = vpack.c.b16 %v2375, %v2359
        %v3144 = vpack.c.b16 %v2376, %v2360
        %v3145 = vpack.c.b16 %v2377, %v2361
        %v3146 = vpack.c.b16 %v2378, %v2362
        %v3147 = vpack.c.b16 %v2379, %v2363
        %v3148 = vpack.c.b16 %v2380, %v2364
        %v3149 = vpack.c.b16 %v2381, %v2365
        %v3150 = vpack.c.b16 %v2382, %v2366
        %v3151 = vpack.c.b16 %v2383, %v2367
        %v3152 = vpack.c.b16 %v2384, %v2368
        %v3153 = vpack.c.b16 %v2401, %v2385
        %v3154 = vpack.c.b16 %v2402, %v2386
        %v3155 = vpack.c.b16 %v2403, %v2387
        %v3156 = vpack.c.b16 %v2404, %v2388
        %v3157 = vpack.c.b16 %v2405, %v2389
        %v3158 = vpack.c.b16 %v2406, %v2390
        %v3159 = vpack.c.b16 %v2407, %v2391
        %v3160 = vpack.c.b16 %v2408, %v2392
        %v3161 = vpack.c.b16 %v2409, %v2393
        %v3162 = vpack.c.b16 %v2410, %v2394
        %v3163 = vpack.c.b16 %v2411, %v2395
        %v3164 = vpack.c.b16 %v2412, %v2396
        %v3165 = vpack.c.b16 %v2413, %v2397
        %v3166 = vpack.c.b16 %v2414, %v2398
        %v3167 = vpack.c.b16 %v2415, %v2399
        %v3168 = vpack.c.b16 %v2416, %v2400
        %v3169 = vpack.c.b16 %v2433, %v2417
        %v3170 = vpack.c.b16 %v2434, %v2418
        %v3171 = vpack.c.b16 %v2435, %v2419
        %v3172 = vpack.c.b16 %v2436, %v2420
        %v3173 = vpack.c.b16 %v2437, %v2421
        %v3174 = vpack.c.b16 %v2438, %v2422
        %v3175 = vpack.c.b16 %v2439, %v2423
        %v3176 = vpack.c.b16 %v2440, %v2424
        %v3177 = vpack.c.b16 %v2441, %v2425
        %v3178 = vpack.c.b16 %v2442, %v2426
        %v3179 = vpack.c.b16 %v2443, %v2427
        %v3180 = vpack.c.b16 %v2444, %v2428
        %v3181 = vpack.c.b16 %v2445, %v2429
        %v3182 = vpack.c.b16 %v2446, %v2430
        %v3183 = vpack.c.b16 %v2447, %v2431
        %v3184 = vpack.c.b16 %v2448, %v2432
        %v3185 = vpack.c.b16 %v2465, %v2449
        %v3186 = vpack.c.b16 %v2466, %v2450
        %v3187 = vpack.c.b16 %v2467, %v2451
        %v3188 = vpack.c.b16 %v2468, %v2452
        %v3189 = vpack.c.b16 %v2469, %v2453
        %v3190 = vpack.c.b16 %v2470, %v2454
        %v3191 = vpack.c.b16 %v2471, %v2455
        %v3192 = vpack.c.b16 %v2472, %v2456
        %v3193 = vpack.c.b16 %v2473, %v2457
        %v3194 = vpack.c.b16 %v2474, %v2458
        %v3195 = vpack.c.b16 %v2475, %v2459
        %v3196 = vpack.c.b16 %v2476, %v2460
        %v3197 = vpack.c.b16 %v2477, %v2461
        %v3198 = vpack.c.b16 %v2478, %v2462
        %v3199 = vpack.c.b16 %v2479, %v2463
        %v3200 = vpack.c.b16 %v2480, %v2464
        %v3201 = vpack.c.b16 %v2497, %v2481
        %v3202 = vpack.c.b16 %v2498, %v2482
        %v3203 = vpack.c.b16 %v2499, %v2483
        %v3204 = vpack.c.b16 %v2500, %v2484
        %v3205 = vpack.c.b16 %v2501, %v2485
        %v3206 = vpack.c.b16 %v2502, %v2486
        %v3207 = vpack.c.b16 %v2503, %v2487
        %v3208 = vpack.c.b16 %v2504, %v2488
        %v3209 = vpack.c.b16 %v2505, %v2489
        %v3210 = vpack.c.b16 %v2506, %v2490
        %v3211 = vpack.c.b16 %v2507, %v2491
        %v3212 = vpack.c.b16 %v2508, %v2492
        %v3213 = vpack.c.b16 %v2509, %v2493
        %v3214 = vpack.c.b16 %v2510, %v2494
        %v3215 = vpack.c.b16 %v2511, %v2495
        %v3216 = vpack.c.b16 %v2512, %v2496
        %v3217 = vpack.c.b16 %v2529, %v2513
        %v3218 = vpack.c.b16 %v2530, %v2514
        %v3219 = vpack.c.b16 %v2531, %v2515
        %v3220 = vpack.c.b16 %v2532, %v2516
        %v3221 = vpack.c.b16 %v2533, %v2517
        %v3222 = vpack.c.b16 %v2534, %v2518
        %v3223 = vpack.c.b16 %v2535, %v2519
        %v3224 = vpack.c.b16 %v2536, %v2520
        %v3225 = vpack.c.b16 %v2537, %v2521
        %v3226 = vpack.c.b16 %v2538, %v2522
        %v3227 = vpack.c.b16 %v2539, %v2523
        %v3228 = vpack.c.b16 %v2540, %v2524
        %v3229 = vpack.c.b16 %v2541, %v2525
        %v3230 = vpack.c.b16 %v2542, %v2526
        %v3231 = vpack.c.b16 %v2543, %v2527
        %v3232 = vpack.c.b16 %v2544, %v2528
        %v3233 = vpack.c.b16 %v2561, %v2545
        %v3234 = vpack.c.b16 %v2562, %v2546
        %v3235 = vpack.c.b16 %v2563, %v2547
        %v3236 = vpack.c.b16 %v2564, %v2548
        %v3237 = vpack.c.b16 %v2565, %v2549
        %v3238 = vpack.c.b16 %v2566, %v2550
        %v3239 = vpack.c.b16 %v2567, %v2551
        %v3240 = vpack.c.b16 %v2568, %v2552
        %v3241 = vpack.c.b16 %v2569, %v2553
        %v3242 = vpack.c.b16 %v2570, %v2554
        %v3243 = vpack.c.b16 %v2571, %v2555
        %v3244 = vpack.c.b16 %v2572, %v2556
        %v3245 = vpack.c.b16 %v2573, %v2557
        %v3246 = vpack.c.b16 %v2574, %v2558
        %v3247 = vpack.c.b16 %v2575, %v2559
        %v3248 = vpack.c.b16 %v2576, %v2560
        %v3249 = vpack.c.b16 %v2593, %v2577
        %v3250 = vpack.c.b16 %v2594, %v2578
        %v3251 = vpack.c.b16 %v2595, %v2579
        %v3252 = vpack.c.b16 %v2596, %v2580
        %v3253 = vpack.c.b16 %v2597, %v2581
        %v3254 = vpack.c.b16 %v2598, %v2582
        %v3255 = vpack.c.b16 %v2599, %v2583
        %v3256 = vpack.c.b16 %v2600, %v2584
        %v3257 = vpack.c.b16 %v2601, %v2585
        %v3258 = vpack.c.b16 %v2602, %v2586
        %v3259 = vpack.c.b16 %v2603, %v2587
        %v3260 = vpack.c.b16 %v2604, %v2588
        %v3261 = vpack.c.b16 %v2605, %v2589
        %v3262 = vpack.c.b16 %v2606, %v2590
        %v3263 = vpack.c.b16 %v2607, %v2591
        %v3264 = vpack.c.b16 %v2608, %v2592
        %v3265 = vpack.c.b16 %v2625, %v2609
        %v3266 = vpack.c.b16 %v2626, %v2610
        %v3267 = vpack.c.b16 %v2627, %v2611
        %v3268 = vpack.c.b16 %v2628, %v2612
        %v3269 = vpack.c.b16 %v2629, %v2613
        %v3270 = vpack.c.b16 %v2630, %v2614
        %v3271 = vpack.c.b16 %v2631, %v2615
        %v3272 = vpack.c.b16 %v2632, %v2616
        %v3273 = vpack.c.b16 %v2633, %v2617
        %v3274 = vpack.c.b16 %v2634, %v2618
        %v3275 = vpack.c.b16 %v2635, %v2619
        %v3276 = vpack.c.b16 %v2636, %v2620
        %v3277 = vpack.c.b16 %v2637, %v2621
        %v3278 = vpack.c.b16 %v2638, %v2622
        %v3279 = vpack.c.b16 %v2639, %v2623
        %v3280 = vpack.c.b16 %v2640, %v2624
        %v3281 = vpack.c.b16 %v2657, %v2641
        %v3282 = vpack.c.b16 %v2658, %v2642
        %v3283 = vpack.c.b16 %v2659, %v2643
        %v3284 = vpack.c.b16 %v2660, %v2644
        %v3285 = vpack.c.b16 %v2661, %v2645
        %v3286 = vpack.c.b16 %v2662, %v2646
        %v3287 = vpack.c.b16 %v2663, %v2647
        %v3288 = vpack.c.b16 %v2664, %v2648
        %v3289 = vpack.c.b16 %v2665, %v2649
        %v3290 = vpack.c.b16 %v2666, %v2650
        %v3291 = vpack.c.b16 %v2667, %v2651
        %v3292 = vpack.c.b16 %v2668, %v2652
        %v3293 = vpack.c.b16 %v2669, %v2653
        %v3294 = vpack.c.b16 %v2670, %v2654
        %v3295 = vpack.c.b16 %v2671, %v2655
        %v3296 = vpack.c.b16 %v2672, %v2656
        %v3297 = vpack.c.b16 %v2689, %v2673
        %v3298 = vpack.c.b16 %v2690, %v2674
        %v3299 = vpack.c.b16 %v2691, %v2675
        %v3300 = vpack.c.b16 %v2692, %v2676
        %v3301 = vpack.c.b16 %v2693, %v2677
        %v3302 = vpack.c.b16 %v2694, %v2678
        %v3303 = vpack.c.b16 %v2695, %v2679
        %v3304 = vpack.c.b16 %v2696, %v2680
        %v3305 = vpack.c.b16 %v2697, %v2681
        %v3306 = vpack.c.b16 %v2698, %v2682
        %v3307 = vpack.c.b16 %v2699, %v2683
        %v3308 = vpack.c.b16 %v2700, %v2684
        %v3309 = vpack.c.b16 %v2701, %v2685
        %v3310 = vpack.c.b16 %v2702, %v2686
        %v3311 = vpack.c.b16 %v2703, %v2687
        %v3312 = vpack.c.b16 %v2704, %v2688
        %v3313 = vpack.c.b16 %v2721, %v2705
        %v3314 = vpack.c.b16 %v2722, %v2706
        %v3315 = vpack.c.b16 %v2723, %v2707
        %v3316 = vpack.c.b16 %v2724, %v2708
        %v3317 = vpack.c.b16 %v2725, %v2709
        %v3318 = vpack.c.b16 %v2726, %v2710
        %v3319 = vpack.c.b16 %v2727, %v2711
        %v3320 = vpack.c.b16 %v2728, %v2712
        %v3321 = vpack.c.b16 %v2729, %v2713
        %v3322 = vpack.c.b16 %v2730, %v2714
        %v3323 = vpack.c.b16 %v2731, %v2715
        %v3324 = vpack.c.b16 %v2732, %v2716
        %v3325 = vpack.c.b16 %v2733, %v2717
        %v3326 = vpack.c.b16 %v2734, %v2718
        %v3327 = vpack.c.b16 %v2735, %v2719
        %v3328 = vpack.c.b16 %v2736, %v2720
        %v3329 = vpack.c.b16 %v2753, %v2737
        %v3330 = vpack.c.b16 %v2754, %v2738
        %v3331 = vpack.c.b16 %v2755, %v2739
        %v3332 = vpack.c.b16 %v2756, %v2740
        %v3333 = vpack.c.b16 %v2757, %v2741
        %v3334 = vpack.c.b16 %v2758, %v2742
        %v3335 = vpack.c.b16 %v2759, %v2743
        %v3336 = vpack.c.b16 %v2760, %v2744
        %v3337 = vpack.c.b16 %v2761, %v2745
        %v3338 = vpack.c.b16 %v2762, %v2746
        %v3339 = vpack.c.b16 %v2763, %v2747
        %v3340 = vpack.c.b16 %v2764, %v2748
        %v3341 = vpack.c.b16 %v2765, %v2749
        %v3342 = vpack.c.b16 %v2766, %v2750
        %v3343 = vpack.c.b16 %v2767, %v2751
        %v3344 = vpack.c.b16 %v2768, %v2752
        %v3345 = vpack.c.b16 %v2785, %v2769
        %v3346 = vpack.c.b16 %v2786, %v2770
        %v3347 = vpack.c.b16 %v2787, %v2771
        %v3348 = vpack.c.b16 %v2788, %v2772
        %v3349 = vpack.c.b16 %v2789, %v2773
        %v3350 = vpack.c.b16 %v2790, %v2774
        %v3351 = vpack.c.b16 %v2791, %v2775
        %v3352 = vpack.c.b16 %v2792, %v2776
        %v3353 = vpack.c.b16 %v2793, %v2777
        %v3354 = vpack.c.b16 %v2794, %v2778
        %v3355 = vpack.c.b16 %v2795, %v2779
        %v3356 = vpack.c.b16 %v2796, %v2780
        %v3357 = vpack.c.b16 %v2797, %v2781
        %v3358 = vpack.c.b16 %v2798, %v2782
        %v3359 = vpack.c.b16 %v2799, %v2783
        %v3360 = vpack.c.b16 %v2800, %v2784
        %v3361 = vpack.c.b16 %v2817, %v2801
        %v3362 = vpack.c.b16 %v2818, %v2802
        %v3363 = vpack.c.b16 %v2819, %v2803
        %v3364 = vpack.c.b16 %v2820, %v2804
        %v3365 = vpack.c.b16 %v2821, %v2805
        %v3366 = vpack.c.b16 %v2822, %v2806
        %v3367 = vpack.c.b16 %v2823, %v2807
        %v3368 = vpack.c.b16 %v2824, %v2808
        %v3369 = vpack.c.b16 %v2825, %v2809
        %v3370 = vpack.c.b16 %v2826, %v2810
        %v3371 = vpack.c.b16 %v2827, %v2811
        %v3372 = vpack.c.b16 %v2828, %v2812
        %v3373 = vpack.c.b16 %v2829, %v2813
        %v3374 = vpack.c.b16 %v2830, %v2814
        %v3375 = vpack.c.b16 %v2831, %v2815
        %v3376 = vpack.c.b16 %v2832, %v2816
        %v3377 = vpack.c.b16 %v2849, %v2833
        %v3378 = vpack.c.b16 %v2850, %v2834
        %v3379 = vpack.c.b16 %v2851, %v2835
        %v3380 = vpack.c.b16 %v2852, %v2836
        %v3381 = vpack.c.b16 %v2853, %v2837
        %v3382 = vpack.c.b16 %v2854, %v2838
        %v3383 = vpack.c.b16 %v2855, %v2839
        %v3384 = vpack.c.b16 %v2856, %v2840
        %v3385 = vpack.c.b16 %v2857, %v2841
        %v3386 = vpack.c.b16 %v2858, %v2842
        %v3387 = vpack.c.b16 %v2859, %v2843
        %v3388 = vpack.c.b16 %v2860, %v2844
        %v3389 = vpack.c.b16 %v2861, %v2845
        %v3390 = vpack.c.b16 %v2862, %v2846
        %v3391 = vpack.c.b16 %v2863, %v2847
        %v3392 = vpack.c.b16 %v2864, %v2848
        %v3393 = vpack.c.b16 %v2881, %v2865
        %v3394 = vpack.c.b16 %v2882, %v2866
        %v3395 = vpack.c.b16 %v2883, %v2867
        %v3396 = vpack.c.b16 %v2884, %v2868
        %v3397 = vpack.c.b16 %v2885, %v2869
        %v3398 = vpack.c.b16 %v2886, %v2870
        %v3399 = vpack.c.b16 %v2887, %v2871
        %v3400 = vpack.c.b16 %v2888, %v2872
        %v3401 = vpack.c.b16 %v2889, %v2873
        %v3402 = vpack.c.b16 %v2890, %v2874
        %v3403 = vpack.c.b16 %v2891, %v2875
        %v3404 = vpack.c.b16 %v2892, %v2876
        %v3405 = vpack.c.b16 %v2893, %v2877
        %v3406 = vpack.c.b16 %v2894, %v2878
        %v3407 = vpack.c.b16 %v2895, %v2879
        %v3408 = vpack.c.b16 %v2896, %v2880
        %3921 = vmatpush.bf16.msra.mxu0 %v3009
        %3922 = vmatpush.bf16.msra.mxu0 %v2993
        %3923 = vmatpush.bf16.msra.mxu0 %v2977
        %3924 = vmatpush.bf16.msra.mxu0 %v2961
        %3925 = vmatpush.bf16.msra.mxu0 %v2945
        %3926 = vmatpush.bf16.msra.mxu0 %v2929
        %3927 = vmatpush.bf16.msra.mxu0 %v2913
        %3928 = vmatpush.bf16.msra.mxu0 %v2897
        %3929 = vmatmul.bf16.gmra.mxu0 %v1353
        %v3930 = vpop.f32.mrf.mxu0
        %v3931 = vadd.f32 0.0, %v3930
        %v3932 = vpop.f32.mrf.mxu0
        %3933 = vdwg.mxu0
        %3934 = vmatpush.bf16.msra.mxu0 %v3137
        %3935 = vmatpush.bf16.msra.mxu0 %v3121
        %3936 = vmatpush.bf16.msra.mxu0 %v3105
        %3937 = vmatpush.bf16.msra.mxu0 %v3089
        %3938 = vmatpush.bf16.msra.mxu0 %v3073
        %3939 = vmatpush.bf16.msra.mxu0 %v3057
        %3940 = vmatpush.bf16.msra.mxu0 %v3041
        %3941 = vmatpush.bf16.msra.mxu0 %v3025
        %3942 = vmatmul.bf16.gmra.mxu0 %v1354
        %v3943 = vpop.f32.mrf.mxu0
        %v3944 = vadd.f32 %v3931, %v3943
        %v3945 = vpop.f32.mrf.mxu0
        %3946 = vdwg.mxu0
        %3947 = vmatpush.bf16.msra.mxu0 %v3265
        %3948 = vmatpush.bf16.msra.mxu0 %v3249
        %3949 = vmatpush.bf16.msra.mxu0 %v3233
        %3950 = vmatpush.bf16.msra.mxu0 %v3217
        %3951 = vmatpush.bf16.msra.mxu0 %v3201
        %3952 = vmatpush.bf16.msra.mxu0 %v3185
        %3953 = vmatpush.bf16.msra.mxu0 %v3169
        %3954 = vmatpush.bf16.msra.mxu0 %v3153
        %3955 = vmatmul.bf16.gmra.mxu0 %v1355
        %v3956 = vpop.f32.mrf.mxu0
        %v3957 = vadd.f32 %v3944, %v3956
        %v3958 = vpop.f32.mrf.mxu0
        %3959 = vdwg.mxu0
        %3960 = vmatpush.bf16.msra.mxu0 %v3393
        %3961 = vmatpush.bf16.msra.mxu0 %v3377
        %3962 = vmatpush.bf16.msra.mxu0 %v3361
        %3963 = vmatpush.bf16.msra.mxu0 %v3345
        %3964 = vmatpush.bf16.msra.mxu0 %v3329
        %3965 = vmatpush.bf16.msra.mxu0 %v3313
        %3966 = vmatpush.bf16.msra.mxu0 %v3297
        %3967 = vmatpush.bf16.msra.mxu0 %v3281
        %3968 = vmatmul.bf16.gmra.mxu0 %v1356
        %v3969 = vpop.f32.mrf.mxu0
        %v3970 = vadd.f32 %v3957, %v3969
        %v3971 = vpop.f32.mrf.mxu0
        %3972 = vdwg.mxu0
        %3973 = vmatpush.bf16.msra.mxu0 %v3010
        %3974 = vmatpush.bf16.msra.mxu0 %v2994
        %3975 = vmatpush.bf16.msra.mxu0 %v2978
        %3976 = vmatpush.bf16.msra.mxu0 %v2962
        %3977 = vmatpush.bf16.msra.mxu0 %v2946
        %3978 = vmatpush.bf16.msra.mxu0 %v2930
        %3979 = vmatpush.bf16.msra.mxu0 %v2914
        %3980 = vmatpush.bf16.msra.mxu0 %v2898
        %3981 = vmatmul.bf16.gmra.mxu0 %v1353
        %v3982 = vpop.f32.mrf.mxu0
        %v3983 = vadd.f32 0.0, %v3982
        %v3984 = vpop.f32.mrf.mxu0
        %3985 = vdwg.mxu0
        %3986 = vmatpush.bf16.msra.mxu0 %v3138
        %3987 = vmatpush.bf16.msra.mxu0 %v3122
        %3988 = vmatpush.bf16.msra.mxu0 %v3106
        %3989 = vmatpush.bf16.msra.mxu0 %v3090
        %3990 = vmatpush.bf16.msra.mxu0 %v3074
        %3991 = vmatpush.bf16.msra.mxu0 %v3058
        %3992 = vmatpush.bf16.msra.mxu0 %v3042
        %3993 = vmatpush.bf16.msra.mxu0 %v3026
        %3994 = vmatmul.bf16.gmra.mxu0 %v1354
        %v3995 = vpop.f32.mrf.mxu0
        %v3996 = vadd.f32 %v3983, %v3995
        %v3997 = vpop.f32.mrf.mxu0
        %3998 = vdwg.mxu0
        %3999 = vmatpush.bf16.msra.mxu0 %v3266
        %4000 = vmatpush.bf16.msra.mxu0 %v3250
        %4001 = vmatpush.bf16.msra.mxu0 %v3234
        %4002 = vmatpush.bf16.msra.mxu0 %v3218
        %4003 = vmatpush.bf16.msra.mxu0 %v3202
        %4004 = vmatpush.bf16.msra.mxu0 %v3186
        %4005 = vmatpush.bf16.msra.mxu0 %v3170
        %4006 = vmatpush.bf16.msra.mxu0 %v3154
        %4007 = vmatmul.bf16.gmra.mxu0 %v1355
        %v4008 = vpop.f32.mrf.mxu0
        %v4009 = vadd.f32 %v3996, %v4008
        %v4010 = vpop.f32.mrf.mxu0
        %4011 = vdwg.mxu0
        %4012 = vmatpush.bf16.msra.mxu0 %v3394
        %4013 = vmatpush.bf16.msra.mxu0 %v3378
        %4014 = vmatpush.bf16.msra.mxu0 %v3362
        %4015 = vmatpush.bf16.msra.mxu0 %v3346
        %4016 = vmatpush.bf16.msra.mxu0 %v3330
        %4017 = vmatpush.bf16.msra.mxu0 %v3314
        %4018 = vmatpush.bf16.msra.mxu0 %v3298
        %4019 = vmatpush.bf16.msra.mxu0 %v3282
        %4020 = vmatmul.bf16.gmra.mxu0 %v1356
        %v4021 = vpop.f32.mrf.mxu0
        %v4022 = vadd.f32 %v4009, %v4021
        %v4023 = vpop.f32.mrf.mxu0
        %4024 = vdwg.mxu0
        %4025 = vmatpush.bf16.msra.mxu0 %v3011
        %4026 = vmatpush.bf16.msra.mxu0 %v2995
        %4027 = vmatpush.bf16.msra.mxu0 %v2979
        %4028 = vmatpush.bf16.msra.mxu0 %v2963
        %4029 = vmatpush.bf16.msra.mxu0 %v2947
        %4030 = vmatpush.bf16.msra.mxu0 %v2931
        %4031 = vmatpush.bf16.msra.mxu0 %v2915
        %4032 = vmatpush.bf16.msra.mxu0 %v2899
        %4033 = vmatmul.bf16.gmra.mxu0 %v1353
        %v4034 = vpop.f32.mrf.mxu0
        %v4035 = vadd.f32 0.0, %v4034
        %v4036 = vpop.f32.mrf.mxu0
        %4037 = vdwg.mxu0
        %4038 = vmatpush.bf16.msra.mxu0 %v3139
        %4039 = vmatpush.bf16.msra.mxu0 %v3123
        %4040 = vmatpush.bf16.msra.mxu0 %v3107
        %4041 = vmatpush.bf16.msra.mxu0 %v3091
        %4042 = vmatpush.bf16.msra.mxu0 %v3075
        %4043 = vmatpush.bf16.msra.mxu0 %v3059
        %4044 = vmatpush.bf16.msra.mxu0 %v3043
        %4045 = vmatpush.bf16.msra.mxu0 %v3027
        %4046 = vmatmul.bf16.gmra.mxu0 %v1354
        %v4047 = vpop.f32.mrf.mxu0
        %v4048 = vadd.f32 %v4035, %v4047
        %v4049 = vpop.f32.mrf.mxu0
        %4050 = vdwg.mxu0
        %4051 = vmatpush.bf16.msra.mxu0 %v3267
        %4052 = vmatpush.bf16.msra.mxu0 %v3251
        %4053 = vmatpush.bf16.msra.mxu0 %v3235
        %4054 = vmatpush.bf16.msra.mxu0 %v3219
        %4055 = vmatpush.bf16.msra.mxu0 %v3203
        %4056 = vmatpush.bf16.msra.mxu0 %v3187
        %4057 = vmatpush.bf16.msra.mxu0 %v3171
        %4058 = vmatpush.bf16.msra.mxu0 %v3155
        %4059 = vmatmul.bf16.gmra.mxu0 %v1355
        %v4060 = vpop.f32.mrf.mxu0
        %v4061 = vadd.f32 %v4048, %v4060
        %v4062 = vpop.f32.mrf.mxu0
        %4063 = vdwg.mxu0
        %4064 = vmatpush.bf16.msra.mxu0 %v3395
        %4065 = vmatpush.bf16.msra.mxu0 %v3379
        %4066 = vmatpush.bf16.msra.mxu0 %v3363
        %4067 = vmatpush.bf16.msra.mxu0 %v3347
        %4068 = vmatpush.bf16.msra.mxu0 %v3331
        %4069 = vmatpush.bf16.msra.mxu0 %v3315
        %4070 = vmatpush.bf16.msra.mxu0 %v3299
        %4071 = vmatpush.bf16.msra.mxu0 %v3283
        %4072 = vmatmul.bf16.gmra.mxu0 %v1356
        %v4073 = vpop.f32.mrf.mxu0
        %v4074 = vadd.f32 %v4061, %v4073
        %v4075 = vpop.f32.mrf.mxu0
        %4076 = vdwg.mxu0
        %4077 = vmatpush.bf16.msra.mxu0 %v3012
        %4078 = vmatpush.bf16.msra.mxu0 %v2996
        %4079 = vmatpush.bf16.msra.mxu0 %v2980
        %4080 = vmatpush.bf16.msra.mxu0 %v2964
        %4081 = vmatpush.bf16.msra.mxu0 %v2948
        %4082 = vmatpush.bf16.msra.mxu0 %v2932
        %4083 = vmatpush.bf16.msra.mxu0 %v2916
        %4084 = vmatpush.bf16.msra.mxu0 %v2900
        %4085 = vmatmul.bf16.gmra.mxu0 %v1353
        %v4086 = vpop.f32.mrf.mxu0
        %v4087 = vadd.f32 0.0, %v4086
        %v4088 = vpop.f32.mrf.mxu0
        %4089 = vdwg.mxu0
        %4090 = vmatpush.bf16.msra.mxu0 %v3140
        %4091 = vmatpush.bf16.msra.mxu0 %v3124
        %4092 = vmatpush.bf16.msra.mxu0 %v3108
        %4093 = vmatpush.bf16.msra.mxu0 %v3092
        %4094 = vmatpush.bf16.msra.mxu0 %v3076
        %4095 = vmatpush.bf16.msra.mxu0 %v3060
        %4096 = vmatpush.bf16.msra.mxu0 %v3044
        %4097 = vmatpush.bf16.msra.mxu0 %v3028
        %4098 = vmatmul.bf16.gmra.mxu0 %v1354
        %v4099 = vpop.f32.mrf.mxu0
        %v4100 = vadd.f32 %v4087, %v4099
        %v4101 = vpop.f32.mrf.mxu0
        %4102 = vdwg.mxu0
        %4103 = vmatpush.bf16.msra.mxu0 %v3268
        %4104 = vmatpush.bf16.msra.mxu0 %v3252
        %4105 = vmatpush.bf16.msra.mxu0 %v3236
        %4106 = vmatpush.bf16.msra.mxu0 %v3220
        %4107 = vmatpush.bf16.msra.mxu0 %v3204
        %4108 = vmatpush.bf16.msra.mxu0 %v3188
        %4109 = vmatpush.bf16.msra.mxu0 %v3172
        %4110 = vmatpush.bf16.msra.mxu0 %v3156
        %4111 = vmatmul.bf16.gmra.mxu0 %v1355
        %v4112 = vpop.f32.mrf.mxu0
        %v4113 = vadd.f32 %v4100, %v4112
        %v4114 = vpop.f32.mrf.mxu0
        %4115 = vdwg.mxu0
        %4116 = vmatpush.bf16.msra.mxu0 %v3396
        %4117 = vmatpush.bf16.msra.mxu0 %v3380
        %4118 = vmatpush.bf16.msra.mxu0 %v3364
        %4119 = vmatpush.bf16.msra.mxu0 %v3348
        %4120 = vmatpush.bf16.msra.mxu0 %v3332
        %4121 = vmatpush.bf16.msra.mxu0 %v3316
        %4122 = vmatpush.bf16.msra.mxu0 %v3300
        %4123 = vmatpush.bf16.msra.mxu0 %v3284
        %4124 = vmatmul.bf16.gmra.mxu0 %v1356
        %v4125 = vpop.f32.mrf.mxu0
        %v4126 = vadd.f32 %v4113, %v4125
        %v4127 = vpop.f32.mrf.mxu0
        %4128 = vdwg.mxu0
        %4129 = vmatpush.bf16.msra.mxu0 %v3013
        %4130 = vmatpush.bf16.msra.mxu0 %v2997
        %4131 = vmatpush.bf16.msra.mxu0 %v2981
        %4132 = vmatpush.bf16.msra.mxu0 %v2965
        %4133 = vmatpush.bf16.msra.mxu0 %v2949
        %4134 = vmatpush.bf16.msra.mxu0 %v2933
        %4135 = vmatpush.bf16.msra.mxu0 %v2917
        %4136 = vmatpush.bf16.msra.mxu0 %v2901
        %4137 = vmatmul.bf16.gmra.mxu0 %v1353
        %v4138 = vpop.f32.mrf.mxu0
        %v4139 = vadd.f32 0.0, %v4138
        %v4140 = vpop.f32.mrf.mxu0
        %4141 = vdwg.mxu0
        %4142 = vmatpush.bf16.msra.mxu0 %v3141
        %4143 = vmatpush.bf16.msra.mxu0 %v3125
        %4144 = vmatpush.bf16.msra.mxu0 %v3109
        %4145 = vmatpush.bf16.msra.mxu0 %v3093
        %4146 = vmatpush.bf16.msra.mxu0 %v3077
        %4147 = vmatpush.bf16.msra.mxu0 %v3061
        %4148 = vmatpush.bf16.msra.mxu0 %v3045
        %4149 = vmatpush.bf16.msra.mxu0 %v3029
        %4150 = vmatmul.bf16.gmra.mxu0 %v1354
        %v4151 = vpop.f32.mrf.mxu0
        %v4152 = vadd.f32 %v4139, %v4151
        %v4153 = vpop.f32.mrf.mxu0
        %4154 = vdwg.mxu0
        %4155 = vmatpush.bf16.msra.mxu0 %v3269
        %4156 = vmatpush.bf16.msra.mxu0 %v3253
        %4157 = vmatpush.bf16.msra.mxu0 %v3237
        %4158 = vmatpush.bf16.msra.mxu0 %v3221
        %4159 = vmatpush.bf16.msra.mxu0 %v3205
        %4160 = vmatpush.bf16.msra.mxu0 %v3189
        %4161 = vmatpush.bf16.msra.mxu0 %v3173
        %4162 = vmatpush.bf16.msra.mxu0 %v3157
        %4163 = vmatmul.bf16.gmra.mxu0 %v1355
        %v4164 = vpop.f32.mrf.mxu0
        %v4165 = vadd.f32 %v4152, %v4164
        %v4166 = vpop.f32.mrf.mxu0
        %4167 = vdwg.mxu0
        %4168 = vmatpush.bf16.msra.mxu0 %v3397
        %4169 = vmatpush.bf16.msra.mxu0 %v3381
        %4170 = vmatpush.bf16.msra.mxu0 %v3365
        %4171 = vmatpush.bf16.msra.mxu0 %v3349
        %4172 = vmatpush.bf16.msra.mxu0 %v3333
        %4173 = vmatpush.bf16.msra.mxu0 %v3317
        %4174 = vmatpush.bf16.msra.mxu0 %v3301
        %4175 = vmatpush.bf16.msra.mxu0 %v3285
        %4176 = vmatmul.bf16.gmra.mxu0 %v1356
        %v4177 = vpop.f32.mrf.mxu0
        %v4178 = vadd.f32 %v4165, %v4177
        %v4179 = vpop.f32.mrf.mxu0
        %4180 = vdwg.mxu0
        %4181 = vmatpush.bf16.msra.mxu0 %v3014
        %4182 = vmatpush.bf16.msra.mxu0 %v2998
        %4183 = vmatpush.bf16.msra.mxu0 %v2982
        %4184 = vmatpush.bf16.msra.mxu0 %v2966
        %4185 = vmatpush.bf16.msra.mxu0 %v2950
        %4186 = vmatpush.bf16.msra.mxu0 %v2934
        %4187 = vmatpush.bf16.msra.mxu0 %v2918
        %4188 = vmatpush.bf16.msra.mxu0 %v2902
        %4189 = vmatmul.bf16.gmra.mxu0 %v1353
        %v4190 = vpop.f32.mrf.mxu0
        %v4191 = vadd.f32 0.0, %v4190
        %v4192 = vpop.f32.mrf.mxu0
        %4193 = vdwg.mxu0
        %4194 = vmatpush.bf16.msra.mxu0 %v3142
        %4195 = vmatpush.bf16.msra.mxu0 %v3126
        %4196 = vmatpush.bf16.msra.mxu0 %v3110
        %4197 = vmatpush.bf16.msra.mxu0 %v3094
        %4198 = vmatpush.bf16.msra.mxu0 %v3078
        %4199 = vmatpush.bf16.msra.mxu0 %v3062
        %4200 = vmatpush.bf16.msra.mxu0 %v3046
        %4201 = vmatpush.bf16.msra.mxu0 %v3030
        %4202 = vmatmul.bf16.gmra.mxu0 %v1354
        %v4203 = vpop.f32.mrf.mxu0
        %v4204 = vadd.f32 %v4191, %v4203
        %v4205 = vpop.f32.mrf.mxu0
        %4206 = vdwg.mxu0
        %4207 = vmatpush.bf16.msra.mxu0 %v3270
        %4208 = vmatpush.bf16.msra.mxu0 %v3254
        %4209 = vmatpush.bf16.msra.mxu0 %v3238
        %4210 = vmatpush.bf16.msra.mxu0 %v3222
        %4211 = vmatpush.bf16.msra.mxu0 %v3206
        %4212 = vmatpush.bf16.msra.mxu0 %v3190
        %4213 = vmatpush.bf16.msra.mxu0 %v3174
        %4214 = vmatpush.bf16.msra.mxu0 %v3158
        %4215 = vmatmul.bf16.gmra.mxu0 %v1355
        %v4216 = vpop.f32.mrf.mxu0
        %v4217 = vadd.f32 %v4204, %v4216
        %v4218 = vpop.f32.mrf.mxu0
        %4219 = vdwg.mxu0
        %4220 = vmatpush.bf16.msra.mxu0 %v3398
        %4221 = vmatpush.bf16.msra.mxu0 %v3382
        %4222 = vmatpush.bf16.msra.mxu0 %v3366
        %4223 = vmatpush.bf16.msra.mxu0 %v3350
        %4224 = vmatpush.bf16.msra.mxu0 %v3334
        %4225 = vmatpush.bf16.msra.mxu0 %v3318
        %4226 = vmatpush.bf16.msra.mxu0 %v3302
        %4227 = vmatpush.bf16.msra.mxu0 %v3286
        %4228 = vmatmul.bf16.gmra.mxu0 %v1356
        %v4229 = vpop.f32.mrf.mxu0
        %v4230 = vadd.f32 %v4217, %v4229
        %v4231 = vpop.f32.mrf.mxu0
        %4232 = vdwg.mxu0
        %4233 = vmatpush.bf16.msra.mxu0 %v3015
        %4234 = vmatpush.bf16.msra.mxu0 %v2999
        %4235 = vmatpush.bf16.msra.mxu0 %v2983
        %4236 = vmatpush.bf16.msra.mxu0 %v2967
        %4237 = vmatpush.bf16.msra.mxu0 %v2951
        %4238 = vmatpush.bf16.msra.mxu0 %v2935
        %4239 = vmatpush.bf16.msra.mxu0 %v2919
        %4240 = vmatpush.bf16.msra.mxu0 %v2903
        %4241 = vmatmul.bf16.gmra.mxu0 %v1353
        %v4242 = vpop.f32.mrf.mxu0
        %v4243 = vadd.f32 0.0, %v4242
        %v4244 = vpop.f32.mrf.mxu0
        %4245 = vdwg.mxu0
        %4246 = vmatpush.bf16.msra.mxu0 %v3143
        %4247 = vmatpush.bf16.msra.mxu0 %v3127
        %4248 = vmatpush.bf16.msra.mxu0 %v3111
        %4249 = vmatpush.bf16.msra.mxu0 %v3095
        %4250 = vmatpush.bf16.msra.mxu0 %v3079
        %4251 = vmatpush.bf16.msra.mxu0 %v3063
        %4252 = vmatpush.bf16.msra.mxu0 %v3047
        %4253 = vmatpush.bf16.msra.mxu0 %v3031
        %4254 = vmatmul.bf16.gmra.mxu0 %v1354
        %v4255 = vpop.f32.mrf.mxu0
        %v4256 = vadd.f32 %v4243, %v4255
        %v4257 = vpop.f32.mrf.mxu0
        %4258 = vdwg.mxu0
        %4259 = vmatpush.bf16.msra.mxu0 %v3271
        %4260 = vmatpush.bf16.msra.mxu0 %v3255
        %4261 = vmatpush.bf16.msra.mxu0 %v3239
        %4262 = vmatpush.bf16.msra.mxu0 %v3223
        %4263 = vmatpush.bf16.msra.mxu0 %v3207
        %4264 = vmatpush.bf16.msra.mxu0 %v3191
        %4265 = vmatpush.bf16.msra.mxu0 %v3175
        %4266 = vmatpush.bf16.msra.mxu0 %v3159
        %4267 = vmatmul.bf16.gmra.mxu0 %v1355
        %v4268 = vpop.f32.mrf.mxu0
        %v4269 = vadd.f32 %v4256, %v4268
        %v4270 = vpop.f32.mrf.mxu0
        %4271 = vdwg.mxu0
        %4272 = vmatpush.bf16.msra.mxu0 %v3399
        %4273 = vmatpush.bf16.msra.mxu0 %v3383
        %4274 = vmatpush.bf16.msra.mxu0 %v3367
        %4275 = vmatpush.bf16.msra.mxu0 %v3351
        %4276 = vmatpush.bf16.msra.mxu0 %v3335
        %4277 = vmatpush.bf16.msra.mxu0 %v3319
        %4278 = vmatpush.bf16.msra.mxu0 %v3303
        %4279 = vmatpush.bf16.msra.mxu0 %v3287
        %4280 = vmatmul.bf16.gmra.mxu0 %v1356
        %v4281 = vpop.f32.mrf.mxu0
        %v4282 = vadd.f32 %v4269, %v4281
        %v4283 = vpop.f32.mrf.mxu0
        %4284 = vdwg.mxu0
        %4285 = vmatpush.bf16.msra.mxu0 %v3016
        %4286 = vmatpush.bf16.msra.mxu0 %v3000
        %4287 = vmatpush.bf16.msra.mxu0 %v2984
        %4288 = vmatpush.bf16.msra.mxu0 %v2968
        %4289 = vmatpush.bf16.msra.mxu0 %v2952
        %4290 = vmatpush.bf16.msra.mxu0 %v2936
        %4291 = vmatpush.bf16.msra.mxu0 %v2920
        %4292 = vmatpush.bf16.msra.mxu0 %v2904
        %4293 = vmatmul.bf16.gmra.mxu0 %v1353
        %v4294 = vpop.f32.mrf.mxu0
        %v4295 = vadd.f32 0.0, %v4294
        %v4296 = vpop.f32.mrf.mxu0
        %4297 = vdwg.mxu0
        %4298 = vmatpush.bf16.msra.mxu0 %v3144
        %4299 = vmatpush.bf16.msra.mxu0 %v3128
        %4300 = vmatpush.bf16.msra.mxu0 %v3112
        %4301 = vmatpush.bf16.msra.mxu0 %v3096
        %4302 = vmatpush.bf16.msra.mxu0 %v3080
        %4303 = vmatpush.bf16.msra.mxu0 %v3064
        %4304 = vmatpush.bf16.msra.mxu0 %v3048
        %4305 = vmatpush.bf16.msra.mxu0 %v3032
        %4306 = vmatmul.bf16.gmra.mxu0 %v1354
        %v4307 = vpop.f32.mrf.mxu0
        %v4308 = vadd.f32 %v4295, %v4307
        %v4309 = vpop.f32.mrf.mxu0
        %4310 = vdwg.mxu0
        %4311 = vmatpush.bf16.msra.mxu0 %v3272
        %4312 = vmatpush.bf16.msra.mxu0 %v3256
        %4313 = vmatpush.bf16.msra.mxu0 %v3240
        %4314 = vmatpush.bf16.msra.mxu0 %v3224
        %4315 = vmatpush.bf16.msra.mxu0 %v3208
        %4316 = vmatpush.bf16.msra.mxu0 %v3192
        %4317 = vmatpush.bf16.msra.mxu0 %v3176
        %4318 = vmatpush.bf16.msra.mxu0 %v3160
        %4319 = vmatmul.bf16.gmra.mxu0 %v1355
        %v4320 = vpop.f32.mrf.mxu0
        %v4321 = vadd.f32 %v4308, %v4320
        %v4322 = vpop.f32.mrf.mxu0
        %4323 = vdwg.mxu0
        %4324 = vmatpush.bf16.msra.mxu0 %v3400
        %4325 = vmatpush.bf16.msra.mxu0 %v3384
        %4326 = vmatpush.bf16.msra.mxu0 %v3368
        %4327 = vmatpush.bf16.msra.mxu0 %v3352
        %4328 = vmatpush.bf16.msra.mxu0 %v3336
        %4329 = vmatpush.bf16.msra.mxu0 %v3320
        %4330 = vmatpush.bf16.msra.mxu0 %v3304
        %4331 = vmatpush.bf16.msra.mxu0 %v3288
        %4332 = vmatmul.bf16.gmra.mxu0 %v1356
        %v4333 = vpop.f32.mrf.mxu0
        %v4334 = vadd.f32 %v4321, %v4333
        %v4335 = vpop.f32.mrf.mxu0
        %4336 = vdwg.mxu0
        %4337 = vmatpush.bf16.msra.mxu0 %v3017
        %4338 = vmatpush.bf16.msra.mxu0 %v3001
        %4339 = vmatpush.bf16.msra.mxu0 %v2985
        %4340 = vmatpush.bf16.msra.mxu0 %v2969
        %4341 = vmatpush.bf16.msra.mxu0 %v2953
        %4342 = vmatpush.bf16.msra.mxu0 %v2937
        %4343 = vmatpush.bf16.msra.mxu0 %v2921
        %4344 = vmatpush.bf16.msra.mxu0 %v2905
        %4345 = vmatmul.bf16.gmra.mxu0 %v1353
        %v4346 = vpop.f32.mrf.mxu0
        %v4347 = vadd.f32 0.0, %v4346
        %v4348 = vpop.f32.mrf.mxu0
        %4349 = vdwg.mxu0
        %4350 = vmatpush.bf16.msra.mxu0 %v3145
        %4351 = vmatpush.bf16.msra.mxu0 %v3129
        %4352 = vmatpush.bf16.msra.mxu0 %v3113
        %4353 = vmatpush.bf16.msra.mxu0 %v3097
        %4354 = vmatpush.bf16.msra.mxu0 %v3081
        %4355 = vmatpush.bf16.msra.mxu0 %v3065
        %4356 = vmatpush.bf16.msra.mxu0 %v3049
        %4357 = vmatpush.bf16.msra.mxu0 %v3033
        %4358 = vmatmul.bf16.gmra.mxu0 %v1354
        %v4359 = vpop.f32.mrf.mxu0
        %v4360 = vadd.f32 %v4347, %v4359
        %v4361 = vpop.f32.mrf.mxu0
        %4362 = vdwg.mxu0
        %4363 = vmatpush.bf16.msra.mxu0 %v3273
        %4364 = vmatpush.bf16.msra.mxu0 %v3257
        %4365 = vmatpush.bf16.msra.mxu0 %v3241
        %4366 = vmatpush.bf16.msra.mxu0 %v3225
        %4367 = vmatpush.bf16.msra.mxu0 %v3209
        %4368 = vmatpush.bf16.msra.mxu0 %v3193
        %4369 = vmatpush.bf16.msra.mxu0 %v3177
        %4370 = vmatpush.bf16.msra.mxu0 %v3161
        %4371 = vmatmul.bf16.gmra.mxu0 %v1355
        %v4372 = vpop.f32.mrf.mxu0
        %v4373 = vadd.f32 %v4360, %v4372
        %v4374 = vpop.f32.mrf.mxu0
        %4375 = vdwg.mxu0
        %4376 = vmatpush.bf16.msra.mxu0 %v3401
        %4377 = vmatpush.bf16.msra.mxu0 %v3385
        %4378 = vmatpush.bf16.msra.mxu0 %v3369
        %4379 = vmatpush.bf16.msra.mxu0 %v3353
        %4380 = vmatpush.bf16.msra.mxu0 %v3337
        %4381 = vmatpush.bf16.msra.mxu0 %v3321
        %4382 = vmatpush.bf16.msra.mxu0 %v3305
        %4383 = vmatpush.bf16.msra.mxu0 %v3289
        %4384 = vmatmul.bf16.gmra.mxu0 %v1356
        %v4385 = vpop.f32.mrf.mxu0
        %v4386 = vadd.f32 %v4373, %v4385
        %v4387 = vpop.f32.mrf.mxu0
        %4388 = vdwg.mxu0
        %4389 = vmatpush.bf16.msra.mxu0 %v3018
        %4390 = vmatpush.bf16.msra.mxu0 %v3002
        %4391 = vmatpush.bf16.msra.mxu0 %v2986
        %4392 = vmatpush.bf16.msra.mxu0 %v2970
        %4393 = vmatpush.bf16.msra.mxu0 %v2954
        %4394 = vmatpush.bf16.msra.mxu0 %v2938
        %4395 = vmatpush.bf16.msra.mxu0 %v2922
        %4396 = vmatpush.bf16.msra.mxu0 %v2906
        %4397 = vmatmul.bf16.gmra.mxu0 %v1353
        %v4398 = vpop.f32.mrf.mxu0
        %v4399 = vadd.f32 0.0, %v4398
        %v4400 = vpop.f32.mrf.mxu0
        %4401 = vdwg.mxu0
        %4402 = vmatpush.bf16.msra.mxu0 %v3146
        %4403 = vmatpush.bf16.msra.mxu0 %v3130
        %4404 = vmatpush.bf16.msra.mxu0 %v3114
        %4405 = vmatpush.bf16.msra.mxu0 %v3098
        %4406 = vmatpush.bf16.msra.mxu0 %v3082
        %4407 = vmatpush.bf16.msra.mxu0 %v3066
        %4408 = vmatpush.bf16.msra.mxu0 %v3050
        %4409 = vmatpush.bf16.msra.mxu0 %v3034
        %4410 = vmatmul.bf16.gmra.mxu0 %v1354
        %v4411 = vpop.f32.mrf.mxu0
        %v4412 = vadd.f32 %v4399, %v4411
        %v4413 = vpop.f32.mrf.mxu0
        %4414 = vdwg.mxu0
        %4415 = vmatpush.bf16.msra.mxu0 %v3274
        %4416 = vmatpush.bf16.msra.mxu0 %v3258
        %4417 = vmatpush.bf16.msra.mxu0 %v3242
        %4418 = vmatpush.bf16.msra.mxu0 %v3226
        %4419 = vmatpush.bf16.msra.mxu0 %v3210
        %4420 = vmatpush.bf16.msra.mxu0 %v3194
        %4421 = vmatpush.bf16.msra.mxu0 %v3178
        %4422 = vmatpush.bf16.msra.mxu0 %v3162
        %4423 = vmatmul.bf16.gmra.mxu0 %v1355
        %v4424 = vpop.f32.mrf.mxu0
        %v4425 = vadd.f32 %v4412, %v4424
        %v4426 = vpop.f32.mrf.mxu0
        %4427 = vdwg.mxu0
        %4428 = vmatpush.bf16.msra.mxu0 %v3402
        %4429 = vmatpush.bf16.msra.mxu0 %v3386
        %4430 = vmatpush.bf16.msra.mxu0 %v3370
        %4431 = vmatpush.bf16.msra.mxu0 %v3354
        %4432 = vmatpush.bf16.msra.mxu0 %v3338
        %4433 = vmatpush.bf16.msra.mxu0 %v3322
        %4434 = vmatpush.bf16.msra.mxu0 %v3306
        %4435 = vmatpush.bf16.msra.mxu0 %v3290
        %4436 = vmatmul.bf16.gmra.mxu0 %v1356
        %v4437 = vpop.f32.mrf.mxu0
        %v4438 = vadd.f32 %v4425, %v4437
        %v4439 = vpop.f32.mrf.mxu0
        %4440 = vdwg.mxu0
        %4441 = vmatpush.bf16.msra.mxu0 %v3019
        %4442 = vmatpush.bf16.msra.mxu0 %v3003
        %4443 = vmatpush.bf16.msra.mxu0 %v2987
        %4444 = vmatpush.bf16.msra.mxu0 %v2971
        %4445 = vmatpush.bf16.msra.mxu0 %v2955
        %4446 = vmatpush.bf16.msra.mxu0 %v2939
        %4447 = vmatpush.bf16.msra.mxu0 %v2923
        %4448 = vmatpush.bf16.msra.mxu0 %v2907
        %4449 = vmatmul.bf16.gmra.mxu0 %v1353
        %v4450 = vpop.f32.mrf.mxu0
        %v4451 = vadd.f32 0.0, %v4450
        %v4452 = vpop.f32.mrf.mxu0
        %4453 = vdwg.mxu0
        %4454 = vmatpush.bf16.msra.mxu0 %v3147
        %4455 = vmatpush.bf16.msra.mxu0 %v3131
        %4456 = vmatpush.bf16.msra.mxu0 %v3115
        %4457 = vmatpush.bf16.msra.mxu0 %v3099
        %4458 = vmatpush.bf16.msra.mxu0 %v3083
        %4459 = vmatpush.bf16.msra.mxu0 %v3067
        %4460 = vmatpush.bf16.msra.mxu0 %v3051
        %4461 = vmatpush.bf16.msra.mxu0 %v3035
        %4462 = vmatmul.bf16.gmra.mxu0 %v1354
        %v4463 = vpop.f32.mrf.mxu0
        %v4464 = vadd.f32 %v4451, %v4463
        %v4465 = vpop.f32.mrf.mxu0
        %4466 = vdwg.mxu0
        %4467 = vmatpush.bf16.msra.mxu0 %v3275
        %4468 = vmatpush.bf16.msra.mxu0 %v3259
        %4469 = vmatpush.bf16.msra.mxu0 %v3243
        %4470 = vmatpush.bf16.msra.mxu0 %v3227
        %4471 = vmatpush.bf16.msra.mxu0 %v3211
        %4472 = vmatpush.bf16.msra.mxu0 %v3195
        %4473 = vmatpush.bf16.msra.mxu0 %v3179
        %4474 = vmatpush.bf16.msra.mxu0 %v3163
        %4475 = vmatmul.bf16.gmra.mxu0 %v1355
        %v4476 = vpop.f32.mrf.mxu0
        %v4477 = vadd.f32 %v4464, %v4476
        %v4478 = vpop.f32.mrf.mxu0
        %4479 = vdwg.mxu0
        %4480 = vmatpush.bf16.msra.mxu0 %v3403
        %4481 = vmatpush.bf16.msra.mxu0 %v3387
        %4482 = vmatpush.bf16.msra.mxu0 %v3371
        %4483 = vmatpush.bf16.msra.mxu0 %v3355
        %4484 = vmatpush.bf16.msra.mxu0 %v3339
        %4485 = vmatpush.bf16.msra.mxu0 %v3323
        %4486 = vmatpush.bf16.msra.mxu0 %v3307
        %4487 = vmatpush.bf16.msra.mxu0 %v3291
        %4488 = vmatmul.bf16.gmra.mxu0 %v1356
        %v4489 = vpop.f32.mrf.mxu0
        %v4490 = vadd.f32 %v4477, %v4489
        %v4491 = vpop.f32.mrf.mxu0
        %4492 = vdwg.mxu0
        %4493 = vmatpush.bf16.msra.mxu0 %v3020
        %4494 = vmatpush.bf16.msra.mxu0 %v3004
        %4495 = vmatpush.bf16.msra.mxu0 %v2988
        %4496 = vmatpush.bf16.msra.mxu0 %v2972
        %4497 = vmatpush.bf16.msra.mxu0 %v2956
        %4498 = vmatpush.bf16.msra.mxu0 %v2940
        %4499 = vmatpush.bf16.msra.mxu0 %v2924
        %4500 = vmatpush.bf16.msra.mxu0 %v2908
        %4501 = vmatmul.bf16.gmra.mxu0 %v1353
        %v4502 = vpop.f32.mrf.mxu0
        %v4503 = vadd.f32 0.0, %v4502
        %v4504 = vpop.f32.mrf.mxu0
        %4505 = vdwg.mxu0
        %4506 = vmatpush.bf16.msra.mxu0 %v3148
        %4507 = vmatpush.bf16.msra.mxu0 %v3132
        %4508 = vmatpush.bf16.msra.mxu0 %v3116
        %4509 = vmatpush.bf16.msra.mxu0 %v3100
        %4510 = vmatpush.bf16.msra.mxu0 %v3084
        %4511 = vmatpush.bf16.msra.mxu0 %v3068
        %4512 = vmatpush.bf16.msra.mxu0 %v3052
        %4513 = vmatpush.bf16.msra.mxu0 %v3036
        %4514 = vmatmul.bf16.gmra.mxu0 %v1354
        %v4515 = vpop.f32.mrf.mxu0
        %v4516 = vadd.f32 %v4503, %v4515
        %v4517 = vpop.f32.mrf.mxu0
        %4518 = vdwg.mxu0
        %4519 = vmatpush.bf16.msra.mxu0 %v3276
        %4520 = vmatpush.bf16.msra.mxu0 %v3260
        %4521 = vmatpush.bf16.msra.mxu0 %v3244
        %4522 = vmatpush.bf16.msra.mxu0 %v3228
        %4523 = vmatpush.bf16.msra.mxu0 %v3212
        %4524 = vmatpush.bf16.msra.mxu0 %v3196
        %4525 = vmatpush.bf16.msra.mxu0 %v3180
        %4526 = vmatpush.bf16.msra.mxu0 %v3164
        %4527 = vmatmul.bf16.gmra.mxu0 %v1355
        %v4528 = vpop.f32.mrf.mxu0
        %v4529 = vadd.f32 %v4516, %v4528
        %v4530 = vpop.f32.mrf.mxu0
        %4531 = vdwg.mxu0
        %4532 = vmatpush.bf16.msra.mxu0 %v3404
        %4533 = vmatpush.bf16.msra.mxu0 %v3388
        %4534 = vmatpush.bf16.msra.mxu0 %v3372
        %4535 = vmatpush.bf16.msra.mxu0 %v3356
        %4536 = vmatpush.bf16.msra.mxu0 %v3340
        %4537 = vmatpush.bf16.msra.mxu0 %v3324
        %4538 = vmatpush.bf16.msra.mxu0 %v3308
        %4539 = vmatpush.bf16.msra.mxu0 %v3292
        %4540 = vmatmul.bf16.gmra.mxu0 %v1356
        %v4541 = vpop.f32.mrf.mxu0
        %v4542 = vadd.f32 %v4529, %v4541
        %v4543 = vpop.f32.mrf.mxu0
        %4544 = vdwg.mxu0
        %4545 = vmatpush.bf16.msra.mxu0 %v3021
        %4546 = vmatpush.bf16.msra.mxu0 %v3005
        %4547 = vmatpush.bf16.msra.mxu0 %v2989
        %4548 = vmatpush.bf16.msra.mxu0 %v2973
        %4549 = vmatpush.bf16.msra.mxu0 %v2957
        %4550 = vmatpush.bf16.msra.mxu0 %v2941
        %4551 = vmatpush.bf16.msra.mxu0 %v2925
        %4552 = vmatpush.bf16.msra.mxu0 %v2909
        %4553 = vmatmul.bf16.gmra.mxu0 %v1353
        %v4554 = vpop.f32.mrf.mxu0
        %v4555 = vadd.f32 0.0, %v4554
        %v4556 = vpop.f32.mrf.mxu0
        %4557 = vdwg.mxu0
        %4558 = vmatpush.bf16.msra.mxu0 %v3149
        %4559 = vmatpush.bf16.msra.mxu0 %v3133
        %4560 = vmatpush.bf16.msra.mxu0 %v3117
        %4561 = vmatpush.bf16.msra.mxu0 %v3101
        %4562 = vmatpush.bf16.msra.mxu0 %v3085
        %4563 = vmatpush.bf16.msra.mxu0 %v3069
        %4564 = vmatpush.bf16.msra.mxu0 %v3053
        %4565 = vmatpush.bf16.msra.mxu0 %v3037
        %4566 = vmatmul.bf16.gmra.mxu0 %v1354
        %v4567 = vpop.f32.mrf.mxu0
        %v4568 = vadd.f32 %v4555, %v4567
        %v4569 = vpop.f32.mrf.mxu0
        %4570 = vdwg.mxu0
        %4571 = vmatpush.bf16.msra.mxu0 %v3277
        %4572 = vmatpush.bf16.msra.mxu0 %v3261
        %4573 = vmatpush.bf16.msra.mxu0 %v3245
        %4574 = vmatpush.bf16.msra.mxu0 %v3229
        %4575 = vmatpush.bf16.msra.mxu0 %v3213
        %4576 = vmatpush.bf16.msra.mxu0 %v3197
        %4577 = vmatpush.bf16.msra.mxu0 %v3181
        %4578 = vmatpush.bf16.msra.mxu0 %v3165
        %4579 = vmatmul.bf16.gmra.mxu0 %v1355
        %v4580 = vpop.f32.mrf.mxu0
        %v4581 = vadd.f32 %v4568, %v4580
        %v4582 = vpop.f32.mrf.mxu0
        %4583 = vdwg.mxu0
        %4584 = vmatpush.bf16.msra.mxu0 %v3405
        %4585 = vmatpush.bf16.msra.mxu0 %v3389
        %4586 = vmatpush.bf16.msra.mxu0 %v3373
        %4587 = vmatpush.bf16.msra.mxu0 %v3357
        %4588 = vmatpush.bf16.msra.mxu0 %v3341
        %4589 = vmatpush.bf16.msra.mxu0 %v3325
        %4590 = vmatpush.bf16.msra.mxu0 %v3309
        %4591 = vmatpush.bf16.msra.mxu0 %v3293
        %4592 = vmatmul.bf16.gmra.mxu0 %v1356
        %v4593 = vpop.f32.mrf.mxu0
        %v4594 = vadd.f32 %v4581, %v4593
        %v4595 = vpop.f32.mrf.mxu0
        %4596 = vdwg.mxu0
        %4597 = vmatpush.bf16.msra.mxu0 %v3022
        %4598 = vmatpush.bf16.msra.mxu0 %v3006
        %4599 = vmatpush.bf16.msra.mxu0 %v2990
        %4600 = vmatpush.bf16.msra.mxu0 %v2974
        %4601 = vmatpush.bf16.msra.mxu0 %v2958
        %4602 = vmatpush.bf16.msra.mxu0 %v2942
        %4603 = vmatpush.bf16.msra.mxu0 %v2926
        %4604 = vmatpush.bf16.msra.mxu0 %v2910
        %4605 = vmatmul.bf16.gmra.mxu0 %v1353
        %v4606 = vpop.f32.mrf.mxu0
        %v4607 = vadd.f32 0.0, %v4606
        %v4608 = vpop.f32.mrf.mxu0
        %4609 = vdwg.mxu0
        %4610 = vmatpush.bf16.msra.mxu0 %v3150
        %4611 = vmatpush.bf16.msra.mxu0 %v3134
        %4612 = vmatpush.bf16.msra.mxu0 %v3118
        %4613 = vmatpush.bf16.msra.mxu0 %v3102
        %4614 = vmatpush.bf16.msra.mxu0 %v3086
        %4615 = vmatpush.bf16.msra.mxu0 %v3070
        %4616 = vmatpush.bf16.msra.mxu0 %v3054
        %4617 = vmatpush.bf16.msra.mxu0 %v3038
        %4618 = vmatmul.bf16.gmra.mxu0 %v1354
        %v4619 = vpop.f32.mrf.mxu0
        %v4620 = vadd.f32 %v4607, %v4619
        %v4621 = vpop.f32.mrf.mxu0
        %4622 = vdwg.mxu0
        %4623 = vmatpush.bf16.msra.mxu0 %v3278
        %4624 = vmatpush.bf16.msra.mxu0 %v3262
        %4625 = vmatpush.bf16.msra.mxu0 %v3246
        %4626 = vmatpush.bf16.msra.mxu0 %v3230
        %4627 = vmatpush.bf16.msra.mxu0 %v3214
        %4628 = vmatpush.bf16.msra.mxu0 %v3198
        %4629 = vmatpush.bf16.msra.mxu0 %v3182
        %4630 = vmatpush.bf16.msra.mxu0 %v3166
        %4631 = vmatmul.bf16.gmra.mxu0 %v1355
        %v4632 = vpop.f32.mrf.mxu0
        %v4633 = vadd.f32 %v4620, %v4632
        %v4634 = vpop.f32.mrf.mxu0
        %4635 = vdwg.mxu0
        %4636 = vmatpush.bf16.msra.mxu0 %v3406
        %4637 = vmatpush.bf16.msra.mxu0 %v3390
        %4638 = vmatpush.bf16.msra.mxu0 %v3374
        %4639 = vmatpush.bf16.msra.mxu0 %v3358
        %4640 = vmatpush.bf16.msra.mxu0 %v3342
        %4641 = vmatpush.bf16.msra.mxu0 %v3326
        %4642 = vmatpush.bf16.msra.mxu0 %v3310
        %4643 = vmatpush.bf16.msra.mxu0 %v3294
        %4644 = vmatmul.bf16.gmra.mxu0 %v1356
        %v4645 = vpop.f32.mrf.mxu0
        %v4646 = vadd.f32 %v4633, %v4645
        %v4647 = vpop.f32.mrf.mxu0
        %4648 = vdwg.mxu0
        %4649 = vmatpush.bf16.msra.mxu0 %v3023
        %4650 = vmatpush.bf16.msra.mxu0 %v3007
        %4651 = vmatpush.bf16.msra.mxu0 %v2991
        %4652 = vmatpush.bf16.msra.mxu0 %v2975
        %4653 = vmatpush.bf16.msra.mxu0 %v2959
        %4654 = vmatpush.bf16.msra.mxu0 %v2943
        %4655 = vmatpush.bf16.msra.mxu0 %v2927
        %4656 = vmatpush.bf16.msra.mxu0 %v2911
        %4657 = vmatmul.bf16.gmra.mxu0 %v1353
        %v4658 = vpop.f32.mrf.mxu0
        %v4659 = vadd.f32 0.0, %v4658
        %v4660 = vpop.f32.mrf.mxu0
        %4661 = vdwg.mxu0
        %4662 = vmatpush.bf16.msra.mxu0 %v3151
        %4663 = vmatpush.bf16.msra.mxu0 %v3135
        %4664 = vmatpush.bf16.msra.mxu0 %v3119
        %4665 = vmatpush.bf16.msra.mxu0 %v3103
        %4666 = vmatpush.bf16.msra.mxu0 %v3087
        %4667 = vmatpush.bf16.msra.mxu0 %v3071
        %4668 = vmatpush.bf16.msra.mxu0 %v3055
        %4669 = vmatpush.bf16.msra.mxu0 %v3039
        %4670 = vmatmul.bf16.gmra.mxu0 %v1354
        %v4671 = vpop.f32.mrf.mxu0
        %v4672 = vadd.f32 %v4659, %v4671
        %v4673 = vpop.f32.mrf.mxu0
        %4674 = vdwg.mxu0
        %4675 = vmatpush.bf16.msra.mxu0 %v3279
        %4676 = vmatpush.bf16.msra.mxu0 %v3263
        %4677 = vmatpush.bf16.msra.mxu0 %v3247
        %4678 = vmatpush.bf16.msra.mxu0 %v3231
        %4679 = vmatpush.bf16.msra.mxu0 %v3215
        %4680 = vmatpush.bf16.msra.mxu0 %v3199
        %4681 = vmatpush.bf16.msra.mxu0 %v3183
        %4682 = vmatpush.bf16.msra.mxu0 %v3167
        %4683 = vmatmul.bf16.gmra.mxu0 %v1355
        %v4684 = vpop.f32.mrf.mxu0
        %v4685 = vadd.f32 %v4672, %v4684
        %v4686 = vpop.f32.mrf.mxu0
        %4687 = vdwg.mxu0
        %4688 = vmatpush.bf16.msra.mxu0 %v3407
        %4689 = vmatpush.bf16.msra.mxu0 %v3391
        %4690 = vmatpush.bf16.msra.mxu0 %v3375
        %4691 = vmatpush.bf16.msra.mxu0 %v3359
        %4692 = vmatpush.bf16.msra.mxu0 %v3343
        %4693 = vmatpush.bf16.msra.mxu0 %v3327
        %4694 = vmatpush.bf16.msra.mxu0 %v3311
        %4695 = vmatpush.bf16.msra.mxu0 %v3295
        %4696 = vmatmul.bf16.gmra.mxu0 %v1356
        %v4697 = vpop.f32.mrf.mxu0
        %v4698 = vadd.f32 %v4685, %v4697
        %v4699 = vpop.f32.mrf.mxu0
        %4700 = vdwg.mxu0
        %4701 = vmatpush.bf16.msra.mxu0 %v3024
        %4702 = vmatpush.bf16.msra.mxu0 %v3008
        %4703 = vmatpush.bf16.msra.mxu0 %v2992
        %4704 = vmatpush.bf16.msra.mxu0 %v2976
        %4705 = vmatpush.bf16.msra.mxu0 %v2960
        %4706 = vmatpush.bf16.msra.mxu0 %v2944
        %4707 = vmatpush.bf16.msra.mxu0 %v2928
        %4708 = vmatpush.bf16.msra.mxu0 %v2912
        %4709 = vmatmul.bf16.gmra.mxu0 %v1353
        %v4710 = vpop.f32.mrf.mxu0
        %v4711 = vadd.f32 0.0, %v4710
        %v4712 = vpop.f32.mrf.mxu0
        %4713 = vdwg.mxu0
        %4714 = vmatpush.bf16.msra.mxu0 %v3152
        %4715 = vmatpush.bf16.msra.mxu0 %v3136
        %4716 = vmatpush.bf16.msra.mxu0 %v3120
        %4717 = vmatpush.bf16.msra.mxu0 %v3104
        %4718 = vmatpush.bf16.msra.mxu0 %v3088
        %4719 = vmatpush.bf16.msra.mxu0 %v3072
        %4720 = vmatpush.bf16.msra.mxu0 %v3056
        %4721 = vmatpush.bf16.msra.mxu0 %v3040
        %4722 = vmatmul.bf16.gmra.mxu0 %v1354
        %v4723 = vpop.f32.mrf.mxu0
        %v4724 = vadd.f32 %v4711, %v4723
        %v4725 = vpop.f32.mrf.mxu0
        %4726 = vdwg.mxu0
        %4727 = vmatpush.bf16.msra.mxu0 %v3280
        %4728 = vmatpush.bf16.msra.mxu0 %v3264
        %4729 = vmatpush.bf16.msra.mxu0 %v3248
        %4730 = vmatpush.bf16.msra.mxu0 %v3232
        %4731 = vmatpush.bf16.msra.mxu0 %v3216
        %4732 = vmatpush.bf16.msra.mxu0 %v3200
        %4733 = vmatpush.bf16.msra.mxu0 %v3184
        %4734 = vmatpush.bf16.msra.mxu0 %v3168
        %4735 = vmatmul.bf16.gmra.mxu0 %v1355
        %v4736 = vpop.f32.mrf.mxu0
        %v4737 = vadd.f32 %v4724, %v4736
        %v4738 = vpop.f32.mrf.mxu0
        %4739 = vdwg.mxu0
        %4740 = vmatpush.bf16.msra.mxu0 %v3408
        %4741 = vmatpush.bf16.msra.mxu0 %v3392
        %4742 = vmatpush.bf16.msra.mxu0 %v3376
        %4743 = vmatpush.bf16.msra.mxu0 %v3360
        %4744 = vmatpush.bf16.msra.mxu0 %v3344
        %4745 = vmatpush.bf16.msra.mxu0 %v3328
        %4746 = vmatpush.bf16.msra.mxu0 %v3312
        %4747 = vmatpush.bf16.msra.mxu0 %v3296
        %4748 = vmatmul.bf16.gmra.mxu0 %v1356
        %v4749 = vpop.f32.mrf.mxu0
        %v4750 = vadd.f32 %v4737, %v4749
        %v4751 = vpop.f32.mrf.mxu0
        %4752 = vdwg.mxu0
        %v4753 = vld [vmem:[%s483] sm:$0xff]
        %v4754 = vld [vmem:[%s483 + $0x8] sm:$0xff]
        %v4755 = vld [vmem:[%s493] sm:$0xff]
        %v4756 = vld [vmem:[%s493 + $0x8] sm:$0xff]
        %v4757 = vrot.slane %v3970, 4
        %v4758 = vadd.f32 %v3970, %v4757
        %v4759 = vrot.slane %v4758, 2
        %v4760 = vadd.f32 %v4758, %v4759
        %v4761 = vrot.slane %v4760, 1
        %v4762 = vadd.f32 %v4760, %v4761
        %v4763 = vrot.slane %v4022, 4
        %v4764 = vadd.f32 %v4022, %v4763
        %v4765 = vrot.slane %v4764, 2
        %v4766 = vadd.f32 %v4764, %v4765
        %v4767 = vrot.slane %v4766, 1
        %v4768 = vadd.f32 %v4766, %v4767
        %v4769 = vrot.slane %v4074, 4
        %v4770 = vadd.f32 %v4074, %v4769
        %v4771 = vrot.slane %v4770, 2
        %v4772 = vadd.f32 %v4770, %v4771
        %v4773 = vrot.slane %v4772, 1
        %v4774 = vadd.f32 %v4772, %v4773
        %v4775 = vrot.slane %v4126, 4
        %v4776 = vadd.f32 %v4126, %v4775
        %v4777 = vrot.slane %v4776, 2
        %v4778 = vadd.f32 %v4776, %v4777
        %v4779 = vrot.slane %v4778, 1
        %v4780 = vadd.f32 %v4778, %v4779
        %v4781 = vrot.slane %v4178, 4
        %v4782 = vadd.f32 %v4178, %v4781
        %v4783 = vrot.slane %v4782, 2
        %v4784 = vadd.f32 %v4782, %v4783
        %v4785 = vrot.slane %v4784, 1
        %v4786 = vadd.f32 %v4784, %v4785
        %v4787 = vrot.slane %v4230, 4
        %v4788 = vadd.f32 %v4230, %v4787
        %v4789 = vrot.slane %v4788, 2
        %v4790 = vadd.f32 %v4788, %v4789
        %v4791 = vrot.slane %v4790, 1
        %v4792 = vadd.f32 %v4790, %v4791
        %v4793 = vrot.slane %v4282, 4
        %v4794 = vadd.f32 %v4282, %v4793
        %v4795 = vrot.slane %v4794, 2
        %v4796 = vadd.f32 %v4794, %v4795
        %v4797 = vrot.slane %v4796, 1
        %v4798 = vadd.f32 %v4796, %v4797
        %v4799 = vrot.slane %v4334, 4
        %v4800 = vadd.f32 %v4334, %v4799
        %v4801 = vrot.slane %v4800, 2
        %v4802 = vadd.f32 %v4800, %v4801
        %v4803 = vrot.slane %v4802, 1
        %v4804 = vadd.f32 %v4802, %v4803
        %v4805 = vrot.slane %v4386, 4
        %v4806 = vadd.f32 %v4386, %v4805
        %v4807 = vrot.slane %v4806, 2
        %v4808 = vadd.f32 %v4806, %v4807
        %v4809 = vrot.slane %v4808, 1
        %v4810 = vadd.f32 %v4808, %v4809
        %v4811 = vrot.slane %v4438, 4
        %v4812 = vadd.f32 %v4438, %v4811
        %v4813 = vrot.slane %v4812, 2
        %v4814 = vadd.f32 %v4812, %v4813
        %v4815 = vrot.slane %v4814, 1
        %v4816 = vadd.f32 %v4814, %v4815
        %v4817 = vrot.slane %v4490, 4
        %v4818 = vadd.f32 %v4490, %v4817
        %v4819 = vrot.slane %v4818, 2
        %v4820 = vadd.f32 %v4818, %v4819
        %v4821 = vrot.slane %v4820, 1
        %v4822 = vadd.f32 %v4820, %v4821
        %v4823 = vrot.slane %v4542, 4
        %v4824 = vadd.f32 %v4542, %v4823
        %v4825 = vrot.slane %v4824, 2
        %v4826 = vadd.f32 %v4824, %v4825
        %v4827 = vrot.slane %v4826, 1
        %v4828 = vadd.f32 %v4826, %v4827
        %v4829 = vrot.slane %v4594, 4
        %v4830 = vadd.f32 %v4594, %v4829
        %v4831 = vrot.slane %v4830, 2
        %v4832 = vadd.f32 %v4830, %v4831
        %v4833 = vrot.slane %v4832, 1
        %v4834 = vadd.f32 %v4832, %v4833
        %v4835 = vrot.slane %v4646, 4
        %v4836 = vadd.f32 %v4646, %v4835
        %v4837 = vrot.slane %v4836, 2
        %v4838 = vadd.f32 %v4836, %v4837
        %v4839 = vrot.slane %v4838, 1
        %v4840 = vadd.f32 %v4838, %v4839
        %v4841 = vrot.slane %v4698, 4
        %v4842 = vadd.f32 %v4698, %v4841
        %v4843 = vrot.slane %v4842, 2
        %v4844 = vadd.f32 %v4842, %v4843
        %v4845 = vrot.slane %v4844, 1
        %v4846 = vadd.f32 %v4844, %v4845
        %v4847 = vrot.slane %v4750, 4
        %v4848 = vadd.f32 %v4750, %v4847
        %v4849 = vrot.slane %v4848, 2
        %v4850 = vadd.f32 %v4848, %v4849
        %v4851 = vrot.slane %v4850, 1
        %v4852 = vadd.f32 %v4850, %v4851
        %v4853 = vrcp.pop 8.0
        %v4854 = vmul.f32 8.0, %v4853
        %v4855 = vsub.f32 1.0, %v4854
        %v4856 = vmul.f32 %v4853, %v4855
        %v4857 = vadd.f32 %v4853, %v4856
        %vm4858 = vweird.f32 %v4853
        %v4859 = vsel %vm4858, %v4853, %v4857
        %v4860 = vmul.f32 %v4762, %v4859
        %v4861 = vmul.f32 %v4768, %v4859
        %v4862 = vmul.f32 %v4774, %v4859
        %v4863 = vmul.f32 %v4780, %v4859
        %v4864 = vmul.f32 %v4786, %v4859
        %v4865 = vmul.f32 %v4792, %v4859
        %v4866 = vmul.f32 %v4798, %v4859
        %v4867 = vmul.f32 %v4804, %v4859
        %v4868 = vmul.f32 %v4810, %v4859
        %v4869 = vmul.f32 %v4816, %v4859
        %v4870 = vmul.f32 %v4822, %v4859
        %v4871 = vmul.f32 %v4828, %v4859
        %v4872 = vmul.f32 %v4834, %v4859
        %v4873 = vmul.f32 %v4840, %v4859
        %v4874 = vmul.f32 %v4846, %v4859
        %v4875 = vmul.f32 %v4852, %v4859
        %v4876 = vsub.f32 %v3970, %v4860
        %v4877 = vsub.f32 %v4022, %v4861
        %v4878 = vsub.f32 %v4074, %v4862
        %v4879 = vsub.f32 %v4126, %v4863
        %v4880 = vsub.f32 %v4178, %v4864
        %v4881 = vsub.f32 %v4230, %v4865
        %v4882 = vsub.f32 %v4282, %v4866
        %v4883 = vsub.f32 %v4334, %v4867
        %v4884 = vsub.f32 %v4386, %v4868
        %v4885 = vsub.f32 %v4438, %v4869
        %v4886 = vsub.f32 %v4490, %v4870
        %v4887 = vsub.f32 %v4542, %v4871
        %v4888 = vsub.f32 %v4594, %v4872
        %v4889 = vsub.f32 %v4646, %v4873
        %v4890 = vsub.f32 %v4698, %v4874
        %v4891 = vsub.f32 %v4750, %v4875
        %v4892 = vmul.f32 %v4876, %v4876
        %v4893 = vmul.f32 %v4877, %v4877
        %v4894 = vmul.f32 %v4878, %v4878
        %v4895 = vmul.f32 %v4879, %v4879
        %v4896 = vmul.f32 %v4880, %v4880
        %v4897 = vmul.f32 %v4881, %v4881
        %v4898 = vmul.f32 %v4882, %v4882
        %v4899 = vmul.f32 %v4883, %v4883
        %v4900 = vmul.f32 %v4884, %v4884
        %v4901 = vmul.f32 %v4885, %v4885
        %v4902 = vmul.f32 %v4886, %v4886
        %v4903 = vmul.f32 %v4887, %v4887
        %v4904 = vmul.f32 %v4888, %v4888
        %v4905 = vmul.f32 %v4889, %v4889
        %v4906 = vmul.f32 %v4890, %v4890
        %v4907 = vmul.f32 %v4891, %v4891
        %v4908 = vrot.slane %v4892, 4
        %v4909 = vadd.f32 %v4892, %v4908
        %v4910 = vrot.slane %v4909, 2
        %v4911 = vadd.f32 %v4909, %v4910
        %v4912 = vrot.slane %v4911, 1
        %v4913 = vadd.f32 %v4911, %v4912
        %v4914 = vrot.slane %v4893, 4
        %v4915 = vadd.f32 %v4893, %v4914
        %v4916 = vrot.slane %v4915, 2
        %v4917 = vadd.f32 %v4915, %v4916
        %v4918 = vrot.slane %v4917, 1
        %v4919 = vadd.f32 %v4917, %v4918
        %v4920 = vrot.slane %v4894, 4
        %v4921 = vadd.f32 %v4894, %v4920
        %v4922 = vrot.slane %v4921, 2
        %v4923 = vadd.f32 %v4921, %v4922
        %v4924 = vrot.slane %v4923, 1
        %v4925 = vadd.f32 %v4923, %v4924
        %v4926 = vrot.slane %v4895, 4
        %v4927 = vadd.f32 %v4895, %v4926
        %v4928 = vrot.slane %v4927, 2
        %v4929 = vadd.f32 %v4927, %v4928
        %v4930 = vrot.slane %v4929, 1
        %v4931 = vadd.f32 %v4929, %v4930
        %v4932 = vrot.slane %v4896, 4
        %v4933 = vadd.f32 %v4896, %v4932
        %v4934 = vrot.slane %v4933, 2
        %v4935 = vadd.f32 %v4933, %v4934
        %v4936 = vrot.slane %v4935, 1
        %v4937 = vadd.f32 %v4935, %v4936
        %v4938 = vrot.slane %v4897, 4
        %v4939 = vadd.f32 %v4897, %v4938
        %v4940 = vrot.slane %v4939, 2
        %v4941 = vadd.f32 %v4939, %v4940
        %v4942 = vrot.slane %v4941, 1
        %v4943 = vadd.f32 %v4941, %v4942
        %v4944 = vrot.slane %v4898, 4
        %v4945 = vadd.f32 %v4898, %v4944
        %v4946 = vrot.slane %v4945, 2
        %v4947 = vadd.f32 %v4945, %v4946
        %v4948 = vrot.slane %v4947, 1
        %v4949 = vadd.f32 %v4947, %v4948
        %v4950 = vrot.slane %v4899, 4
        %v4951 = vadd.f32 %v4899, %v4950
        %v4952 = vrot.slane %v4951, 2
        %v4953 = vadd.f32 %v4951, %v4952
        %v4954 = vrot.slane %v4953, 1
        %v4955 = vadd.f32 %v4953, %v4954
        %v4956 = vrot.slane %v4900, 4
        %v4957 = vadd.f32 %v4900, %v4956
        %v4958 = vrot.slane %v4957, 2
        %v4959 = vadd.f32 %v4957, %v4958
        %v4960 = vrot.slane %v4959, 1
        %v4961 = vadd.f32 %v4959, %v4960
        %v4962 = vrot.slane %v4901, 4
        %v4963 = vadd.f32 %v4901, %v4962
        %v4964 = vrot.slane %v4963, 2
        %v4965 = vadd.f32 %v4963, %v4964
        %v4966 = vrot.slane %v4965, 1
        %v4967 = vadd.f32 %v4965, %v4966
        %v4968 = vrot.slane %v4902, 4
        %v4969 = vadd.f32 %v4902, %v4968
        %v4970 = vrot.slane %v4969, 2
        %v4971 = vadd.f32 %v4969, %v4970
        %v4972 = vrot.slane %v4971, 1
        %v4973 = vadd.f32 %v4971, %v4972
        %v4974 = vrot.slane %v4903, 4
        %v4975 = vadd.f32 %v4903, %v4974
        %v4976 = vrot.slane %v4975, 2
        %v4977 = vadd.f32 %v4975, %v4976
        %v4978 = vrot.slane %v4977, 1
        %v4979 = vadd.f32 %v4977, %v4978
        %v4980 = vrot.slane %v4904, 4
        %v4981 = vadd.f32 %v4904, %v4980
        %v4982 = vrot.slane %v4981, 2
        %v4983 = vadd.f32 %v4981, %v4982
        %v4984 = vrot.slane %v4983, 1
        %v4985 = vadd.f32 %v4983, %v4984
        %v4986 = vrot.slane %v4905, 4
        %v4987 = vadd.f32 %v4905, %v4986
        %v4988 = vrot.slane %v4987, 2
        %v4989 = vadd.f32 %v4987, %v4988
        %v4990 = vrot.slane %v4989, 1
        %v4991 = vadd.f32 %v4989, %v4990
        %v4992 = vrot.slane %v4906, 4
        %v4993 = vadd.f32 %v4906, %v4992
        %v4994 = vrot.slane %v4993, 2
        %v4995 = vadd.f32 %v4993, %v4994
        %v4996 = vrot.slane %v4995, 1
        %v4997 = vadd.f32 %v4995, %v4996
        %v4998 = vrot.slane %v4907, 4
        %v4999 = vadd.f32 %v4907, %v4998
        %v5000 = vrot.slane %v4999, 2
        %v5001 = vadd.f32 %v4999, %v5000
        %v5002 = vrot.slane %v5001, 1
        %v5003 = vadd.f32 %v5001, %v5002
        %v5004 = vmul.f32 %v4913, %v4859
        %v5005 = vmul.f32 %v4919, %v4859
        %v5006 = vmul.f32 %v4925, %v4859
        %v5007 = vmul.f32 %v4931, %v4859
        %v5008 = vmul.f32 %v4937, %v4859
        %v5009 = vmul.f32 %v4943, %v4859
        %v5010 = vmul.f32 %v4949, %v4859
        %v5011 = vmul.f32 %v4955, %v4859
        %v5012 = vmul.f32 %v4961, %v4859
        %v5013 = vmul.f32 %v4967, %v4859
        %v5014 = vmul.f32 %v4973, %v4859
        %v5015 = vmul.f32 %v4979, %v4859
        %v5016 = vmul.f32 %v4985, %v4859
        %v5017 = vmul.f32 %v4991, %v4859
        %v5018 = vmul.f32 %v4997, %v4859
        %v5019 = vmul.f32 %v5003, %v4859
        %v5020 = vadd.f32 %v5004, 1e-05
        %v5021 = vadd.f32 %v5005, 1e-05
        %v5022 = vadd.f32 %v5006, 1e-05
        %v5023 = vadd.f32 %v5007, 1e-05
        %v5024 = vadd.f32 %v5008, 1e-05
        %v5025 = vadd.f32 %v5009, 1e-05
        %v5026 = vadd.f32 %v5010, 1e-05
        %v5027 = vadd.f32 %v5011, 1e-05
        %v5028 = vadd.f32 %v5012, 1e-05
        %v5029 = vadd.f32 %v5013, 1e-05
        %v5030 = vadd.f32 %v5014, 1e-05
        %v5031 = vadd.f32 %v5015, 1e-05
        %v5032 = vadd.f32 %v5016, 1e-05
        %v5033 = vadd.f32 %v5017, 1e-05
        %v5034 = vadd.f32 %v5018, 1e-05
        %v5035 = vadd.f32 %v5019, 1e-05
        %v5036 = vrsqrt.pop %v5020
        %v5037 = vmul.f32 %v5036, %v5020
        %v5038 = vmul.f32 %v5037, %v5036
        %v5039 = vmul.f32 0.5, %v5038
        %v5040 = vsub.f32 1.5, %v5039
        %v5041 = vmul.f32 %v5036, %v5040
        %vm5042 = vweird.f32 %v5020
        %vm5043 = vweird.f32 %v5036
        %vm5044 = vmor %vm5042, %vm5043
        %v5045 = vsel %vm5044, %v5036, %v5041
        %v5046 = vrsqrt.pop %v5021
        %v5047 = vmul.f32 %v5046, %v5021
        %v5048 = vmul.f32 %v5047, %v5046
        %v5049 = vmul.f32 0.5, %v5048
        %v5050 = vsub.f32 1.5, %v5049
        %v5051 = vmul.f32 %v5046, %v5050
        %vm5052 = vweird.f32 %v5021
        %vm5053 = vweird.f32 %v5046
        %vm5054 = vmor %vm5052, %vm5053
        %v5055 = vsel %vm5054, %v5046, %v5051
        %v5056 = vrsqrt.pop %v5022
        %v5057 = vmul.f32 %v5056, %v5022
        %v5058 = vmul.f32 %v5057, %v5056
        %v5059 = vmul.f32 0.5, %v5058
        %v5060 = vsub.f32 1.5, %v5059
        %v5061 = vmul.f32 %v5056, %v5060
        %vm5062 = vweird.f32 %v5022
        %vm5063 = vweird.f32 %v5056
        %vm5064 = vmor %vm5062, %vm5063
        %v5065 = vsel %vm5064, %v5056, %v5061
        %v5066 = vrsqrt.pop %v5023
        %v5067 = vmul.f32 %v5066, %v5023
        %v5068 = vmul.f32 %v5067, %v5066
        %v5069 = vmul.f32 0.5, %v5068
        %v5070 = vsub.f32 1.5, %v5069
        %v5071 = vmul.f32 %v5066, %v5070
        %vm5072 = vweird.f32 %v5023
        %vm5073 = vweird.f32 %v5066
        %vm5074 = vmor %vm5072, %vm5073
        %v5075 = vsel %vm5074, %v5066, %v5071
        %v5076 = vrsqrt.pop %v5024
        %v5077 = vmul.f32 %v5076, %v5024
        %v5078 = vmul.f32 %v5077, %v5076
        %v5079 = vmul.f32 0.5, %v5078
        %v5080 = vsub.f32 1.5, %v5079
        %v5081 = vmul.f32 %v5076, %v5080
        %vm5082 = vweird.f32 %v5024
        %vm5083 = vweird.f32 %v5076
        %vm5084 = vmor %vm5082, %vm5083
        %v5085 = vsel %vm5084, %v5076, %v5081
        %v5086 = vrsqrt.pop %v5025
        %v5087 = vmul.f32 %v5086, %v5025
        %v5088 = vmul.f32 %v5087, %v5086
        %v5089 = vmul.f32 0.5, %v5088
        %v5090 = vsub.f32 1.5, %v5089
        %v5091 = vmul.f32 %v5086, %v5090
        %vm5092 = vweird.f32 %v5025
        %vm5093 = vweird.f32 %v5086
        %vm5094 = vmor %vm5092, %vm5093
        %v5095 = vsel %vm5094, %v5086, %v5091
        %v5096 = vrsqrt.pop %v5026
        %v5097 = vmul.f32 %v5096, %v5026
        %v5098 = vmul.f32 %v5097, %v5096
        %v5099 = vmul.f32 0.5, %v5098
        %v5100 = vsub.f32 1.5, %v5099
        %v5101 = vmul.f32 %v5096, %v5100
        %vm5102 = vweird.f32 %v5026
        %vm5103 = vweird.f32 %v5096
        %vm5104 = vmor %vm5102, %vm5103
        %v5105 = vsel %vm5104, %v5096, %v5101
        %v5106 = vrsqrt.pop %v5027
        %v5107 = vmul.f32 %v5106, %v5027
        %v5108 = vmul.f32 %v5107, %v5106
        %v5109 = vmul.f32 0.5, %v5108
        %v5110 = vsub.f32 1.5, %v5109
        %v5111 = vmul.f32 %v5106, %v5110
        %vm5112 = vweird.f32 %v5027
        %vm5113 = vweird.f32 %v5106
        %vm5114 = vmor %vm5112, %vm5113
        %v5115 = vsel %vm5114, %v5106, %v5111
        %v5116 = vrsqrt.pop %v5028
        %v5117 = vmul.f32 %v5116, %v5028
        %v5118 = vmul.f32 %v5117, %v5116
        %v5119 = vmul.f32 0.5, %v5118
        %v5120 = vsub.f32 1.5, %v5119
        %v5121 = vmul.f32 %v5116, %v5120
        %vm5122 = vweird.f32 %v5028
        %vm5123 = vweird.f32 %v5116
        %vm5124 = vmor %vm5122, %vm5123
        %v5125 = vsel %vm5124, %v5116, %v5121
        %v5126 = vrsqrt.pop %v5029
        %v5127 = vmul.f32 %v5126, %v5029
        %v5128 = vmul.f32 %v5127, %v5126
        %v5129 = vmul.f32 0.5, %v5128
        %v5130 = vsub.f32 1.5, %v5129
        %v5131 = vmul.f32 %v5126, %v5130
        %vm5132 = vweird.f32 %v5029
        %vm5133 = vweird.f32 %v5126
        %vm5134 = vmor %vm5132, %vm5133
        %v5135 = vsel %vm5134, %v5126, %v5131
        %v5136 = vrsqrt.pop %v5030
        %v5137 = vmul.f32 %v5136, %v5030
        %v5138 = vmul.f32 %v5137, %v5136
        %v5139 = vmul.f32 0.5, %v5138
        %v5140 = vsub.f32 1.5, %v5139
        %v5141 = vmul.f32 %v5136, %v5140
        %vm5142 = vweird.f32 %v5030
        %vm5143 = vweird.f32 %v5136
        %vm5144 = vmor %vm5142, %vm5143
        %v5145 = vsel %vm5144, %v5136, %v5141
        %v5146 = vrsqrt.pop %v5031
        %v5147 = vmul.f32 %v5146, %v5031
        %v5148 = vmul.f32 %v5147, %v5146
        %v5149 = vmul.f32 0.5, %v5148
        %v5150 = vsub.f32 1.5, %v5149
        %v5151 = vmul.f32 %v5146, %v5150
        %vm5152 = vweird.f32 %v5031
        %vm5153 = vweird.f32 %v5146
        %vm5154 = vmor %vm5152, %vm5153
        %v5155 = vsel %vm5154, %v5146, %v5151
        %v5156 = vrsqrt.pop %v5032
        %v5157 = vmul.f32 %v5156, %v5032
        %v5158 = vmul.f32 %v5157, %v5156
        %v5159 = vmul.f32 0.5, %v5158
        %v5160 = vsub.f32 1.5, %v5159
        %v5161 = vmul.f32 %v5156, %v5160
        %vm5162 = vweird.f32 %v5032
        %vm5163 = vweird.f32 %v5156
        %vm5164 = vmor %vm5162, %vm5163
        %v5165 = vsel %vm5164, %v5156, %v5161
        %v5166 = vrsqrt.pop %v5033
        %v5167 = vmul.f32 %v5166, %v5033
        %v5168 = vmul.f32 %v5167, %v5166
        %v5169 = vmul.f32 0.5, %v5168
        %v5170 = vsub.f32 1.5, %v5169
        %v5171 = vmul.f32 %v5166, %v5170
        %vm5172 = vweird.f32 %v5033
        %vm5173 = vweird.f32 %v5166
        %vm5174 = vmor %vm5172, %vm5173
        %v5175 = vsel %vm5174, %v5166, %v5171
        %v5176 = vrsqrt.pop %v5034
        %v5177 = vmul.f32 %v5176, %v5034
        %v5178 = vmul.f32 %v5177, %v5176
        %v5179 = vmul.f32 0.5, %v5178
        %v5180 = vsub.f32 1.5, %v5179
        %v5181 = vmul.f32 %v5176, %v5180
        %vm5182 = vweird.f32 %v5034
        %vm5183 = vweird.f32 %v5176
        %vm5184 = vmor %vm5182, %vm5183
        %v5185 = vsel %vm5184, %v5176, %v5181
        %v5186 = vrsqrt.pop %v5035
        %v5187 = vmul.f32 %v5186, %v5035
        %v5188 = vmul.f32 %v5187, %v5186
        %v5189 = vmul.f32 0.5, %v5188
        %v5190 = vsub.f32 1.5, %v5189
        %v5191 = vmul.f32 %v5186, %v5190
        %vm5192 = vweird.f32 %v5035
        %vm5193 = vweird.f32 %v5186
        %vm5194 = vmor %vm5192, %vm5193
        %v5195 = vsel %vm5194, %v5186, %v5191
        %v5196 = vmul.f32 %v4876, %v5045
        %v5197 = vmul.f32 %v4877, %v5055
        %v5198 = vmul.f32 %v4878, %v5065
        %v5199 = vmul.f32 %v4879, %v5075
        %v5200 = vmul.f32 %v4880, %v5085
        %v5201 = vmul.f32 %v4881, %v5095
        %v5202 = vmul.f32 %v4882, %v5105
        %v5203 = vmul.f32 %v4883, %v5115
        %v5204 = vmul.f32 %v4884, %v5125
        %v5205 = vmul.f32 %v4885, %v5135
        %v5206 = vmul.f32 %v4886, %v5145
        %v5207 = vmul.f32 %v4887, %v5155
        %v5208 = vmul.f32 %v4888, %v5165
        %v5209 = vmul.f32 %v4889, %v5175
        %v5210 = vmul.f32 %v4890, %v5185
        %v5211 = vmul.f32 %v4891, %v5195
        %v5214 = vperm.slane %v4753, 0
        %v5215 = vperm.slane %v4753, 1
        %v5216 = vperm.slane %v4753, 2
        %v5217 = vperm.slane %v4753, 3
        %v5218 = vperm.slane %v4753, 4
        %v5219 = vperm.slane %v4753, 5
        %v5220 = vperm.slane %v4753, 6
        %v5221 = vperm.slane %v4753, 7
        %v5222 = vperm.slane %v4754, 0
        %v5223 = vperm.slane %v4754, 1
        %v5224 = vperm.slane %v4754, 2
        %v5225 = vperm.slane %v4754, 3
        %v5226 = vperm.slane %v4754, 4
        %v5227 = vperm.slane %v4754, 5
        %v5228 = vperm.slane %v4754, 6
        %v5229 = vperm.slane %v4754, 7
        %v5246 = vmul.f32 %v5196, %v5214
        %v5247 = vmul.f32 %v5197, %v5215
        %v5248 = vmul.f32 %v5198, %v5216
        %v5249 = vmul.f32 %v5199, %v5217
        %v5250 = vmul.f32 %v5200, %v5218
        %v5251 = vmul.f32 %v5201, %v5219
        %v5252 = vmul.f32 %v5202, %v5220
        %v5253 = vmul.f32 %v5203, %v5221
        %v5254 = vmul.f32 %v5204, %v5222
        %v5255 = vmul.f32 %v5205, %v5223
        %v5256 = vmul.f32 %v5206, %v5224
        %v5257 = vmul.f32 %v5207, %v5225
        %v5258 = vmul.f32 %v5208, %v5226
        %v5259 = vmul.f32 %v5209, %v5227
        %v5260 = vmul.f32 %v5210, %v5228
        %v5261 = vmul.f32 %v5211, %v5229
        %v5264 = vperm.slane %v4755, 0
        %v5265 = vperm.slane %v4755, 1
        %v5266 = vperm.slane %v4755, 2
        %v5267 = vperm.slane %v4755, 3
        %v5268 = vperm.slane %v4755, 4
        %v5269 = vperm.slane %v4755, 5
        %v5270 = vperm.slane %v4755, 6
        %v5271 = vperm.slane %v4755, 7
        %v5272 = vperm.slane %v4756, 0
        %v5273 = vperm.slane %v4756, 1
        %v5274 = vperm.slane %v4756, 2
        %v5275 = vperm.slane %v4756, 3
        %v5276 = vperm.slane %v4756, 4
        %v5277 = vperm.slane %v4756, 5
        %v5278 = vperm.slane %v4756, 6
        %v5279 = vperm.slane %v4756, 7
        %v5296 = vadd.f32 %v5246, %v5264
        %v5297 = vadd.f32 %v5247, %v5265
        %v5298 = vadd.f32 %v5248, %v5266
        %v5299 = vadd.f32 %v5249, %v5267
        %v5300 = vadd.f32 %v5250, %v5268
        %v5301 = vadd.f32 %v5251, %v5269
        %v5302 = vadd.f32 %v5252, %v5270
        %v5303 = vadd.f32 %v5253, %v5271
        %v5304 = vadd.f32 %v5254, %v5272
        %v5305 = vadd.f32 %v5255, %v5273
        %v5306 = vadd.f32 %v5256, %v5274
        %v5307 = vadd.f32 %v5257, %v5275
        %v5308 = vadd.f32 %v5258, %v5276
        %v5309 = vadd.f32 %v5259, %v5277
        %v5310 = vadd.f32 %v5260, %v5278
        %v5311 = vadd.f32 %v5261, %v5279
        %v5312 = vmax.f32 %v5296, 0.0
        %v5313 = vmax.f32 %v5297, 0.0
        %v5314 = vmax.f32 %v5298, 0.0
        %v5315 = vmax.f32 %v5299, 0.0
        %v5316 = vmax.f32 %v5300, 0.0
        %v5317 = vmax.f32 %v5301, 0.0
        %v5318 = vmax.f32 %v5302, 0.0
        %v5319 = vmax.f32 %v5303, 0.0
        %v5320 = vmax.f32 %v5304, 0.0
        %v5321 = vmax.f32 %v5305, 0.0
        %v5322 = vmax.f32 %v5306, 0.0
        %v5323 = vmax.f32 %v5307, 0.0
        %v5324 = vmax.f32 %v5308, 0.0
        %v5325 = vmax.f32 %v5309, 0.0
        %v5326 = vmax.f32 %v5310, 0.0
        %v5327 = vmax.f32 %v5311, 0.0
        %v5328 = vld [vmem:[#allocation15] sm:$0xff]
        %v5329 = vpack.c.bf16 %v5312, %v5312
        %v5330 = vpack.c.bf16 %v5313, %v5313
        %v5331 = vpack.c.bf16 %v5314, %v5314
        %v5332 = vpack.c.bf16 %v5315, %v5315
        %v5333 = vpack.c.bf16 %v5316, %v5316
        %v5334 = vpack.c.bf16 %v5317, %v5317
        %v5335 = vpack.c.bf16 %v5318, %v5318
        %v5336 = vpack.c.bf16 %v5319, %v5319
        %v5337 = vpack.c.bf16 %v5320, %v5320
        %v5338 = vpack.c.bf16 %v5321, %v5321
        %v5339 = vpack.c.bf16 %v5322, %v5322
        %v5340 = vpack.c.bf16 %v5323, %v5323
        %v5341 = vpack.c.bf16 %v5324, %v5324
        %v5342 = vpack.c.bf16 %v5325, %v5325
        %v5343 = vpack.c.bf16 %v5326, %v5326
        %v5344 = vpack.c.bf16 %v5327, %v5327
        %v5345 = vld [vmem:[%s561] sm:$0xf]
        %v5346 = vld [vmem:[%s561 + $0x4] sm:$0xf]
        %v5347 = vld [vmem:[%s561 + $0x8] sm:$0xf]
        %v5348 = vld [vmem:[%s561 + $0xc] sm:$0xf]
        %v5349 = vld [vmem:[%s561 + $0x10] sm:$0xf]
        %v5350 = vld [vmem:[%s561 + $0x14] sm:$0xf]
        %v5351 = vld [vmem:[%s561 + $0x18] sm:$0xf]
        %v5352 = vld [vmem:[%s561 + $0x1c] sm:$0xf]
        %v5353 = vld [vmem:[%s561 + $0x20] sm:$0xf]
        %v5354 = vld [vmem:[%s561 + $0x24] sm:$0xf]
        %v5355 = vld [vmem:[%s561 + $0x28] sm:$0xf]
        %v5356 = vld [vmem:[%s561 + $0x2c] sm:$0xf]
        %v5357 = vld [vmem:[%s561 + $0x30] sm:$0xf]
        %v5358 = vld [vmem:[%s561 + $0x34] sm:$0xf]
        %v5359 = vld [vmem:[%s561 + $0x38] sm:$0xf]
        %v5360 = vld [vmem:[%s561 + $0x3c] sm:$0xf]
        %v5361 = vld [vmem:[%s561 + $0x40] sm:$0xf]
        %v5362 = vld [vmem:[%s561 + $0x44] sm:$0xf]
        %v5363 = vld [vmem:[%s561 + $0x48] sm:$0xf]
        %v5364 = vld [vmem:[%s561 + $0x4c] sm:$0xf]
        %v5365 = vld [vmem:[%s561 + $0x50] sm:$0xf]
        %v5366 = vld [vmem:[%s561 + $0x54] sm:$0xf]
        %v5367 = vld [vmem:[%s561 + $0x58] sm:$0xf]
        %v5368 = vld [vmem:[%s561 + $0x5c] sm:$0xf]
        %v5369 = vld [vmem:[%s561 + $0x60] sm:$0xf]
        %v5370 = vld [vmem:[%s561 + $0x64] sm:$0xf]
        %v5371 = vld [vmem:[%s561 + $0x68] sm:$0xf]
        %v5372 = vld [vmem:[%s561 + $0x6c] sm:$0xf]
        %v5373 = vld [vmem:[%s561 + $0x70] sm:$0xf]
        %v5374 = vld [vmem:[%s561 + $0x74] sm:$0xf]
        %v5375 = vld [vmem:[%s561 + $0x78] sm:$0xf]
        %v5376 = vld [vmem:[%s561 + $0x7c] sm:$0xf]
        %v5377 = vld [vmem:[%s561 + $0x80] sm:$0xf]
        %v5378 = vld [vmem:[%s561 + $0x84] sm:$0xf]
        %v5379 = vld [vmem:[%s561 + $0x88] sm:$0xf]
        %v5380 = vld [vmem:[%s561 + $0x8c] sm:$0xf]
        %v5381 = vld [vmem:[%s561 + $0x90] sm:$0xf]
        %v5382 = vld [vmem:[%s561 + $0x94] sm:$0xf]
        %v5383 = vld [vmem:[%s561 + $0x98] sm:$0xf]
        %v5384 = vld [vmem:[%s561 + $0x9c] sm:$0xf]
        %v5385 = vld [vmem:[%s561 + $0xa0] sm:$0xf]
        %v5386 = vld [vmem:[%s561 + $0xa4] sm:$0xf]
        %v5387 = vld [vmem:[%s561 + $0xa8] sm:$0xf]
        %v5388 = vld [vmem:[%s561 + $0xac] sm:$0xf]
        %v5389 = vld [vmem:[%s561 + $0xb0] sm:$0xf]
        %v5390 = vld [vmem:[%s561 + $0xb4] sm:$0xf]
        %v5391 = vld [vmem:[%s561 + $0xb8] sm:$0xf]
        %v5392 = vld [vmem:[%s561 + $0xbc] sm:$0xf]
        %v5393 = vld [vmem:[%s561 + $0xc0] sm:$0xf]
        %v5394 = vld [vmem:[%s561 + $0xc4] sm:$0xf]
        %v5395 = vld [vmem:[%s561 + $0xc8] sm:$0xf]
        %v5396 = vld [vmem:[%s561 + $0xcc] sm:$0xf]
        %v5397 = vld [vmem:[%s561 + $0xd0] sm:$0xf]
        %v5398 = vld [vmem:[%s561 + $0xd4] sm:$0xf]
        %v5399 = vld [vmem:[%s561 + $0xd8] sm:$0xf]
        %v5400 = vld [vmem:[%s561 + $0xdc] sm:$0xf]
        %v5401 = vld [vmem:[%s561 + $0xe0] sm:$0xf]
        %v5402 = vld [vmem:[%s561 + $0xe4] sm:$0xf]
        %v5403 = vld [vmem:[%s561 + $0xe8] sm:$0xf]
        %v5404 = vld [vmem:[%s561 + $0xec] sm:$0xf]
        %v5405 = vld [vmem:[%s561 + $0xf0] sm:$0xf]
        %v5406 = vld [vmem:[%s561 + $0xf4] sm:$0xf]
        %v5407 = vld [vmem:[%s561 + $0xf8] sm:$0xf]
        %v5408 = vld [vmem:[%s561 + $0xfc] sm:$0xf]
        %v5409 = vld [vmem:[%s561 + $0x100] sm:$0xf]
        %v5410 = vld [vmem:[%s561 + $0x104] sm:$0xf]
        %v5411 = vld [vmem:[%s561 + $0x108] sm:$0xf]
        %v5412 = vld [vmem:[%s561 + $0x10c] sm:$0xf]
        %v5413 = vld [vmem:[%s561 + $0x110] sm:$0xf]
        %v5414 = vld [vmem:[%s561 + $0x114] sm:$0xf]
        %v5415 = vld [vmem:[%s561 + $0x118] sm:$0xf]
        %v5416 = vld [vmem:[%s561 + $0x11c] sm:$0xf]
        %v5417 = vld [vmem:[%s561 + $0x120] sm:$0xf]
        %v5418 = vld [vmem:[%s561 + $0x124] sm:$0xf]
        %v5419 = vld [vmem:[%s561 + $0x128] sm:$0xf]
        %v5420 = vld [vmem:[%s561 + $0x12c] sm:$0xf]
        %v5421 = vld [vmem:[%s561 + $0x130] sm:$0xf]
        %v5422 = vld [vmem:[%s561 + $0x134] sm:$0xf]
        %v5423 = vld [vmem:[%s561 + $0x138] sm:$0xf]
        %v5424 = vld [vmem:[%s561 + $0x13c] sm:$0xf]
        %v5425 = vld [vmem:[%s561 + $0x140] sm:$0xf]
        %v5426 = vld [vmem:[%s561 + $0x144] sm:$0xf]
        %v5427 = vld [vmem:[%s561 + $0x148] sm:$0xf]
        %v5428 = vld [vmem:[%s561 + $0x14c] sm:$0xf]
        %v5429 = vld [vmem:[%s561 + $0x150] sm:$0xf]
        %v5430 = vld [vmem:[%s561 + $0x154] sm:$0xf]
        %v5431 = vld [vmem:[%s561 + $0x158] sm:$0xf]
        %v5432 = vld [vmem:[%s561 + $0x15c] sm:$0xf]
        %v5433 = vld [vmem:[%s561 + $0x160] sm:$0xf]
        %v5434 = vld [vmem:[%s561 + $0x164] sm:$0xf]
        %v5435 = vld [vmem:[%s561 + $0x168] sm:$0xf]
        %v5436 = vld [vmem:[%s561 + $0x16c] sm:$0xf]
        %v5437 = vld [vmem:[%s561 + $0x170] sm:$0xf]
        %v5438 = vld [vmem:[%s561 + $0x174] sm:$0xf]
        %v5439 = vld [vmem:[%s561 + $0x178] sm:$0xf]
        %v5440 = vld [vmem:[%s561 + $0x17c] sm:$0xf]
        %v5441 = vld [vmem:[%s561 + $0x180] sm:$0xf]
        %v5442 = vld [vmem:[%s561 + $0x184] sm:$0xf]
        %v5443 = vld [vmem:[%s561 + $0x188] sm:$0xf]
        %v5444 = vld [vmem:[%s561 + $0x18c] sm:$0xf]
        %v5445 = vld [vmem:[%s561 + $0x190] sm:$0xf]
        %v5446 = vld [vmem:[%s561 + $0x194] sm:$0xf]
        %v5447 = vld [vmem:[%s561 + $0x198] sm:$0xf]
        %v5448 = vld [vmem:[%s561 + $0x19c] sm:$0xf]
        %v5449 = vld [vmem:[%s561 + $0x1a0] sm:$0xf]
        %v5450 = vld [vmem:[%s561 + $0x1a4] sm:$0xf]
        %v5451 = vld [vmem:[%s561 + $0x1a8] sm:$0xf]
        %v5452 = vld [vmem:[%s561 + $0x1ac] sm:$0xf]
        %v5453 = vld [vmem:[%s561 + $0x1b0] sm:$0xf]
        %v5454 = vld [vmem:[%s561 + $0x1b4] sm:$0xf]
        %v5455 = vld [vmem:[%s561 + $0x1b8] sm:$0xf]
        %v5456 = vld [vmem:[%s561 + $0x1bc] sm:$0xf]
        %v5457 = vld [vmem:[%s561 + $0x1c0] sm:$0xf]
        %v5458 = vld [vmem:[%s561 + $0x1c4] sm:$0xf]
        %v5459 = vld [vmem:[%s561 + $0x1c8] sm:$0xf]
        %v5460 = vld [vmem:[%s561 + $0x1cc] sm:$0xf]
        %v5461 = vld [vmem:[%s561 + $0x1d0] sm:$0xf]
        %v5462 = vld [vmem:[%s561 + $0x1d4] sm:$0xf]
        %v5463 = vld [vmem:[%s561 + $0x1d8] sm:$0xf]
        %v5464 = vld [vmem:[%s561 + $0x1dc] sm:$0xf]
        %v5465 = vld [vmem:[%s561 + $0x1e0] sm:$0xf]
        %v5466 = vld [vmem:[%s561 + $0x1e4] sm:$0xf]
        %v5467 = vld [vmem:[%s561 + $0x1e8] sm:$0xf]
        %v5468 = vld [vmem:[%s561 + $0x1ec] sm:$0xf]
        %v5469 = vld [vmem:[%s561 + $0x1f0] sm:$0xf]
        %v5470 = vld [vmem:[%s561 + $0x1f4] sm:$0xf]
        %v5471 = vld [vmem:[%s561 + $0x1f8] sm:$0xf]
        %v5472 = vld [vmem:[%s561 + $0x1fc] sm:$0xf]
        %v5473 = vld [vmem:[%s561 + $0x200] sm:$0xf]
        %v5474 = vld [vmem:[%s561 + $0x204] sm:$0xf]
        %v5475 = vld [vmem:[%s561 + $0x208] sm:$0xf]
        %v5476 = vld [vmem:[%s561 + $0x20c] sm:$0xf]
        %v5477 = vld [vmem:[%s561 + $0x210] sm:$0xf]
        %v5478 = vld [vmem:[%s561 + $0x214] sm:$0xf]
        %v5479 = vld [vmem:[%s561 + $0x218] sm:$0xf]
        %v5480 = vld [vmem:[%s561 + $0x21c] sm:$0xf]
        %v5481 = vld [vmem:[%s561 + $0x220] sm:$0xf]
        %v5482 = vld [vmem:[%s561 + $0x224] sm:$0xf]
        %v5483 = vld [vmem:[%s561 + $0x228] sm:$0xf]
        %v5484 = vld [vmem:[%s561 + $0x22c] sm:$0xf]
        %v5485 = vld [vmem:[%s561 + $0x230] sm:$0xf]
        %v5486 = vld [vmem:[%s561 + $0x234] sm:$0xf]
        %v5487 = vld [vmem:[%s561 + $0x238] sm:$0xf]
        %v5488 = vld [vmem:[%s561 + $0x23c] sm:$0xf]
        %v5489 = vld [vmem:[%s561 + $0x240] sm:$0xf]
        %v5490 = vld [vmem:[%s561 + $0x244] sm:$0xf]
        %v5491 = vld [vmem:[%s561 + $0x248] sm:$0xf]
        %v5492 = vld [vmem:[%s561 + $0x24c] sm:$0xf]
        %v5493 = vld [vmem:[%s561 + $0x250] sm:$0xf]
        %v5494 = vld [vmem:[%s561 + $0x254] sm:$0xf]
        %v5495 = vld [vmem:[%s561 + $0x258] sm:$0xf]
        %v5496 = vld [vmem:[%s561 + $0x25c] sm:$0xf]
        %v5497 = vld [vmem:[%s561 + $0x260] sm:$0xf]
        %v5498 = vld [vmem:[%s561 + $0x264] sm:$0xf]
        %v5499 = vld [vmem:[%s561 + $0x268] sm:$0xf]
        %v5500 = vld [vmem:[%s561 + $0x26c] sm:$0xf]
        %v5501 = vld [vmem:[%s561 + $0x270] sm:$0xf]
        %v5502 = vld [vmem:[%s561 + $0x274] sm:$0xf]
        %v5503 = vld [vmem:[%s561 + $0x278] sm:$0xf]
        %v5504 = vld [vmem:[%s561 + $0x27c] sm:$0xf]
        %v5505 = vld [vmem:[%s561 + $0x280] sm:$0xf]
        %v5506 = vld [vmem:[%s561 + $0x284] sm:$0xf]
        %v5507 = vld [vmem:[%s561 + $0x288] sm:$0xf]
        %v5508 = vld [vmem:[%s561 + $0x28c] sm:$0xf]
        %v5509 = vld [vmem:[%s561 + $0x290] sm:$0xf]
        %v5510 = vld [vmem:[%s561 + $0x294] sm:$0xf]
        %v5511 = vld [vmem:[%s561 + $0x298] sm:$0xf]
        %v5512 = vld [vmem:[%s561 + $0x29c] sm:$0xf]
        %v5513 = vld [vmem:[%s561 + $0x2a0] sm:$0xf]
        %v5514 = vld [vmem:[%s561 + $0x2a4] sm:$0xf]
        %v5515 = vld [vmem:[%s561 + $0x2a8] sm:$0xf]
        %v5516 = vld [vmem:[%s561 + $0x2ac] sm:$0xf]
        %v5517 = vld [vmem:[%s561 + $0x2b0] sm:$0xf]
        %v5518 = vld [vmem:[%s561 + $0x2b4] sm:$0xf]
        %v5519 = vld [vmem:[%s561 + $0x2b8] sm:$0xf]
        %v5520 = vld [vmem:[%s561 + $0x2bc] sm:$0xf]
        %v5521 = vld [vmem:[%s561 + $0x2c0] sm:$0xf]
        %v5522 = vld [vmem:[%s561 + $0x2c4] sm:$0xf]
        %v5523 = vld [vmem:[%s561 + $0x2c8] sm:$0xf]
        %v5524 = vld [vmem:[%s561 + $0x2cc] sm:$0xf]
        %v5525 = vld [vmem:[%s561 + $0x2d0] sm:$0xf]
        %v5526 = vld [vmem:[%s561 + $0x2d4] sm:$0xf]
        %v5527 = vld [vmem:[%s561 + $0x2d8] sm:$0xf]
        %v5528 = vld [vmem:[%s561 + $0x2dc] sm:$0xf]
        %v5529 = vld [vmem:[%s561 + $0x2e0] sm:$0xf]
        %v5530 = vld [vmem:[%s561 + $0x2e4] sm:$0xf]
        %v5531 = vld [vmem:[%s561 + $0x2e8] sm:$0xf]
        %v5532 = vld [vmem:[%s561 + $0x2ec] sm:$0xf]
        %v5533 = vld [vmem:[%s561 + $0x2f0] sm:$0xf]
        %v5534 = vld [vmem:[%s561 + $0x2f4] sm:$0xf]
        %v5535 = vld [vmem:[%s561 + $0x2f8] sm:$0xf]
        %v5536 = vld [vmem:[%s561 + $0x2fc] sm:$0xf]
        %v5537 = vld [vmem:[%s561 + $0x300] sm:$0xf]
        %v5538 = vld [vmem:[%s561 + $0x304] sm:$0xf]
        %v5539 = vld [vmem:[%s561 + $0x308] sm:$0xf]
        %v5540 = vld [vmem:[%s561 + $0x30c] sm:$0xf]
        %v5541 = vld [vmem:[%s561 + $0x310] sm:$0xf]
        %v5542 = vld [vmem:[%s561 + $0x314] sm:$0xf]
        %v5543 = vld [vmem:[%s561 + $0x318] sm:$0xf]
        %v5544 = vld [vmem:[%s561 + $0x31c] sm:$0xf]
        %v5545 = vld [vmem:[%s561 + $0x320] sm:$0xf]
        %v5546 = vld [vmem:[%s561 + $0x324] sm:$0xf]
        %v5547 = vld [vmem:[%s561 + $0x328] sm:$0xf]
        %v5548 = vld [vmem:[%s561 + $0x32c] sm:$0xf]
        %v5549 = vld [vmem:[%s561 + $0x330] sm:$0xf]
        %v5550 = vld [vmem:[%s561 + $0x334] sm:$0xf]
        %v5551 = vld [vmem:[%s561 + $0x338] sm:$0xf]
        %v5552 = vld [vmem:[%s561 + $0x33c] sm:$0xf]
        %v5553 = vld [vmem:[%s561 + $0x340] sm:$0xf]
        %v5554 = vld [vmem:[%s561 + $0x344] sm:$0xf]
        %v5555 = vld [vmem:[%s561 + $0x348] sm:$0xf]
        %v5556 = vld [vmem:[%s561 + $0x34c] sm:$0xf]
        %v5557 = vld [vmem:[%s561 + $0x350] sm:$0xf]
        %v5558 = vld [vmem:[%s561 + $0x354] sm:$0xf]
        %v5559 = vld [vmem:[%s561 + $0x358] sm:$0xf]
        %v5560 = vld [vmem:[%s561 + $0x35c] sm:$0xf]
        %v5561 = vld [vmem:[%s561 + $0x360] sm:$0xf]
        %v5562 = vld [vmem:[%s561 + $0x364] sm:$0xf]
        %v5563 = vld [vmem:[%s561 + $0x368] sm:$0xf]
        %v5564 = vld [vmem:[%s561 + $0x36c] sm:$0xf]
        %v5565 = vld [vmem:[%s561 + $0x370] sm:$0xf]
        %v5566 = vld [vmem:[%s561 + $0x374] sm:$0xf]
        %v5567 = vld [vmem:[%s561 + $0x378] sm:$0xf]
        %v5568 = vld [vmem:[%s561 + $0x37c] sm:$0xf]
        %v5569 = vld [vmem:[%s561 + $0x380] sm:$0xf]
        %v5570 = vld [vmem:[%s561 + $0x384] sm:$0xf]
        %v5571 = vld [vmem:[%s561 + $0x388] sm:$0xf]
        %v5572 = vld [vmem:[%s561 + $0x38c] sm:$0xf]
        %v5573 = vld [vmem:[%s561 + $0x390] sm:$0xf]
        %v5574 = vld [vmem:[%s561 + $0x394] sm:$0xf]
        %v5575 = vld [vmem:[%s561 + $0x398] sm:$0xf]
        %v5576 = vld [vmem:[%s561 + $0x39c] sm:$0xf]
        %v5577 = vld [vmem:[%s561 + $0x3a0] sm:$0xf]
        %v5578 = vld [vmem:[%s561 + $0x3a4] sm:$0xf]
        %v5579 = vld [vmem:[%s561 + $0x3a8] sm:$0xf]
        %v5580 = vld [vmem:[%s561 + $0x3ac] sm:$0xf]
        %v5581 = vld [vmem:[%s561 + $0x3b0] sm:$0xf]
        %v5582 = vld [vmem:[%s561 + $0x3b4] sm:$0xf]
        %v5583 = vld [vmem:[%s561 + $0x3b8] sm:$0xf]
        %v5584 = vld [vmem:[%s561 + $0x3bc] sm:$0xf]
        %v5585 = vld [vmem:[%s561 + $0x3c0] sm:$0xf]
        %v5586 = vld [vmem:[%s561 + $0x3c4] sm:$0xf]
        %v5587 = vld [vmem:[%s561 + $0x3c8] sm:$0xf]
        %v5588 = vld [vmem:[%s561 + $0x3cc] sm:$0xf]
        %v5589 = vld [vmem:[%s561 + $0x3d0] sm:$0xf]
        %v5590 = vld [vmem:[%s561 + $0x3d4] sm:$0xf]
        %v5591 = vld [vmem:[%s561 + $0x3d8] sm:$0xf]
        %v5592 = vld [vmem:[%s561 + $0x3dc] sm:$0xf]
        %v5593 = vld [vmem:[%s561 + $0x3e0] sm:$0xf]
        %v5594 = vld [vmem:[%s561 + $0x3e4] sm:$0xf]
        %v5595 = vld [vmem:[%s561 + $0x3e8] sm:$0xf]
        %v5596 = vld [vmem:[%s561 + $0x3ec] sm:$0xf]
        %v5597 = vld [vmem:[%s561 + $0x3f0] sm:$0xf]
        %v5598 = vld [vmem:[%s561 + $0x3f4] sm:$0xf]
        %v5599 = vld [vmem:[%s561 + $0x3f8] sm:$0xf]
        %v5600 = vld [vmem:[%s561 + $0x3fc] sm:$0xf]
        %v5857 = vunpack.c.l.b16 %v5345
        %v5858 = vunpack.c.l.b16 %v5346
        %v5859 = vunpack.c.l.b16 %v5347
        %v5860 = vunpack.c.l.b16 %v5348
        %v5861 = vunpack.c.l.b16 %v5349
        %v5862 = vunpack.c.l.b16 %v5350
        %v5863 = vunpack.c.l.b16 %v5351
        %v5864 = vunpack.c.l.b16 %v5352
        %v5865 = vunpack.c.l.b16 %v5353
        %v5866 = vunpack.c.l.b16 %v5354
        %v5867 = vunpack.c.l.b16 %v5355
        %v5868 = vunpack.c.l.b16 %v5356
        %v5869 = vunpack.c.l.b16 %v5357
        %v5870 = vunpack.c.l.b16 %v5358
        %v5871 = vunpack.c.l.b16 %v5359
        %v5872 = vunpack.c.l.b16 %v5360
        %v5873 = vunpack.c.l.b16 %v5361
        %v5874 = vunpack.c.l.b16 %v5362
        %v5875 = vunpack.c.l.b16 %v5363
        %v5876 = vunpack.c.l.b16 %v5364
        %v5877 = vunpack.c.l.b16 %v5365
        %v5878 = vunpack.c.l.b16 %v5366
        %v5879 = vunpack.c.l.b16 %v5367
        %v5880 = vunpack.c.l.b16 %v5368
        %v5881 = vunpack.c.l.b16 %v5369
        %v5882 = vunpack.c.l.b16 %v5370
        %v5883 = vunpack.c.l.b16 %v5371
        %v5884 = vunpack.c.l.b16 %v5372
        %v5885 = vunpack.c.l.b16 %v5373
        %v5886 = vunpack.c.l.b16 %v5374
        %v5887 = vunpack.c.l.b16 %v5375
        %v5888 = vunpack.c.l.b16 %v5376
        %v5889 = vunpack.c.l.b16 %v5377
        %v5890 = vunpack.c.l.b16 %v5378
        %v5891 = vunpack.c.l.b16 %v5379
        %v5892 = vunpack.c.l.b16 %v5380
        %v5893 = vunpack.c.l.b16 %v5381
        %v5894 = vunpack.c.l.b16 %v5382
        %v5895 = vunpack.c.l.b16 %v5383
        %v5896 = vunpack.c.l.b16 %v5384
        %v5897 = vunpack.c.l.b16 %v5385
        %v5898 = vunpack.c.l.b16 %v5386
        %v5899 = vunpack.c.l.b16 %v5387
        %v5900 = vunpack.c.l.b16 %v5388
        %v5901 = vunpack.c.l.b16 %v5389
        %v5902 = vunpack.c.l.b16 %v5390
        %v5903 = vunpack.c.l.b16 %v5391
        %v5904 = vunpack.c.l.b16 %v5392
        %v5905 = vunpack.c.l.b16 %v5393
        %v5906 = vunpack.c.l.b16 %v5394
        %v5907 = vunpack.c.l.b16 %v5395
        %v5908 = vunpack.c.l.b16 %v5396
        %v5909 = vunpack.c.l.b16 %v5397
        %v5910 = vunpack.c.l.b16 %v5398
        %v5911 = vunpack.c.l.b16 %v5399
        %v5912 = vunpack.c.l.b16 %v5400
        %v5913 = vunpack.c.l.b16 %v5401
        %v5914 = vunpack.c.l.b16 %v5402
        %v5915 = vunpack.c.l.b16 %v5403
        %v5916 = vunpack.c.l.b16 %v5404
        %v5917 = vunpack.c.l.b16 %v5405
        %v5918 = vunpack.c.l.b16 %v5406
        %v5919 = vunpack.c.l.b16 %v5407
        %v5920 = vunpack.c.l.b16 %v5408
        %v5921 = vunpack.c.l.b16 %v5409
        %v5922 = vunpack.c.l.b16 %v5410
        %v5923 = vunpack.c.l.b16 %v5411
        %v5924 = vunpack.c.l.b16 %v5412
        %v5925 = vunpack.c.l.b16 %v5413
        %v5926 = vunpack.c.l.b16 %v5414
        %v5927 = vunpack.c.l.b16 %v5415
        %v5928 = vunpack.c.l.b16 %v5416
        %v5929 = vunpack.c.l.b16 %v5417
        %v5930 = vunpack.c.l.b16 %v5418
        %v5931 = vunpack.c.l.b16 %v5419
        %v5932 = vunpack.c.l.b16 %v5420
        %v5933 = vunpack.c.l.b16 %v5421
        %v5934 = vunpack.c.l.b16 %v5422
        %v5935 = vunpack.c.l.b16 %v5423
        %v5936 = vunpack.c.l.b16 %v5424
        %v5937 = vunpack.c.l.b16 %v5425
        %v5938 = vunpack.c.l.b16 %v5426
        %v5939 = vunpack.c.l.b16 %v5427
        %v5940 = vunpack.c.l.b16 %v5428
        %v5941 = vunpack.c.l.b16 %v5429
        %v5942 = vunpack.c.l.b16 %v5430
        %v5943 = vunpack.c.l.b16 %v5431
        %v5944 = vunpack.c.l.b16 %v5432
        %v5945 = vunpack.c.l.b16 %v5433
        %v5946 = vunpack.c.l.b16 %v5434
        %v5947 = vunpack.c.l.b16 %v5435
        %v5948 = vunpack.c.l.b16 %v5436
        %v5949 = vunpack.c.l.b16 %v5437
        %v5950 = vunpack.c.l.b16 %v5438
        %v5951 = vunpack.c.l.b16 %v5439
        %v5952 = vunpack.c.l.b16 %v5440
        %v5953 = vunpack.c.l.b16 %v5441
        %v5954 = vunpack.c.l.b16 %v5442
        %v5955 = vunpack.c.l.b16 %v5443
        %v5956 = vunpack.c.l.b16 %v5444
        %v5957 = vunpack.c.l.b16 %v5445
        %v5958 = vunpack.c.l.b16 %v5446
        %v5959 = vunpack.c.l.b16 %v5447
        %v5960 = vunpack.c.l.b16 %v5448
        %v5961 = vunpack.c.l.b16 %v5449
        %v5962 = vunpack.c.l.b16 %v5450
        %v5963 = vunpack.c.l.b16 %v5451
        %v5964 = vunpack.c.l.b16 %v5452
        %v5965 = vunpack.c.l.b16 %v5453
        %v5966 = vunpack.c.l.b16 %v5454
        %v5967 = vunpack.c.l.b16 %v5455
        %v5968 = vunpack.c.l.b16 %v5456
        %v5969 = vunpack.c.l.b16 %v5457
        %v5970 = vunpack.c.l.b16 %v5458
        %v5971 = vunpack.c.l.b16 %v5459
        %v5972 = vunpack.c.l.b16 %v5460
        %v5973 = vunpack.c.l.b16 %v5461
        %v5974 = vunpack.c.l.b16 %v5462
        %v5975 = vunpack.c.l.b16 %v5463
        %v5976 = vunpack.c.l.b16 %v5464
        %v5977 = vunpack.c.l.b16 %v5465
        %v5978 = vunpack.c.l.b16 %v5466
        %v5979 = vunpack.c.l.b16 %v5467
        %v5980 = vunpack.c.l.b16 %v5468
        %v5981 = vunpack.c.l.b16 %v5469
        %v5982 = vunpack.c.l.b16 %v5470
        %v5983 = vunpack.c.l.b16 %v5471
        %v5984 = vunpack.c.l.b16 %v5472
        %v5985 = vunpack.c.l.b16 %v5473
        %v5986 = vunpack.c.l.b16 %v5474
        %v5987 = vunpack.c.l.b16 %v5475
        %v5988 = vunpack.c.l.b16 %v5476
        %v5989 = vunpack.c.l.b16 %v5477
        %v5990 = vunpack.c.l.b16 %v5478
        %v5991 = vunpack.c.l.b16 %v5479
        %v5992 = vunpack.c.l.b16 %v5480
        %v5993 = vunpack.c.l.b16 %v5481
        %v5994 = vunpack.c.l.b16 %v5482
        %v5995 = vunpack.c.l.b16 %v5483
        %v5996 = vunpack.c.l.b16 %v5484
        %v5997 = vunpack.c.l.b16 %v5485
        %v5998 = vunpack.c.l.b16 %v5486
        %v5999 = vunpack.c.l.b16 %v5487
        %v6000 = vunpack.c.l.b16 %v5488
        %v6001 = vunpack.c.l.b16 %v5489
        %v6002 = vunpack.c.l.b16 %v5490
        %v6003 = vunpack.c.l.b16 %v5491
        %v6004 = vunpack.c.l.b16 %v5492
        %v6005 = vunpack.c.l.b16 %v5493
        %v6006 = vunpack.c.l.b16 %v5494
        %v6007 = vunpack.c.l.b16 %v5495
        %v6008 = vunpack.c.l.b16 %v5496
        %v6009 = vunpack.c.l.b16 %v5497
        %v6010 = vunpack.c.l.b16 %v5498
        %v6011 = vunpack.c.l.b16 %v5499
        %v6012 = vunpack.c.l.b16 %v5500
        %v6013 = vunpack.c.l.b16 %v5501
        %v6014 = vunpack.c.l.b16 %v5502
        %v6015 = vunpack.c.l.b16 %v5503
        %v6016 = vunpack.c.l.b16 %v5504
        %v6017 = vunpack.c.l.b16 %v5505
        %v6018 = vunpack.c.l.b16 %v5506
        %v6019 = vunpack.c.l.b16 %v5507
        %v6020 = vunpack.c.l.b16 %v5508
        %v6021 = vunpack.c.l.b16 %v5509
        %v6022 = vunpack.c.l.b16 %v5510
        %v6023 = vunpack.c.l.b16 %v5511
        %v6024 = vunpack.c.l.b16 %v5512
        %v6025 = vunpack.c.l.b16 %v5513
        %v6026 = vunpack.c.l.b16 %v5514
        %v6027 = vunpack.c.l.b16 %v5515
        %v6028 = vunpack.c.l.b16 %v5516
        %v6029 = vunpack.c.l.b16 %v5517
        %v6030 = vunpack.c.l.b16 %v5518
        %v6031 = vunpack.c.l.b16 %v5519
        %v6032 = vunpack.c.l.b16 %v5520
        %v6033 = vunpack.c.l.b16 %v5521
        %v6034 = vunpack.c.l.b16 %v5522
        %v6035 = vunpack.c.l.b16 %v5523
        %v6036 = vunpack.c.l.b16 %v5524
        %v6037 = vunpack.c.l.b16 %v5525
        %v6038 = vunpack.c.l.b16 %v5526
        %v6039 = vunpack.c.l.b16 %v5527
        %v6040 = vunpack.c.l.b16 %v5528
        %v6041 = vunpack.c.l.b16 %v5529
        %v6042 = vunpack.c.l.b16 %v5530
        %v6043 = vunpack.c.l.b16 %v5531
        %v6044 = vunpack.c.l.b16 %v5532
        %v6045 = vunpack.c.l.b16 %v5533
        %v6046 = vunpack.c.l.b16 %v5534
        %v6047 = vunpack.c.l.b16 %v5535
        %v6048 = vunpack.c.l.b16 %v5536
        %v6049 = vunpack.c.l.b16 %v5537
        %v6050 = vunpack.c.l.b16 %v5538
        %v6051 = vunpack.c.l.b16 %v5539
        %v6052 = vunpack.c.l.b16 %v5540
        %v6053 = vunpack.c.l.b16 %v5541
        %v6054 = vunpack.c.l.b16 %v5542
        %v6055 = vunpack.c.l.b16 %v5543
        %v6056 = vunpack.c.l.b16 %v5544
        %v6057 = vunpack.c.l.b16 %v5545
        %v6058 = vunpack.c.l.b16 %v5546
        %v6059 = vunpack.c.l.b16 %v5547
        %v6060 = vunpack.c.l.b16 %v5548
        %v6061 = vunpack.c.l.b16 %v5549
        %v6062 = vunpack.c.l.b16 %v5550
        %v6063 = vunpack.c.l.b16 %v5551
        %v6064 = vunpack.c.l.b16 %v5552
        %v6065 = vunpack.c.l.b16 %v5553
        %v6066 = vunpack.c.l.b16 %v5554
        %v6067 = vunpack.c.l.b16 %v5555
        %v6068 = vunpack.c.l.b16 %v5556
        %v6069 = vunpack.c.l.b16 %v5557
        %v6070 = vunpack.c.l.b16 %v5558
        %v6071 = vunpack.c.l.b16 %v5559
        %v6072 = vunpack.c.l.b16 %v5560
        %v6073 = vunpack.c.l.b16 %v5561
        %v6074 = vunpack.c.l.b16 %v5562
        %v6075 = vunpack.c.l.b16 %v5563
        %v6076 = vunpack.c.l.b16 %v5564
        %v6077 = vunpack.c.l.b16 %v5565
        %v6078 = vunpack.c.l.b16 %v5566
        %v6079 = vunpack.c.l.b16 %v5567
        %v6080 = vunpack.c.l.b16 %v5568
        %v6081 = vunpack.c.l.b16 %v5569
        %v6082 = vunpack.c.l.b16 %v5570
        %v6083 = vunpack.c.l.b16 %v5571
        %v6084 = vunpack.c.l.b16 %v5572
        %v6085 = vunpack.c.l.b16 %v5573
        %v6086 = vunpack.c.l.b16 %v5574
        %v6087 = vunpack.c.l.b16 %v5575
        %v6088 = vunpack.c.l.b16 %v5576
        %v6089 = vunpack.c.l.b16 %v5577
        %v6090 = vunpack.c.l.b16 %v5578
        %v6091 = vunpack.c.l.b16 %v5579
        %v6092 = vunpack.c.l.b16 %v5580
        %v6093 = vunpack.c.l.b16 %v5581
        %v6094 = vunpack.c.l.b16 %v5582
        %v6095 = vunpack.c.l.b16 %v5583
        %v6096 = vunpack.c.l.b16 %v5584
        %v6097 = vunpack.c.l.b16 %v5585
        %v6098 = vunpack.c.l.b16 %v5586
        %v6099 = vunpack.c.l.b16 %v5587
        %v6100 = vunpack.c.l.b16 %v5588
        %v6101 = vunpack.c.l.b16 %v5589
        %v6102 = vunpack.c.l.b16 %v5590
        %v6103 = vunpack.c.l.b16 %v5591
        %v6104 = vunpack.c.l.b16 %v5592
        %v6105 = vunpack.c.l.b16 %v5593
        %v6106 = vunpack.c.l.b16 %v5594
        %v6107 = vunpack.c.l.b16 %v5595
        %v6108 = vunpack.c.l.b16 %v5596
        %v6109 = vunpack.c.l.b16 %v5597
        %v6110 = vunpack.c.l.b16 %v5598
        %v6111 = vunpack.c.l.b16 %v5599
        %v6112 = vunpack.c.l.b16 %v5600
        %v6113 = vpack.c.b16 %v5858, %v5857
        %v6114 = vpack.c.b16 %v5860, %v5859
        %v6115 = vpack.c.b16 %v5862, %v5861
        %v6116 = vpack.c.b16 %v5864, %v5863
        %v6117 = vpack.c.b16 %v5866, %v5865
        %v6118 = vpack.c.b16 %v5868, %v5867
        %v6119 = vpack.c.b16 %v5870, %v5869
        %v6120 = vpack.c.b16 %v5872, %v5871
        %v6121 = vpack.c.b16 %v5874, %v5873
        %v6122 = vpack.c.b16 %v5876, %v5875
        %v6123 = vpack.c.b16 %v5878, %v5877
        %v6124 = vpack.c.b16 %v5880, %v5879
        %v6125 = vpack.c.b16 %v5882, %v5881
        %v6126 = vpack.c.b16 %v5884, %v5883
        %v6127 = vpack.c.b16 %v5886, %v5885
        %v6128 = vpack.c.b16 %v5888, %v5887
        %v6129 = vpack.c.b16 %v5890, %v5889
        %v6130 = vpack.c.b16 %v5892, %v5891
        %v6131 = vpack.c.b16 %v5894, %v5893
        %v6132 = vpack.c.b16 %v5896, %v5895
        %v6133 = vpack.c.b16 %v5898, %v5897
        %v6134 = vpack.c.b16 %v5900, %v5899
        %v6135 = vpack.c.b16 %v5902, %v5901
        %v6136 = vpack.c.b16 %v5904, %v5903
        %v6137 = vpack.c.b16 %v5906, %v5905
        %v6138 = vpack.c.b16 %v5908, %v5907
        %v6139 = vpack.c.b16 %v5910, %v5909
        %v6140 = vpack.c.b16 %v5912, %v5911
        %v6141 = vpack.c.b16 %v5914, %v5913
        %v6142 = vpack.c.b16 %v5916, %v5915
        %v6143 = vpack.c.b16 %v5918, %v5917
        %v6144 = vpack.c.b16 %v5920, %v5919
        %v6145 = vpack.c.b16 %v5922, %v5921
        %v6146 = vpack.c.b16 %v5924, %v5923
        %v6147 = vpack.c.b16 %v5926, %v5925
        %v6148 = vpack.c.b16 %v5928, %v5927
        %v6149 = vpack.c.b16 %v5930, %v5929
        %v6150 = vpack.c.b16 %v5932, %v5931
        %v6151 = vpack.c.b16 %v5934, %v5933
        %v6152 = vpack.c.b16 %v5936, %v5935
        %v6153 = vpack.c.b16 %v5938, %v5937
        %v6154 = vpack.c.b16 %v5940, %v5939
        %v6155 = vpack.c.b16 %v5942, %v5941
        %v6156 = vpack.c.b16 %v5944, %v5943
        %v6157 = vpack.c.b16 %v5946, %v5945
        %v6158 = vpack.c.b16 %v5948, %v5947
        %v6159 = vpack.c.b16 %v5950, %v5949
        %v6160 = vpack.c.b16 %v5952, %v5951
        %v6161 = vpack.c.b16 %v5954, %v5953
        %v6162 = vpack.c.b16 %v5956, %v5955
        %v6163 = vpack.c.b16 %v5958, %v5957
        %v6164 = vpack.c.b16 %v5960, %v5959
        %v6165 = vpack.c.b16 %v5962, %v5961
        %v6166 = vpack.c.b16 %v5964, %v5963
        %v6167 = vpack.c.b16 %v5966, %v5965
        %v6168 = vpack.c.b16 %v5968, %v5967
        %v6169 = vpack.c.b16 %v5970, %v5969
        %v6170 = vpack.c.b16 %v5972, %v5971
        %v6171 = vpack.c.b16 %v5974, %v5973
        %v6172 = vpack.c.b16 %v5976, %v5975
        %v6173 = vpack.c.b16 %v5978, %v5977
        %v6174 = vpack.c.b16 %v5980, %v5979
        %v6175 = vpack.c.b16 %v5982, %v5981
        %v6176 = vpack.c.b16 %v5984, %v5983
        %v6177 = vpack.c.b16 %v5986, %v5985
        %v6178 = vpack.c.b16 %v5988, %v5987
        %v6179 = vpack.c.b16 %v5990, %v5989
        %v6180 = vpack.c.b16 %v5992, %v5991
        %v6181 = vpack.c.b16 %v5994, %v5993
        %v6182 = vpack.c.b16 %v5996, %v5995
        %v6183 = vpack.c.b16 %v5998, %v5997
        %v6184 = vpack.c.b16 %v6000, %v5999
        %v6185 = vpack.c.b16 %v6002, %v6001
        %v6186 = vpack.c.b16 %v6004, %v6003
        %v6187 = vpack.c.b16 %v6006, %v6005
        %v6188 = vpack.c.b16 %v6008, %v6007
        %v6189 = vpack.c.b16 %v6010, %v6009
        %v6190 = vpack.c.b16 %v6012, %v6011
        %v6191 = vpack.c.b16 %v6014, %v6013
        %v6192 = vpack.c.b16 %v6016, %v6015
        %v6193 = vpack.c.b16 %v6018, %v6017
        %v6194 = vpack.c.b16 %v6020, %v6019
        %v6195 = vpack.c.b16 %v6022, %v6021
        %v6196 = vpack.c.b16 %v6024, %v6023
        %v6197 = vpack.c.b16 %v6026, %v6025
        %v6198 = vpack.c.b16 %v6028, %v6027
        %v6199 = vpack.c.b16 %v6030, %v6029
        %v6200 = vpack.c.b16 %v6032, %v6031
        %v6201 = vpack.c.b16 %v6034, %v6033
        %v6202 = vpack.c.b16 %v6036, %v6035
        %v6203 = vpack.c.b16 %v6038, %v6037
        %v6204 = vpack.c.b16 %v6040, %v6039
        %v6205 = vpack.c.b16 %v6042, %v6041
        %v6206 = vpack.c.b16 %v6044, %v6043
        %v6207 = vpack.c.b16 %v6046, %v6045
        %v6208 = vpack.c.b16 %v6048, %v6047
        %v6209 = vpack.c.b16 %v6050, %v6049
        %v6210 = vpack.c.b16 %v6052, %v6051
        %v6211 = vpack.c.b16 %v6054, %v6053
        %v6212 = vpack.c.b16 %v6056, %v6055
        %v6213 = vpack.c.b16 %v6058, %v6057
        %v6214 = vpack.c.b16 %v6060, %v6059
        %v6215 = vpack.c.b16 %v6062, %v6061
        %v6216 = vpack.c.b16 %v6064, %v6063
        %v6217 = vpack.c.b16 %v6066, %v6065
        %v6218 = vpack.c.b16 %v6068, %v6067
        %v6219 = vpack.c.b16 %v6070, %v6069
        %v6220 = vpack.c.b16 %v6072, %v6071
        %v6221 = vpack.c.b16 %v6074, %v6073
        %v6222 = vpack.c.b16 %v6076, %v6075
        %v6223 = vpack.c.b16 %v6078, %v6077
        %v6224 = vpack.c.b16 %v6080, %v6079
        %v6225 = vpack.c.b16 %v6082, %v6081
        %v6226 = vpack.c.b16 %v6084, %v6083
        %v6227 = vpack.c.b16 %v6086, %v6085
        %v6228 = vpack.c.b16 %v6088, %v6087
        %v6229 = vpack.c.b16 %v6090, %v6089
        %v6230 = vpack.c.b16 %v6092, %v6091
        %v6231 = vpack.c.b16 %v6094, %v6093
        %v6232 = vpack.c.b16 %v6096, %v6095
        %v6233 = vpack.c.b16 %v6098, %v6097
        %v6234 = vpack.c.b16 %v6100, %v6099
        %v6235 = vpack.c.b16 %v6102, %v6101
        %v6236 = vpack.c.b16 %v6104, %v6103
        %v6237 = vpack.c.b16 %v6106, %v6105
        %v6238 = vpack.c.b16 %v6108, %v6107
        %v6239 = vpack.c.b16 %v6110, %v6109
        %v6240 = vpack.c.b16 %v6112, %v6111
        %6369 = vmatpush.bf16.msra.mxu0 %v6120
        %6370 = vmatpush.bf16.msra.mxu0 %v6119
        %6371 = vmatpush.bf16.msra.mxu0 %v6118
        %6372 = vmatpush.bf16.msra.mxu0 %v6117
        %6373 = vmatpush.bf16.msra.mxu0 %v6116
        %6374 = vmatpush.bf16.msra.mxu0 %v6115
        %6375 = vmatpush.bf16.msra.mxu0 %v6114
        %6376 = vmatpush.bf16.msra.mxu0 %v6113
        %6377 = vmatmul.bf16.gmra.mxu0 %v5329
        %v6378 = vpop.f32.mrf.mxu0
        %v6379 = vadd.f32 0.0, %v6378
        %v6380 = vpop.f32.mrf.mxu0
        %6381 = vdwg.mxu0
        %6382 = vmatpush.bf16.msra.mxu0 %v6128
        %6383 = vmatpush.bf16.msra.mxu0 %v6127
        %6384 = vmatpush.bf16.msra.mxu0 %v6126
        %6385 = vmatpush.bf16.msra.mxu0 %v6125
        %6386 = vmatpush.bf16.msra.mxu0 %v6124
        %6387 = vmatpush.bf16.msra.mxu0 %v6123
        %6388 = vmatpush.bf16.msra.mxu0 %v6122
        %6389 = vmatpush.bf16.msra.mxu0 %v6121
        %6390 = vmatmul.bf16.gmra.mxu0 %v5330
        %v6391 = vpop.f32.mrf.mxu0
        %v6392 = vadd.f32 %v6379, %v6391
        %v6393 = vpop.f32.mrf.mxu0
        %6394 = vdwg.mxu0
        %6395 = vmatpush.bf16.msra.mxu0 %v6136
        %6396 = vmatpush.bf16.msra.mxu0 %v6135
        %6397 = vmatpush.bf16.msra.mxu0 %v6134
        %6398 = vmatpush.bf16.msra.mxu0 %v6133
        %6399 = vmatpush.bf16.msra.mxu0 %v6132
        %6400 = vmatpush.bf16.msra.mxu0 %v6131
        %6401 = vmatpush.bf16.msra.mxu0 %v6130
        %6402 = vmatpush.bf16.msra.mxu0 %v6129
        %6403 = vmatmul.bf16.gmra.mxu0 %v5331
        %v6404 = vpop.f32.mrf.mxu0
        %v6405 = vadd.f32 %v6392, %v6404
        %v6406 = vpop.f32.mrf.mxu0
        %6407 = vdwg.mxu0
        %6408 = vmatpush.bf16.msra.mxu0 %v6144
        %6409 = vmatpush.bf16.msra.mxu0 %v6143
        %6410 = vmatpush.bf16.msra.mxu0 %v6142
        %6411 = vmatpush.bf16.msra.mxu0 %v6141
        %6412 = vmatpush.bf16.msra.mxu0 %v6140
        %6413 = vmatpush.bf16.msra.mxu0 %v6139
        %6414 = vmatpush.bf16.msra.mxu0 %v6138
        %6415 = vmatpush.bf16.msra.mxu0 %v6137
        %6416 = vmatmul.bf16.gmra.mxu0 %v5332
        %v6417 = vpop.f32.mrf.mxu0
        %v6418 = vadd.f32 %v6405, %v6417
        %v6419 = vpop.f32.mrf.mxu0
        %6420 = vdwg.mxu0
        %6421 = vmatpush.bf16.msra.mxu0 %v6152
        %6422 = vmatpush.bf16.msra.mxu0 %v6151
        %6423 = vmatpush.bf16.msra.mxu0 %v6150
        %6424 = vmatpush.bf16.msra.mxu0 %v6149
        %6425 = vmatpush.bf16.msra.mxu0 %v6148
        %6426 = vmatpush.bf16.msra.mxu0 %v6147
        %6427 = vmatpush.bf16.msra.mxu0 %v6146
        %6428 = vmatpush.bf16.msra.mxu0 %v6145
        %6429 = vmatmul.bf16.gmra.mxu0 %v5333
        %v6430 = vpop.f32.mrf.mxu0
        %v6431 = vadd.f32 %v6418, %v6430
        %v6432 = vpop.f32.mrf.mxu0
        %6433 = vdwg.mxu0
        %6434 = vmatpush.bf16.msra.mxu0 %v6160
        %6435 = vmatpush.bf16.msra.mxu0 %v6159
        %6436 = vmatpush.bf16.msra.mxu0 %v6158
        %6437 = vmatpush.bf16.msra.mxu0 %v6157
        %6438 = vmatpush.bf16.msra.mxu0 %v6156
        %6439 = vmatpush.bf16.msra.mxu0 %v6155
        %6440 = vmatpush.bf16.msra.mxu0 %v6154
        %6441 = vmatpush.bf16.msra.mxu0 %v6153
        %6442 = vmatmul.bf16.gmra.mxu0 %v5334
        %v6443 = vpop.f32.mrf.mxu0
        %v6444 = vadd.f32 %v6431, %v6443
        %v6445 = vpop.f32.mrf.mxu0
        %6446 = vdwg.mxu0
        %6447 = vmatpush.bf16.msra.mxu0 %v6168
        %6448 = vmatpush.bf16.msra.mxu0 %v6167
        %6449 = vmatpush.bf16.msra.mxu0 %v6166
        %6450 = vmatpush.bf16.msra.mxu0 %v6165
        %6451 = vmatpush.bf16.msra.mxu0 %v6164
        %6452 = vmatpush.bf16.msra.mxu0 %v6163
        %6453 = vmatpush.bf16.msra.mxu0 %v6162
        %6454 = vmatpush.bf16.msra.mxu0 %v6161
        %6455 = vmatmul.bf16.gmra.mxu0 %v5335
        %v6456 = vpop.f32.mrf.mxu0
        %v6457 = vadd.f32 %v6444, %v6456
        %v6458 = vpop.f32.mrf.mxu0
        %6459 = vdwg.mxu0
        %6460 = vmatpush.bf16.msra.mxu0 %v6176
        %6461 = vmatpush.bf16.msra.mxu0 %v6175
        %6462 = vmatpush.bf16.msra.mxu0 %v6174
        %6463 = vmatpush.bf16.msra.mxu0 %v6173
        %6464 = vmatpush.bf16.msra.mxu0 %v6172
        %6465 = vmatpush.bf16.msra.mxu0 %v6171
        %6466 = vmatpush.bf16.msra.mxu0 %v6170
        %6467 = vmatpush.bf16.msra.mxu0 %v6169
        %6468 = vmatmul.bf16.gmra.mxu0 %v5336
        %v6469 = vpop.f32.mrf.mxu0
        %v6470 = vadd.f32 %v6457, %v6469
        %v6471 = vpop.f32.mrf.mxu0
        %6472 = vdwg.mxu0
        %6473 = vmatpush.bf16.msra.mxu0 %v6184
        %6474 = vmatpush.bf16.msra.mxu0 %v6183
        %6475 = vmatpush.bf16.msra.mxu0 %v6182
        %6476 = vmatpush.bf16.msra.mxu0 %v6181
        %6477 = vmatpush.bf16.msra.mxu0 %v6180
        %6478 = vmatpush.bf16.msra.mxu0 %v6179
        %6479 = vmatpush.bf16.msra.mxu0 %v6178
        %6480 = vmatpush.bf16.msra.mxu0 %v6177
        %6481 = vmatmul.bf16.gmra.mxu0 %v5337
        %v6482 = vpop.f32.mrf.mxu0
        %v6483 = vadd.f32 %v6470, %v6482
        %v6484 = vpop.f32.mrf.mxu0
        %6485 = vdwg.mxu0
        %6486 = vmatpush.bf16.msra.mxu0 %v6192
        %6487 = vmatpush.bf16.msra.mxu0 %v6191
        %6488 = vmatpush.bf16.msra.mxu0 %v6190
        %6489 = vmatpush.bf16.msra.mxu0 %v6189
        %6490 = vmatpush.bf16.msra.mxu0 %v6188
        %6491 = vmatpush.bf16.msra.mxu0 %v6187
        %6492 = vmatpush.bf16.msra.mxu0 %v6186
        %6493 = vmatpush.bf16.msra.mxu0 %v6185
        %6494 = vmatmul.bf16.gmra.mxu0 %v5338
        %v6495 = vpop.f32.mrf.mxu0
        %v6496 = vadd.f32 %v6483, %v6495
        %v6497 = vpop.f32.mrf.mxu0
        %6498 = vdwg.mxu0
        %6499 = vmatpush.bf16.msra.mxu0 %v6200
        %6500 = vmatpush.bf16.msra.mxu0 %v6199
        %6501 = vmatpush.bf16.msra.mxu0 %v6198
        %6502 = vmatpush.bf16.msra.mxu0 %v6197
        %6503 = vmatpush.bf16.msra.mxu0 %v6196
        %6504 = vmatpush.bf16.msra.mxu0 %v6195
        %6505 = vmatpush.bf16.msra.mxu0 %v6194
        %6506 = vmatpush.bf16.msra.mxu0 %v6193
        %6507 = vmatmul.bf16.gmra.mxu0 %v5339
        %v6508 = vpop.f32.mrf.mxu0
        %v6509 = vadd.f32 %v6496, %v6508
        %v6510 = vpop.f32.mrf.mxu0
        %6511 = vdwg.mxu0
        %6512 = vmatpush.bf16.msra.mxu0 %v6208
        %6513 = vmatpush.bf16.msra.mxu0 %v6207
        %6514 = vmatpush.bf16.msra.mxu0 %v6206
        %6515 = vmatpush.bf16.msra.mxu0 %v6205
        %6516 = vmatpush.bf16.msra.mxu0 %v6204
        %6517 = vmatpush.bf16.msra.mxu0 %v6203
        %6518 = vmatpush.bf16.msra.mxu0 %v6202
        %6519 = vmatpush.bf16.msra.mxu0 %v6201
        %6520 = vmatmul.bf16.gmra.mxu0 %v5340
        %v6521 = vpop.f32.mrf.mxu0
        %v6522 = vadd.f32 %v6509, %v6521
        %v6523 = vpop.f32.mrf.mxu0
        %6524 = vdwg.mxu0
        %6525 = vmatpush.bf16.msra.mxu0 %v6216
        %6526 = vmatpush.bf16.msra.mxu0 %v6215
        %6527 = vmatpush.bf16.msra.mxu0 %v6214
        %6528 = vmatpush.bf16.msra.mxu0 %v6213
        %6529 = vmatpush.bf16.msra.mxu0 %v6212
        %6530 = vmatpush.bf16.msra.mxu0 %v6211
        %6531 = vmatpush.bf16.msra.mxu0 %v6210
        %6532 = vmatpush.bf16.msra.mxu0 %v6209
        %6533 = vmatmul.bf16.gmra.mxu0 %v5341
        %v6534 = vpop.f32.mrf.mxu0
        %v6535 = vadd.f32 %v6522, %v6534
        %v6536 = vpop.f32.mrf.mxu0
        %6537 = vdwg.mxu0
        %6538 = vmatpush.bf16.msra.mxu0 %v6224
        %6539 = vmatpush.bf16.msra.mxu0 %v6223
        %6540 = vmatpush.bf16.msra.mxu0 %v6222
        %6541 = vmatpush.bf16.msra.mxu0 %v6221
        %6542 = vmatpush.bf16.msra.mxu0 %v6220
        %6543 = vmatpush.bf16.msra.mxu0 %v6219
        %6544 = vmatpush.bf16.msra.mxu0 %v6218
        %6545 = vmatpush.bf16.msra.mxu0 %v6217
        %6546 = vmatmul.bf16.gmra.mxu0 %v5342
        %v6547 = vpop.f32.mrf.mxu0
        %v6548 = vadd.f32 %v6535, %v6547
        %v6549 = vpop.f32.mrf.mxu0
        %6550 = vdwg.mxu0
        %6551 = vmatpush.bf16.msra.mxu0 %v6232
        %6552 = vmatpush.bf16.msra.mxu0 %v6231
        %6553 = vmatpush.bf16.msra.mxu0 %v6230
        %6554 = vmatpush.bf16.msra.mxu0 %v6229
        %6555 = vmatpush.bf16.msra.mxu0 %v6228
        %6556 = vmatpush.bf16.msra.mxu0 %v6227
        %6557 = vmatpush.bf16.msra.mxu0 %v6226
        %6558 = vmatpush.bf16.msra.mxu0 %v6225
        %6559 = vmatmul.bf16.gmra.mxu0 %v5343
        %v6560 = vpop.f32.mrf.mxu0
        %v6561 = vadd.f32 %v6548, %v6560
        %v6562 = vpop.f32.mrf.mxu0
        %6563 = vdwg.mxu0
        %6564 = vmatpush.bf16.msra.mxu0 %v6240
        %6565 = vmatpush.bf16.msra.mxu0 %v6239
        %6566 = vmatpush.bf16.msra.mxu0 %v6238
        %6567 = vmatpush.bf16.msra.mxu0 %v6237
        %6568 = vmatpush.bf16.msra.mxu0 %v6236
        %6569 = vmatpush.bf16.msra.mxu0 %v6235
        %6570 = vmatpush.bf16.msra.mxu0 %v6234
        %6571 = vmatpush.bf16.msra.mxu0 %v6233
        %6572 = vmatmul.bf16.gmra.mxu0 %v5344
        %v6573 = vpop.f32.mrf.mxu0
        %v6574 = vadd.f32 %v6561, %v6573
        %v6575 = vpop.f32.mrf.mxu0
        %6576 = vdwg.mxu0
        %v6577 = vadd.f32 %v5328, %v6574
        %vm6578 = vcmask 523264
        %6579 = vst.msk [vmem:[#allocation15] sm:$0xff] %vm6578, %v6577
        %p6580 = scmp.eq.s32.totalorder %s29, 1
        // Predicated region
        $region93: #{decoder_forward.1} parent=55 // pred_check
          %p6581 = pneg %p6580
        $region94: #{decoder_forward.1} parent=55 // pred_check_branch
          %6583 = sbr.rel (%p6581) target = $region96
        $region95: #{decoder_forward.1} parent=55 // pred_region
          %v6584 = vld [vmem:[#allocation15] sm:$0xff]
          %v6585 = vld [vmem:[#allocation14] sm:$0x1]
          %v6587 = vperm.slane %v6585, 0
          %v6589 = vadd.f32 %v6584, %v6587
          %v6590 = vxor.u32 %v6589, 2147483648
          %v6591 = vmul.f32 %v6590, 1.442695
          %v6592 = vpow.pop %v6591
          %v6593 = vadd.f32 %v6592, 1.0
          %v6594 = vrcp.pop %v6593
          %v6595 = vmul.f32 %v6593, %v6594
          %v6596 = vsub.f32 1.0, %v6595
          %v6597 = vmul.f32 %v6594, %v6596
          %v6598 = vadd.f32 %v6594, %v6597
          %vm6599 = vweird.f32 %v6593
          %vm6600 = vweird.f32 %v6594
          %vm6601 = vmor %vm6599, %vm6600
          %v6602 = vsel %vm6601, %v6594, %v6598
          %v6603 = vand.u32 2147483647, %v6593
          %vm6604 = vcmp.eq.f32.partialorder %v6603, 8.507059e+37
          %v6605 = vand.u32 %v6593, 2147483648
          %v6606 = vor.u32 1.1754944e-38, %v6605
          %v6607 = vsel %vm6604, %v6606, %v6602
          %v6608 = vmul.f32 1.0, %v6607
          %6609 = vst.msk [vmem:[#allocation15] sm:$0xff] %vm6578, %v6608
        $region96: #{decoder_forward.1} parent=55 // pred_fallthru
          _
        // Predicated region
        $region97: #{decoder_forward.1} parent=55 // pred_check
          %p6610 = pneg %p279
        $region98: #{decoder_forward.1} parent=55 // pred_check_branch
          %6612 = sbr.rel (%p6610) target = $region100
        $region99: #{decoder_forward.1} parent=55 // pred_region
          %6614 = vsyncadd [#allocation5], 0
          %s6615 = smul.addr %s28, 8
          %s6616 = scalar_lea.hbm %s9, %s6615
          %s6618 = sshll.u32 [#allocation15], 4
          %s6619 = int_to_ptr.vmem [resolvable:$true] %s6618
          %s6620 = sshll.u32 %s6616, 4
          %s6621 = int_to_ptr.hbm [resolvable:$true] %s6620
          %6623 = dma.vmem_to_hbm [thread:$0]  %s6619, 128, %s6621, [#allocation5]
        $region100: #{decoder_forward.1} parent=55 // pred_fallthru
          _
        // Predicated region
        $region101: #{decoder_forward.1} parent=55 // pred_check
          %p6624 = pneg %p279
        $region102: #{decoder_forward.1} parent=55 // pred_check_branch
          %6626 = sbr.rel (%p6624) target = $region104
        $region103: #{decoder_forward.1} parent=55 // pred_region
          %6628 = dma.done [#allocation5], 128
        $region104: #{decoder_forward.1} parent=55 // pred_fallthru
          _
      $region56: #{decoder_forward.1} parent=5 // pred_fallthru
        _
      %p6629 = scmp.le.s32.totalorder 2, %s19
      // Predicated region
      $region105: #{decoder_forward.1} parent=5 // pred_check
        %p6630 = pneg %p6629
      $region106: #{decoder_forward.1} parent=5 // pred_check_branch
        %6632 = sbr.rel (%p6630) target = $region108
      $region107: #{decoder_forward.1} parent=5 // pred_region
        %s6633 = ssub.s32 %s19, 2
      $region108: #{decoder_forward.1} parent=5 // pred_fallthru
        _
    $region6: #{decoder_forward.1} parent=1 // loop_footer
      %s23 = sadd.s32 1, %s19
    $region7: #{decoder_forward.1} parent=1 // loop_footer_branch
      %18 = sbr.rel target = $region3
    $region8: #{decoder_forward.1} parent=1 // loop_exit
      _
    %6634 = vsyncpa [#allocation4], 1
    %s6635 = scalar_lea.sflag [#allocation4], 1
    %6636 = vsyncpa %s6635, 1
    %6637 = vsyncpa [#allocation7], 1
    %6638 = vsyncpa [#allocation10], 1
    %6639 = vsyncpa [#allocation5], 1
    %s6640 = scalar_lea.sflag [#allocation5], 1
    %6641 = vsyncpa %s6640, 1

</llo_original>
